<compile_context>
chip_gen: v6e
topology: v6e:2x2x1
jax: 0.10.0
libtpu: 0.0.40
codegen_flags: <defaults>
</compile_context>

<pallas_src>
import math
import functools

import jax
import jax.numpy as jnp
from jax.experimental import pallas as pl
from jax.experimental.pallas import tpu as pltpu

NEG_INF = -1e30  # same convention as mask_logits() in the repo


def _layer_norm(x, gamma, beta, eps=1e-6):
    mu = jnp.mean(x, axis=-1, keepdims=True)
    xc = x - mu
    var = jnp.mean(xc * xc, axis=-1, keepdims=True)
    return xc * jax.lax.rsqrt(var + eps) * gamma + beta


def _erf(x):
    # Abramowitz & Stegun 7.1.26 rational approximation (|err| < 1.5e-7).
    # approx=False for the divide so the erf accuracy is not dominated by the
    # ~1e-3 approximate-reciprocal error (still an EUP op).
    a1, a2, a3, a4, a5 = 0.254829592, -0.284496736, 1.421413741, -1.453152027, 1.061405429
    p = 0.3275911
    ax = jnp.abs(x)
    t = pl.reciprocal(1.0 + p * ax, approx=False)
    poly = ((((a5 * t + a4) * t + a3) * t + a2) * t + a1) * t
    y = 1.0 - poly * jnp.exp(-ax * ax)
    return jnp.where(x >= 0.0, y, -y)


def _gelu_exact(x):
    # nn.GELU() default = exact (erf) variant.
    return 0.5 * x * (1.0 + _erf(x * (1.0 / math.sqrt(2.0))))


def _mha_kernel(num_heads, tq,
                x_ref, bias_ref,
                g1_ref, be1_ref,
                wq_ref, bq_ref, wkv_ref, bkv_ref,
                g2_ref, be2_ref,
                w1_ref, b1_ref, w2_ref, b2_ref,
                out_ref, kv_ref):
    qi = pl.program_id(1)
    L, D = x_ref.shape[1], x_ref.shape[2]
    H = num_heads
    hs = D // H
    TQ = tq

    g1 = g1_ref[...]
    be1 = be1_ref[...]

    # ---- LN1 + fused K/V projection: once per batch row, cached in bf16 VMEM ----
    @pl.when(qi == 0)
    def _():
        h_kv = _layer_norm(x_ref[0], g1, be1)                               # (L, D) f32
        kv = jnp.dot(h_kv.astype(jnp.bfloat16), wkv_ref[...],
                     preferred_element_type=jnp.float32) + bkv_ref[...]     # (L, 2D) f32
        kv_ref[...] = kv.astype(jnp.bfloat16)

    # ---- query tile (also the residual) sliced from the full-sequence block ----
    q_start = pl.multiple_of(qi * TQ, TQ)
    x_q = x_ref[0, pl.ds(q_start, TQ), :]                                   # (TQ, D) f32
    h_q = _layer_norm(x_q, g1, be1)
    # 1/sqrt(hs) is folded into Wq/bq on the host.
    q = (jnp.dot(h_q.astype(jnp.bfloat16), wq_ref[...],
                 preferred_element_type=jnp.float32) + bq_ref[...]).astype(jnp.bfloat16)

    k = kv_ref[:, :D]                                                       # (L, D) bf16
    v = kv_ref[:, D:]                                                       # (L, D) bf16

    # ---- split heads (lane slices; see TODO for hs >= 128 einshape path) ----
    q_h = jnp.stack([q[:, i * hs:(i + 1) * hs] for i in range(H)], axis=0)  # (H,TQ,hs) bf16
    k_h = jnp.stack([k[:, i * hs:(i + 1) * hs] for i in range(H)], axis=0)  # (H,L,hs)  bf16
    v_h = jnp.stack([v[:, i * hs:(i + 1) * hs] for i in range(H)], axis=0)  # (H,L,hs)  bf16

    # ---- bf16 scores (f32 acc) + f32 masked softmax ----
    s = jnp.einsum('hqd,hkd->hqk', q_h, k_h,
                   preferred_element_type=jnp.float32)                      # (H,TQ,L) f32
    s = s + bias_ref[...]                           # precomputed (1,1,L) additive bias
    s_max = jnp.max(s, axis=-1, keepdims=True)
    p = jnp.exp(s - s_max)
    p = p * pl.reciprocal(jnp.sum(p, axis=-1, keepdims=True), approx=True)
    # attention-prob dropout is identity at inference time.

    ctx = jnp.einsum('hqk,hkd->hqd', p.astype(jnp.bfloat16), v_h,
                     preferred_element_type=jnp.float32)                    # (H,TQ,hs) f32
    ctx = jnp.concatenate([ctx[i] for i in range(H)], axis=-1)              # (TQ, D)

    residual = x_q + ctx                    # dropout on ctx is identity

    # ---- LN2 + out_layer1 -> GELU -> out_layer2 + residual ----
    h2 = _layer_norm(residual, g2_ref[...], be2_ref[...])
    h2 = jnp.dot(h2.astype(jnp.bfloat16), w1_ref[...],
                 preferred_element_type=jnp.float32) + b1_ref[...]
    h2 = _gelu_exact(h2)
    out = jnp.dot(h2.astype(jnp.bfloat16), w2_ref[...],
                  preferred_element_type=jnp.float32) + b2_ref[...]
    out_ref[0] = out + residual


def multi_head_attention(x, mask, params, num_heads):
    """x: (B, L, D) f32, mask: (B, L) f32 (1 = keep, 0 = pad)."""
    (g1, be1, wq, bq, wk, bk, wv, bv, g2, be2, w1, b1, w2, b2) = params
    B, L, D = x.shape
    assert D % num_heads == 0
    hs = D // num_heads
    inv_scale = 1.0 / math.sqrt(hs)
    H = num_heads

    # Host-side packing: fold the attention scale into the Q projection, fuse
    # K/V into one (D, 2D) matmul, cast MXU weights to bf16, precompute the
    # additive mask bias.
    wq_s = (wq * inv_scale).astype(jnp.bfloat16)
    bq_s = bq * inv_scale
    wkv = jnp.concatenate([wk, wv], axis=1).astype(jnp.bfloat16)    # (D, 2D)
    bkv = jnp.concatenate([bk, bv], axis=1)                         # (1, 2D)
    w1b = w1.astype(jnp.bfloat16)
    w2b = w2.astype(jnp.bfloat16)
    bias = ((1.0 - mask) * NEG_INF)[:, None, :]                     # (B, 1, L) f32

    # Query tile: larger tiles amortize per-step overhead and feed the MXU
    # M-dim; keep (TQ, D) (8,128)-aligned for production shapes.
    if L <= 256:
        TQ = L
    elif L % 256 == 0:
        TQ = 256
    else:
        TQ = 128
    assert L % TQ == 0, "sequence length must be a multiple of the query tile"
    QN = L // TQ

    try:
        vmem_cap = int(pltpu.get_tpu_info().vmem_capacity_bytes)
    except Exception:
        vmem_cap = 64 * 1024 * 1024
    vmem_limit = min((vmem_cap * 3) // 4, 100 * 1024 * 1024)

    cost = pl.CostEstimate(
        flops=int(B * (10 * L * D * D + 4 * L * L * D)),
        transcendentals=int(B * (H * L * L + 2 * L * D)),
        bytes_accessed=int(8 * B * L * D + 4 * B * L + 10 * D * D + 24 * D),
    )

    kernel = functools.partial(_mha_kernel, num_heads, TQ)
    args = (x, bias, g1, be1, wq_s, bq_s, wkv, bkv, g2, be2, w1b, b1, w2b, b2)

    def build(single_buffer_weights):
        def invariant(shape):
            idx = lambda b, qi, _n=len(shape): (0,) * _n
            if single_buffer_weights:
                # Grid-invariant operand: one VMEM buffer is enough.
                return pl.BlockSpec(shape, idx,
                                    pipeline_mode=pl.Buffered(buffer_count=1))
            return pl.BlockSpec(shape, idx)

        in_specs = [
            pl.BlockSpec((1, L, D), lambda b, qi: (b, 0, 0)),   # x (full sequence)
            pl.BlockSpec((1, 1, L), lambda b, qi: (b, 0, 0)),   # additive mask bias
            invariant((1, D)), invariant((1, D)),               # LN1 gamma / beta
            invariant((D, D)), invariant((1, D)),               # Wq (pre-scaled, bf16), bq
            invariant((D, 2 * D)), invariant((1, 2 * D)),       # Wkv (bf16), bkv
            invariant((1, D)), invariant((1, D)),               # LN2 gamma / beta
            invariant((D, D)), invariant((1, D)),               # out_layer1 W (bf16), b
            invariant((D, D)), invariant((1, D)),               # out_layer2 W (bf16), b
        ]
        return pl.pallas_call(
            kernel,
            out_shape=jax.ShapeDtypeStruct((B, L, D), jnp.float32),
            grid_spec=pltpu.PrefetchScalarGridSpec(
                num_scalar_prefetch=0,
                grid=(B, QN),
                in_specs=in_specs,
                out_specs=pl.BlockSpec((1, TQ, D), lambda b, qi: (b, qi, 0)),
                scratch_shapes=[pltpu.VMEM((L, 2 * D), jnp.bfloat16)],   # cached K/V
            ),
            compiler_params=pltpu.CompilerParams(
                # qi is "arbitrary": the kv scratch is carried across query tiles.
                dimension_semantics=("parallel", "arbitrary"),
                vmem_limit_bytes=vmem_limit,
            ),
            cost_estimate=cost,
        )

    try:
        return build(True)(*args)
    except Exception:
        # Fallback for Pallas builds without BlockSpec.pipeline_mode support.
        return build(False)(*args)


def reference(x, mask, params, num_heads):
    """Pure-JAX f32 reference mirroring the PyTorch forward (eval mode)."""
    (g1, be1, wq, bq, wk, bk, wv, bv, g2, be2, w1, b1, w2, b2) = params
    B, L, D = x.shape
    hs = D // num_heads

    def ln(t, g, b):
        mu = t.mean(-1, keepdims=True)
        var = ((t - mu) ** 2).mean(-1, keepdims=True)
        return (t - mu) / jnp.sqrt(var + 1e-6) * g + b

    h = ln(x, g1, be1)
    q, k, v = h @ wq + bq, h @ wk + bk, h @ wv + bv
    split = lambda t: t.reshape(B, L, num_heads, hs).transpose(0, 2, 1, 3)
    qh, kh, vh = split(q), split(k), split(v)
    s = jnp.einsum('bhqd,bhkd->bhqk', qh, kh) / math.sqrt(hs)
    s = s + (1.0 - mask)[:, None, None, :] * NEG_INF
    p = jax.nn.softmax(s, axis=-1)
    ctx = jnp.einsum('bhqk,bhkd->bhqd', p, vh).transpose(0, 2, 1, 3).reshape(B, L, D)
    residual = x + ctx
    o = ln(residual, g2, be2)
    o = jax.nn.gelu(o @ w1 + b1, approximate=False)
    return o @ w2 + b2 + residual


if __name__ == "__main__":
    B, L, D, H = 2, 8, 32, 4          # batch, seq, dim, num_heads (dim % H == 0)
    key = jax.random.PRNGKey(0)
    keys = jax.random.split(key, 12)

    def w(k, shape, scale=0.1):
        return jax.random.normal(k, shape, jnp.float32) * scale

    params = (
        jnp.ones((1, D), jnp.float32),              # layer_norm1 gamma
        jnp.zeros((1, D), jnp.float32),             # layer_norm1 beta
        w(keys[0], (D, D)), w(keys[1], (1, D)),     # query  W, b
        w(keys[2], (D, D)), w(keys[3], (1, D)),     # key    W, b
        w(keys[4], (D, D)), w(keys[5], (1, D)),     # value  W, b
        jnp.ones((1, D), jnp.float32),              # layer_norm2 gamma
        jnp.zeros((1, D), jnp.float32),             # layer_norm2 beta
        w(keys[6], (D, D)), w(keys[7], (1, D)),     # out_layer1 W, b
        w(keys[8], (D, D)), w(keys[9], (1, D)),     # out_layer2 W, b
    )

    x = jax.random.normal(keys[10], (B, L, D), jnp.float32)
    # mask: first 6 positions valid, last 2 padded
    mask = jnp.concatenate(
        [jnp.ones((B, 6), jnp.float32), jnp.zeros((B, 2), jnp.float32)], axis=1)

    out = multi_head_attention(x, mask, params, H)
    jax.block_until_ready(out)

    ref = reference(x, mask, params, H)
    assert out.shape == (B, L, D)
    # Tolerance accounts for bf16 MXU operands (weights, K/V cache, attention
    # einsums) with f32 accumulation and the approximate softmax reciprocal.
    assert jnp.allclose(out, ref, atol=3e-2, rtol=3e-2), \
        float(jnp.max(jnp.abs(out - ref)))
    print("KERNEL_OK")
</pallas_src>

<mosaic_0001>
module attributes {stable_mosaic.version = 11 : i64} {
  func.func @_mha_kernel(%arg0: i32, %arg1: i32, %arg2: memref<1x8x32xf32, #tpu.memory_space<vmem>>, %arg3: memref<1x1x8xf32, #tpu.memory_space<vmem>>, %arg4: memref<1x32xf32, #tpu.memory_space<vmem>>, %arg5: memref<1x32xf32, #tpu.memory_space<vmem>>, %arg6: memref<32x32xbf16, #tpu.memory_space<vmem>>, %arg7: memref<1x32xf32, #tpu.memory_space<vmem>>, %arg8: memref<32x64xbf16, #tpu.memory_space<vmem>>, %arg9: memref<1x64xf32, #tpu.memory_space<vmem>>, %arg10: memref<1x32xf32, #tpu.memory_space<vmem>>, %arg11: memref<1x32xf32, #tpu.memory_space<vmem>>, %arg12: memref<32x32xbf16, #tpu.memory_space<vmem>>, %arg13: memref<1x32xf32, #tpu.memory_space<vmem>>, %arg14: memref<32x32xbf16, #tpu.memory_space<vmem>>, %arg15: memref<1x32xf32, #tpu.memory_space<vmem>>, %arg16: memref<1x8x32xf32, #tpu.memory_space<vmem>>, %arg17: memref<8x64xbf16, #tpu.memory_space<vmem>>) attributes {dimension_semantics = [#tpu.dimension_semantics<parallel>, #tpu.dimension_semantics<arbitrary>], iteration_bounds = array<i64: 2, 1>, scalar_prefetch = 0 : i64, scratch_operands = 1 : i64, tpu.core_type = #tpu.core_type<tc>, window_params = [{transform_indices = @transform_0, window_bounds = array<i64: 1, 8, 32>}, {transform_indices = @transform_1, window_bounds = array<i64: 1, 1, 8>}, {pipeline_mode = #tpu.pipeline_mode<synchronous>, transform_indices = @transform_2, window_bounds = array<i64: 1, 32>}, {pipeline_mode = #tpu.pipeline_mode<synchronous>, transform_indices = @transform_3, window_bounds = array<i64: 1, 32>}, {pipeline_mode = #tpu.pipeline_mode<synchronous>, transform_indices = @transform_4, window_bounds = array<i64: 32, 32>}, {pipeline_mode = #tpu.pipeline_mode<synchronous>, transform_indices = @transform_5, window_bounds = array<i64: 1, 32>}, {pipeline_mode = #tpu.pipeline_mode<synchronous>, transform_indices = @transform_6, window_bounds = array<i64: 32, 64>}, {pipeline_mode = #tpu.pipeline_mode<synchronous>, transform_indices = @transform_7, window_bounds = array<i64: 1, 64>}, {pipeline_mode = #tpu.pipeline_mode<synchronous>, transform_indices = @transform_8, window_bounds = array<i64: 1, 32>}, {pipeline_mode = #tpu.pipeline_mode<synchronous>, transform_indices = @transform_9, window_bounds = array<i64: 1, 32>}, {pipeline_mode = #tpu.pipeline_mode<synchronous>, transform_indices = @transform_10, window_bounds = array<i64: 32, 32>}, {pipeline_mode = #tpu.pipeline_mode<synchronous>, transform_indices = @transform_11, window_bounds = array<i64: 1, 32>}, {pipeline_mode = #tpu.pipeline_mode<synchronous>, transform_indices = @transform_12, window_bounds = array<i64: 32, 32>}, {pipeline_mode = #tpu.pipeline_mode<synchronous>, transform_indices = @transform_13, window_bounds = array<i64: 1, 32>}, {transform_indices = @transform_14, window_bounds = array<i64: 1, 8, 32>}]} {
    %c0 = arith.constant 0 : index
    %c0_0 = arith.constant 0 : index
    %0 = vector.load %arg4[%c0, %c0_0] : memref<1x32xf32, #tpu.memory_space<vmem>>, vector<1x32xf32>
    %c0_1 = arith.constant 0 : index
    %c0_2 = arith.constant 0 : index
    %1 = vector.load %arg5[%c0_1, %c0_2] : memref<1x32xf32, #tpu.memory_space<vmem>>, vector<1x32xf32>
    %c0_i32 = arith.constant 0 : i32
    %2 = arith.cmpi eq, %arg1, %c0_i32 : i32
    %3 = arith.extui %2 : i1 to i32
    %c0_i32_3 = arith.constant 0 : i32
    %4 = arith.cmpi ne, %3, %c0_i32_3 : i32
    scf.if %4 {
      %c0_61 = arith.constant 0 : index
      %c0_62 = arith.constant 0 : index
      %c0_63 = arith.constant 0 : index
      %169 = vector.load %arg2[%c0_61, %c0_62, %c0_63] : memref<1x8x32xf32, #tpu.memory_space<vmem>>, vector<1x8x32xf32>
      %170 = vector.shape_cast %169 : vector<1x8x32xf32> to vector<8x32xf32>
      %cst_64 = arith.constant dense<0.000000e+00> : vector<8xf32>
      %171 = vector.multi_reduction <add>, %170, %cst_64 [1] : vector<8x32xf32> to vector<8xf32>
      %172 = vector.shape_cast %171 : vector<8xf32> to vector<8x1xf32>
      %cst_65 = arith.constant 3.200000e+01 : f32
      %173 = vector.broadcast %cst_65 : f32 to vector<8x1xf32>
      %174 = arith.divf %172, %173 : vector<8x1xf32>
      %175 = vector.broadcast %174 : vector<8x1xf32> to vector<8x32xf32>
      %176 = arith.subf %170, %175 : vector<8x32xf32>
      %177 = arith.mulf %176, %176 : vector<8x32xf32>
      %cst_66 = arith.constant dense<0.000000e+00> : vector<8xf32>
      %178 = vector.multi_reduction <add>, %177, %cst_66 [1] : vector<8x32xf32> to vector<8xf32>
      %179 = vector.shape_cast %178 : vector<8xf32> to vector<8x1xf32>
      %cst_67 = arith.constant 3.200000e+01 : f32
      %180 = vector.broadcast %cst_67 : f32 to vector<8x1xf32>
      %181 = arith.divf %179, %180 : vector<8x1xf32>
      %cst_68 = arith.constant 9.99999997E-7 : f32
      %182 = vector.broadcast %cst_68 : f32 to vector<8x1xf32>
      %183 = arith.addf %181, %182 : vector<8x1xf32>
      %184 = math.rsqrt %183 : vector<8x1xf32>
      %185 = vector.broadcast %184 : vector<8x1xf32> to vector<8x32xf32>
      %186 = arith.mulf %176, %185 : vector<8x32xf32>
      %187 = vector.broadcast %0 : vector<1x32xf32> to vector<8x32xf32>
      %188 = arith.mulf %186, %187 : vector<8x32xf32>
      %189 = vector.broadcast %1 : vector<1x32xf32> to vector<8x32xf32>
      %190 = arith.addf %188, %189 : vector<8x32xf32>
      %191 = arith.truncf %190 : vector<8x32xf32> to vector<8x32xbf16>
      %c0_69 = arith.constant 0 : index
      %c0_70 = arith.constant 0 : index
      %192 = vector.load %arg8[%c0_69, %c0_70] : memref<32x64xbf16, #tpu.memory_space<vmem>>, vector<32x64xbf16>
      %cst_71 = arith.constant dense<0.000000e+00> : vector<8x64xf32>
      %193 = tpu.matmul %191, %192, %cst_71 {dimension_numbers = #tpu.dot_dimension_numbers<[1], [0], [0], [1], [0, 0, 1, 1], [], []>} : vector<8x32xbf16>, vector<32x64xbf16>, vector<8x64xf32> -> vector<8x64xf32>
      %c0_72 = arith.constant 0 : index
      %c0_73 = arith.constant 0 : index
      %194 = vector.load %arg9[%c0_72, %c0_73] : memref<1x64xf32, #tpu.memory_space<vmem>>, vector<1x64xf32>
      %195 = vector.broadcast %194 : vector<1x64xf32> to vector<8x64xf32>
      %196 = arith.addf %193, %195 : vector<8x64xf32>
      %197 = arith.truncf %196 : vector<8x64xf32> to vector<8x64xbf16>
      %c0_74 = arith.constant 0 : index
      %c0_75 = arith.constant 0 : index
      %198 = vector.load %arg17[%c0_74, %c0_75] : memref<8x64xbf16, #tpu.memory_space<vmem>>, vector<8x64xbf16>
      tpu.vector_store %arg17[%c0_74, %c0_75], %197 {strides = array<i32>} : memref<8x64xbf16, #tpu.memory_space<vmem>>, vector<8x64xbf16>,
    } else {
    }
    %c8_i32 = arith.constant 8 : i32
    %5 = arith.muli %arg1, %c8_i32 : i32
    %6 = tpu.assume_multiple %5, 8 : i32
    %c0_4 = arith.constant 0 : index
    %7 = arith.index_cast %6 : i32 to index
    %c0_5 = arith.constant 0 : index
    %8 = vector.load %arg2[%c0_4, %7, %c0_5] : memref<1x8x32xf32, #tpu.memory_space<vmem>>, vector<1x8x32xf32>
    %9 = vector.shape_cast %8 : vector<1x8x32xf32> to vector<8x32xf32>
    %cst = arith.constant dense<0.000000e+00> : vector<8xf32>
    %10 = vector.multi_reduction <add>, %9, %cst [1] : vector<8x32xf32> to vector<8xf32>
    %11 = vector.shape_cast %10 : vector<8xf32> to vector<8x1xf32>
    %cst_6 = arith.constant 3.200000e+01 : f32
    %12 = vector.broadcast %cst_6 : f32 to vector<8x1xf32>
    %13 = arith.divf %11, %12 : vector<8x1xf32>
    %14 = vector.broadcast %13 : vector<8x1xf32> to vector<8x32xf32>
    %15 = arith.subf %9, %14 : vector<8x32xf32>
    %16 = arith.mulf %15, %15 : vector<8x32xf32>
    %cst_7 = arith.constant dense<0.000000e+00> : vector<8xf32>
    %17 = vector.multi_reduction <add>, %16, %cst_7 [1] : vector<8x32xf32> to vector<8xf32>
    %18 = vector.shape_cast %17 : vector<8xf32> to vector<8x1xf32>
    %cst_8 = arith.constant 3.200000e+01 : f32
    %19 = vector.broadcast %cst_8 : f32 to vector<8x1xf32>
    %20 = arith.divf %18, %19 : vector<8x1xf32>
    %cst_9 = arith.constant 9.99999997E-7 : f32
    %21 = vector.broadcast %cst_9 : f32 to vector<8x1xf32>
    %22 = arith.addf %20, %21 : vector<8x1xf32>
    %23 = math.rsqrt %22 : vector<8x1xf32>
    %24 = vector.broadcast %23 : vector<8x1xf32> to vector<8x32xf32>
    %25 = arith.mulf %15, %24 : vector<8x32xf32>
    %26 = vector.broadcast %0 : vector<1x32xf32> to vector<8x32xf32>
    %27 = arith.mulf %25, %26 : vector<8x32xf32>
    %28 = vector.broadcast %1 : vector<1x32xf32> to vector<8x32xf32>
    %29 = arith.addf %27, %28 : vector<8x32xf32>
    %30 = arith.truncf %29 : vector<8x32xf32> to vector<8x32xbf16>
    %c0_10 = arith.constant 0 : index
    %c0_11 = arith.constant 0 : index
    %31 = vector.load %arg6[%c0_10, %c0_11] : memref<32x32xbf16, #tpu.memory_space<vmem>>, vector<32x32xbf16>
    %cst_12 = arith.constant dense<0.000000e+00> : vector<8x32xf32>
    %32 = tpu.matmul %30, %31, %cst_12 {dimension_numbers = #tpu.dot_dimension_numbers<[1], [0], [0], [1], [0, 0, 1, 1], [], []>} : vector<8x32xbf16>, vector<32x32xbf16>, vector<8x32xf32> -> vector<8x32xf32>
    %c0_13 = arith.constant 0 : index
    %c0_14 = arith.constant 0 : index
    %33 = vector.load %arg7[%c0_13, %c0_14] : memref<1x32xf32, #tpu.memory_space<vmem>>, vector<1x32xf32>
    %34 = vector.broadcast %33 : vector<1x32xf32> to vector<8x32xf32>
    %35 = arith.addf %32, %34 : vector<8x32xf32>
    %36 = arith.truncf %35 : vector<8x32xf32> to vector<8x32xbf16>
    %c0_15 = arith.constant 0 : index
    %c0_16 = arith.constant 0 : index
    %37 = vector.load %arg17[%c0_15, %c0_16] : memref<8x64xbf16, #tpu.memory_space<vmem>>, vector<8x32xbf16>
    %c0_17 = arith.constant 0 : index
    %c32 = arith.constant 32 : index
    %38 = vector.load %arg17[%c0_17, %c32] : memref<8x64xbf16, #tpu.memory_space<vmem>>, vector<8x32xbf16>
    %39 = vector.extract_strided_slice %36 {offsets = [0, 0], sizes = [8, 8], strides = [1, 1]} : vector<8x32xbf16> to vector<8x8xbf16>
    %40 = vector.extract_strided_slice %36 {offsets = [0, 8], sizes = [8, 8], strides = [1, 1]} : vector<8x32xbf16> to vector<8x8xbf16>
    %41 = vector.extract_strided_slice %36 {offsets = [0, 16], sizes = [8, 8], strides = [1, 1]} : vector<8x32xbf16> to vector<8x8xbf16>
    %42 = vector.extract_strided_slice %36 {offsets = [0, 24], sizes = [8, 8], strides = [1, 1]} : vector<8x32xbf16> to vector<8x8xbf16>
    %43 = vector.shape_cast %39 : vector<8x8xbf16> to vector<1x8x8xbf16>
    %44 = vector.shape_cast %40 : vector<8x8xbf16> to vector<1x8x8xbf16>
    %45 = vector.shape_cast %41 : vector<8x8xbf16> to vector<1x8x8xbf16>
    %46 = vector.shape_cast %42 : vector<8x8xbf16> to vector<1x8x8xbf16>
    %47 = tpu.concatenate %43, %44, %45, %46 in 0 : vector<1x8x8xbf16>, vector<1x8x8xbf16>, vector<1x8x8xbf16>, vector<1x8x8xbf16> -> vector<4x8x8xbf16>
    %48 = vector.extract_strided_slice %37 {offsets = [0, 0], sizes = [8, 8], strides = [1, 1]} : vector<8x32xbf16> to vector<8x8xbf16>
    %49 = vector.extract_strided_slice %37 {offsets = [0, 8], sizes = [8, 8], strides = [1, 1]} : vector<8x32xbf16> to vector<8x8xbf16>
    %50 = vector.extract_strided_slice %37 {offsets = [0, 16], sizes = [8, 8], strides = [1, 1]} : vector<8x32xbf16> to vector<8x8xbf16>
    %51 = vector.extract_strided_slice %37 {offsets = [0, 24], sizes = [8, 8], strides = [1, 1]} : vector<8x32xbf16> to vector<8x8xbf16>
    %52 = vector.shape_cast %48 : vector<8x8xbf16> to vector<1x8x8xbf16>
    %53 = vector.shape_cast %49 : vector<8x8xbf16> to vector<1x8x8xbf16>
    %54 = vector.shape_cast %50 : vector<8x8xbf16> to vector<1x8x8xbf16>
    %55 = vector.shape_cast %51 : vector<8x8xbf16> to vector<1x8x8xbf16>
    %56 = tpu.concatenate %52, %53, %54, %55 in 0 : vector<1x8x8xbf16>, vector<1x8x8xbf16>, vector<1x8x8xbf16>, vector<1x8x8xbf16> -> vector<4x8x8xbf16>
    %57 = vector.extract_strided_slice %38 {offsets = [0, 0], sizes = [8, 8], strides = [1, 1]} : vector<8x32xbf16> to vector<8x8xbf16>
    %58 = vector.extract_strided_slice %38 {offsets = [0, 8], sizes = [8, 8], strides = [1, 1]} : vector<8x32xbf16> to vector<8x8xbf16>
    %59 = vector.extract_strided_slice %38 {offsets = [0, 16], sizes = [8, 8], strides = [1, 1]} : vector<8x32xbf16> to vector<8x8xbf16>
    %60 = vector.extract_strided_slice %38 {offsets = [0, 24], sizes = [8, 8], strides = [1, 1]} : vector<8x32xbf16> to vector<8x8xbf16>
    %61 = vector.shape_cast %57 : vector<8x8xbf16> to vector<1x8x8xbf16>
    %62 = vector.shape_cast %58 : vector<8x8xbf16> to vector<1x8x8xbf16>
    %63 = vector.shape_cast %59 : vector<8x8xbf16> to vector<1x8x8xbf16>
    %64 = vector.shape_cast %60 : vector<8x8xbf16> to vector<1x8x8xbf16>
    %65 = tpu.concatenate %61, %62, %63, %64 in 0 : vector<1x8x8xbf16>, vector<1x8x8xbf16>, vector<1x8x8xbf16>, vector<1x8x8xbf16> -> vector<4x8x8xbf16>
    "tpu.trace_start"() <{level = 10 : i32, message = "hqd,hkd->hqk"}> : () -> ()
    %cst_18 = arith.constant dense<0.000000e+00> : vector<4x8x8xf32>
    %66 = tpu.matmul %47, %56, %cst_18 {dimension_numbers = #tpu.dot_dimension_numbers<[2], [2], [1], [1], [0, 0, 0, 1, 1, 1], [0], [0]>} : vector<4x8x8xbf16>, vector<4x8x8xbf16>, vector<4x8x8xf32> -> vector<4x8x8xf32>
    "tpu.trace_stop"() : () -> ()
    %c0_19 = arith.constant 0 : index
    %c0_20 = arith.constant 0 : index
    %c0_21 = arith.constant 0 : index
    %67 = vector.load %arg3[%c0_19, %c0_20, %c0_21] : memref<1x1x8xf32, #tpu.memory_space<vmem>>, vector<1x1x8xf32>
    %68 = vector.broadcast %67 : vector<1x1x8xf32> to vector<4x8x8xf32>
    %69 = arith.addf %66, %68 : vector<4x8x8xf32>
    %cst_22 = arith.constant dense<0xFF800000> : vector<4x8xf32>
    %70 = vector.multi_reduction <maximumf>, %69, %cst_22 [2] : vector<4x8x8xf32> to vector<4x8xf32>
    %71 = vector.shape_cast %70 : vector<4x8xf32> to vector<4x8x1xf32>
    %72 = vector.broadcast %71 : vector<4x8x1xf32> to vector<4x8x8xf32>
    %73 = arith.subf %69, %72 : vector<4x8x8xf32>
    %74 = math.exp %73 : vector<4x8x8xf32>
    %cst_23 = arith.constant dense<0.000000e+00> : vector<4x8xf32>
    %75 = vector.multi_reduction <add>, %74, %cst_23 [2] : vector<4x8x8xf32> to vector<4x8xf32>
    %76 = vector.shape_cast %75 : vector<4x8xf32> to vector<4x8x1xf32>
    %77 = tpu.reciprocal %76 {approx = true} : vector<4x8x1xf32> -> vector<4x8x1xf32>
    %78 = vector.broadcast %77 : vector<4x8x1xf32> to vector<4x8x8xf32>
    %79 = arith.mulf %74, %78 : vector<4x8x8xf32>
    %80 = arith.truncf %79 : vector<4x8x8xf32> to vector<4x8x8xbf16>
    "tpu.trace_start"() <{level = 10 : i32, message = "hqk,hkd->hqd"}> : () -> ()
    %cst_24 = arith.constant dense<0.000000e+00> : vector<4x8x8xf32>
    %81 = tpu.matmul %80, %65, %cst_24 {dimension_numbers = #tpu.dot_dimension_numbers<[2], [1], [1], [2], [0, 0, 0, 1, 1, 2], [0], [0]>} : vector<4x8x8xbf16>, vector<4x8x8xbf16>, vector<4x8x8xf32> -> vector<4x8x8xf32>
    "tpu.trace_stop"() : () -> ()
    %82 = vector.extract_strided_slice %81 {offsets = [0, 0, 0], sizes = [1, 8, 8], strides = [1, 1, 1]} : vector<4x8x8xf32> to vector<1x8x8xf32>
    %83 = vector.shape_cast %82 : vector<1x8x8xf32> to vector<8x8xf32>
    %84 = vector.extract_strided_slice %81 {offsets = [1, 0, 0], sizes = [1, 8, 8], strides = [1, 1, 1]} : vector<4x8x8xf32> to vector<1x8x8xf32>
    %85 = vector.shape_cast %84 : vector<1x8x8xf32> to vector<8x8xf32>
    %86 = vector.extract_strided_slice %81 {offsets = [2, 0, 0], sizes = [1, 8, 8], strides = [1, 1, 1]} : vector<4x8x8xf32> to vector<1x8x8xf32>
    %87 = vector.shape_cast %86 : vector<1x8x8xf32> to vector<8x8xf32>
    %88 = vector.extract_strided_slice %81 {offsets = [3, 0, 0], sizes = [1, 8, 8], strides = [1, 1, 1]} : vector<4x8x8xf32> to vector<1x8x8xf32>
    %89 = vector.shape_cast %88 : vector<1x8x8xf32> to vector<8x8xf32>
    %90 = tpu.concatenate %83, %85, %87, %89 in 1 : vector<8x8xf32>, vector<8x8xf32>, vector<8x8xf32>, vector<8x8xf32> -> vector<8x32xf32>
    %91 = arith.addf %9, %90 : vector<8x32xf32>
    %c0_25 = arith.constant 0 : index
    %c0_26 = arith.constant 0 : index
    %92 = vector.load %arg10[%c0_25, %c0_26] : memref<1x32xf32, #tpu.memory_space<vmem>>, vector<1x32xf32>
    %c0_27 = arith.constant 0 : index
    %c0_28 = arith.constant 0 : index
    %93 = vector.load %arg11[%c0_27, %c0_28] : memref<1x32xf32, #tpu.memory_space<vmem>>, vector<1x32xf32>
    %cst_29 = arith.constant dense<0.000000e+00> : vector<8xf32>
    %94 = vector.multi_reduction <add>, %91, %cst_29 [1] : vector<8x32xf32> to vector<8xf32>
    %95 = vector.shape_cast %94 : vector<8xf32> to vector<8x1xf32>
    %cst_30 = arith.constant 3.200000e+01 : f32
    %96 = vector.broadcast %cst_30 : f32 to vector<8x1xf32>
    %97 = arith.divf %95, %96 : vector<8x1xf32>
    %98 = vector.broadcast %97 : vector<8x1xf32> to vector<8x32xf32>
    %99 = arith.subf %91, %98 : vector<8x32xf32>
    %100 = arith.mulf %99, %99 : vector<8x32xf32>
    %cst_31 = arith.constant dense<0.000000e+00> : vector<8xf32>
    %101 = vector.multi_reduction <add>, %100, %cst_31 [1] : vector<8x32xf32> to vector<8xf32>
    %102 = vector.shape_cast %101 : vector<8xf32> to vector<8x1xf32>
    %cst_32 = arith.constant 3.200000e+01 : f32
    %103 = vector.broadcast %cst_32 : f32 to vector<8x1xf32>
    %104 = arith.divf %102, %103 : vector<8x1xf32>
    %cst_33 = arith.constant 9.99999997E-7 : f32
    %105 = vector.broadcast %cst_33 : f32 to vector<8x1xf32>
    %106 = arith.addf %104, %105 : vector<8x1xf32>
    %107 = math.rsqrt %106 : vector<8x1xf32>
    %108 = vector.broadcast %107 : vector<8x1xf32> to vector<8x32xf32>
    %109 = arith.mulf %99, %108 : vector<8x32xf32>
    %110 = vector.broadcast %92 : vector<1x32xf32> to vector<8x32xf32>
    %111 = arith.mulf %109, %110 : vector<8x32xf32>
    %112 = vector.broadcast %93 : vector<1x32xf32> to vector<8x32xf32>
    %113 = arith.addf %111, %112 : vector<8x32xf32>
    %114 = arith.truncf %113 : vector<8x32xf32> to vector<8x32xbf16>
    %c0_34 = arith.constant 0 : index
    %c0_35 = arith.constant 0 : index
    %115 = vector.load %arg12[%c0_34, %c0_35] : memref<32x32xbf16, #tpu.memory_space<vmem>>, vector<32x32xbf16>
    %cst_36 = arith.constant dense<0.000000e+00> : vector<8x32xf32>
    %116 = tpu.matmul %114, %115, %cst_36 {dimension_numbers = #tpu.dot_dimension_numbers<[1], [0], [0], [1], [0, 0, 1, 1], [], []>} : vector<8x32xbf16>, vector<32x32xbf16>, vector<8x32xf32> -> vector<8x32xf32>
    %c0_37 = arith.constant 0 : index
    %c0_38 = arith.constant 0 : index
    %117 = vector.load %arg13[%c0_37, %c0_38] : memref<1x32xf32, #tpu.memory_space<vmem>>, vector<1x32xf32>
    %118 = vector.broadcast %117 : vector<1x32xf32> to vector<8x32xf32>
    %119 = arith.addf %116, %118 : vector<8x32xf32>
    %cst_39 = arith.constant 5.000000e-01 : f32
    %120 = vector.broadcast %cst_39 : f32 to vector<8x32xf32>
    %121 = arith.mulf %120, %119 : vector<8x32xf32>
    %cst_40 = arith.constant 0.707106769 : f32
    %122 = vector.broadcast %cst_40 : f32 to vector<8x32xf32>
    %123 = arith.mulf %119, %122 : vector<8x32xf32>
    %124 = math.absf %123 : vector<8x32xf32>
    %cst_41 = arith.constant 0.327591091 : f32
    %125 = vector.broadcast %cst_41 : f32 to vector<8x32xf32>
    %126 = arith.mulf %125, %124 : vector<8x32xf32>
    %cst_42 = arith.constant 1.000000e+00 : f32
    %127 = vector.broadcast %cst_42 : f32 to vector<8x32xf32>
    %128 = arith.addf %127, %126 : vector<8x32xf32>
    %129 = tpu.reciprocal %128 : vector<8x32xf32> -> vector<8x32xf32>
    %cst_43 = arith.constant 1.06140542 : f32
    %130 = vector.broadcast %cst_43 : f32 to vector<8x32xf32>
    %131 = arith.mulf %130, %129 : vector<8x32xf32>
    %cst_44 = arith.constant -1.45315206 : f32
    %132 = vector.broadcast %cst_44 : f32 to vector<8x32xf32>
    %133 = arith.addf %131, %132 : vector<8x32xf32>
    %134 = arith.mulf %133, %129 : vector<8x32xf32>
    %cst_45 = arith.constant 1.42141378 : f32
    %135 = vector.broadcast %cst_45 : f32 to vector<8x32xf32>
    %136 = arith.addf %134, %135 : vector<8x32xf32>
    %137 = arith.mulf %136, %129 : vector<8x32xf32>
    %cst_46 = arith.constant -0.284496725 : f32
    %138 = vector.broadcast %cst_46 : f32 to vector<8x32xf32>
    %139 = arith.addf %137, %138 : vector<8x32xf32>
    %140 = arith.mulf %139, %129 : vector<8x32xf32>
    %cst_47 = arith.constant 0.254829586 : f32
    %141 = vector.broadcast %cst_47 : f32 to vector<8x32xf32>
    %142 = arith.addf %140, %141 : vector<8x32xf32>
    %143 = arith.mulf %142, %129 : vector<8x32xf32>
    %cst_48 = arith.constant 0.000000e+00 : f32
    %144 = vector.broadcast %cst_48 : f32 to vector<8x32xf32>
    %145 = arith.subf %144, %124 : vector<8x32xf32>
    %146 = arith.mulf %145, %124 : vector<8x32xf32>
    %147 = math.exp %146 : vector<8x32xf32>
    %148 = arith.mulf %143, %147 : vector<8x32xf32>
    %cst_49 = arith.constant 1.000000e+00 : f32
    %149 = vector.broadcast %cst_49 : f32 to vector<8x32xf32>
    %150 = arith.subf %149, %148 : vector<8x32xf32>
    %cst_50 = arith.constant 0.000000e+00 : f32
    %151 = vector.broadcast %cst_50 : f32 to vector<8x32xf32>
    %152 = arith.cmpf oge, %123, %151 : vector<8x32xf32>
    %cst_51 = arith.constant 0.000000e+00 : f32
    %153 = vector.broadcast %cst_51 : f32 to vector<8x32xf32>
    %154 = arith.subf %153, %150 : vector<8x32xf32>
    %155 = arith.select %152, %150, %154 : vector<8x32xi1>, vector<8x32xf32>
    %cst_52 = arith.constant 1.000000e+00 : f32
    %156 = vector.broadcast %cst_52 : f32 to vector<8x32xf32>
    %157 = arith.addf %156, %155 : vector<8x32xf32>
    %158 = arith.mulf %121, %157 : vector<8x32xf32>
    %159 = arith.truncf %158 : vector<8x32xf32> to vector<8x32xbf16>
    %c0_53 = arith.constant 0 : index
    %c0_54 = arith.constant 0 : index
    %160 = vector.load %arg14[%c0_53, %c0_54] : memref<32x32xbf16, #tpu.memory_space<vmem>>, vector<32x32xbf16>
    %cst_55 = arith.constant dense<0.000000e+00> : vector<8x32xf32>
    %161 = tpu.matmul %159, %160, %cst_55 {dimension_numbers = #tpu.dot_dimension_numbers<[1], [0], [0], [1], [0, 0, 1, 1], [], []>} : vector<8x32xbf16>, vector<32x32xbf16>, vector<8x32xf32> -> vector<8x32xf32>
    %c0_56 = arith.constant 0 : index
    %c0_57 = arith.constant 0 : index
    %162 = vector.load %arg15[%c0_56, %c0_57] : memref<1x32xf32, #tpu.memory_space<vmem>>, vector<1x32xf32>
    %163 = vector.broadcast %162 : vector<1x32xf32> to vector<8x32xf32>
    %164 = arith.addf %161, %163 : vector<8x32xf32>
    %165 = arith.addf %164, %91 : vector<8x32xf32>
    %c0_58 = arith.constant 0 : index
    %c0_59 = arith.constant 0 : index
    %c0_60 = arith.constant 0 : index
    %166 = vector.load %arg16[%c0_58, %c0_59, %c0_60] : memref<1x8x32xf32, #tpu.memory_space<vmem>>, vector<1x8x32xf32>
    %167 = vector.shape_cast %166 : vector<1x8x32xf32> to vector<8x32xf32>
    %168 = vector.shape_cast %165 : vector<8x32xf32> to vector<1x8x32xf32>
    tpu.vector_store %arg16[%c0_58, %c0_59, %c0_60], %168 {strides = array<i32>} : memref<1x8x32xf32, #tpu.memory_space<vmem>>, vector<1x8x32xf32>,
    return
  }
  func.func @transform_0(%arg0: i32, %arg1: i32) -> (i32, i32, i32) {
    %c0_i32 = arith.constant 0 : i32
    %c0_i32_0 = arith.constant 0 : i32
    %c0_i32_1 = arith.constant 0 : i32
    return %arg0, %c0_i32, %c0_i32_0 : i32, i32, i32
  }
  func.func @transform_1(%arg0: i32, %arg1: i32) -> (i32, i32, i32) {
    %c0_i32 = arith.constant 0 : i32
    %c0_i32_0 = arith.constant 0 : i32
    %c0_i32_1 = arith.constant 0 : i32
    return %arg0, %c0_i32, %c0_i32_0 : i32, i32, i32
  }
  func.func @transform_2(%arg0: i32, %arg1: i32) -> (i32, i32) {
    %c0_i32 = arith.constant 0 : i32
    %c0_i32_0 = arith.constant 0 : i32
    %c0_i32_1 = arith.constant 0 : i32
    return %c0_i32, %c0_i32_0 : i32, i32
  }
  func.func @transform_3(%arg0: i32, %arg1: i32) -> (i32, i32) {
    %c0_i32 = arith.constant 0 : i32
    %c0_i32_0 = arith.constant 0 : i32
    %c0_i32_1 = arith.constant 0 : i32
    return %c0_i32, %c0_i32_0 : i32, i32
  }
  func.func @transform_4(%arg0: i32, %arg1: i32) -> (i32, i32) {
    %c0_i32 = arith.constant 0 : i32
    %c0_i32_0 = arith.constant 0 : i32
    %c0_i32_1 = arith.constant 0 : i32
    return %c0_i32, %c0_i32_0 : i32, i32
  }
  func.func @transform_5(%arg0: i32, %arg1: i32) -> (i32, i32) {
    %c0_i32 = arith.constant 0 : i32
    %c0_i32_0 = arith.constant 0 : i32
    %c0_i32_1 = arith.constant 0 : i32
    return %c0_i32, %c0_i32_0 : i32, i32
  }
  func.func @transform_6(%arg0: i32, %arg1: i32) -> (i32, i32) {
    %c0_i32 = arith.constant 0 : i32
    %c0_i32_0 = arith.constant 0 : i32
    %c0_i32_1 = arith.constant 0 : i32
    return %c0_i32, %c0_i32_0 : i32, i32
  }
  func.func @transform_7(%arg0: i32, %arg1: i32) -> (i32, i32) {
    %c0_i32 = arith.constant 0 : i32
    %c0_i32_0 = arith.constant 0 : i32
    %c0_i32_1 = arith.constant 0 : i32
    return %c0_i32, %c0_i32_0 : i32, i32
  }
  func.func @transform_8(%arg0: i32, %arg1: i32) -> (i32, i32) {
    %c0_i32 = arith.constant 0 : i32
    %c0_i32_0 = arith.constant 0 : i32
    %c0_i32_1 = arith.constant 0 : i32
    return %c0_i32, %c0_i32_0 : i32, i32
  }
  func.func @transform_9(%arg0: i32, %arg1: i32) -> (i32, i32) {
    %c0_i32 = arith.constant 0 : i32
    %c0_i32_0 = arith.constant 0 : i32
    %c0_i32_1 = arith.constant 0 : i32
    return %c0_i32, %c0_i32_0 : i32, i32
  }
  func.func @transform_10(%arg0: i32, %arg1: i32) -> (i32, i32) {
    %c0_i32 = arith.constant 0 : i32
    %c0_i32_0 = arith.constant 0 : i32
    %c0_i32_1 = arith.constant 0 : i32
    return %c0_i32, %c0_i32_0 : i32, i32
  }
  func.func @transform_11(%arg0: i32, %arg1: i32) -> (i32, i32) {
    %c0_i32 = arith.constant 0 : i32
    %c0_i32_0 = arith.constant 0 : i32
    %c0_i32_1 = arith.constant 0 : i32
    return %c0_i32, %c0_i32_0 : i32, i32
  }
  func.func @transform_12(%arg0: i32, %arg1: i32) -> (i32, i32) {
    %c0_i32 = arith.constant 0 : i32
    %c0_i32_0 = arith.constant 0 : i32
    %c0_i32_1 = arith.constant 0 : i32
    return %c0_i32, %c0_i32_0 : i32, i32
  }
  func.func @transform_13(%arg0: i32, %arg1: i32) -> (i32, i32) {
    %c0_i32 = arith.constant 0 : i32
    %c0_i32_0 = arith.constant 0 : i32
    %c0_i32_1 = arith.constant 0 : i32
    return %c0_i32, %c0_i32_0 : i32, i32
  }
  func.func @transform_14(%arg0: i32, %arg1: i32) -> (i32, i32, i32) {
    %c0_i32 = arith.constant 0 : i32
    %c0_i32_0 = arith.constant 0 : i32
    return %arg0, %arg1, %c0_i32 : i32, i32, i32
  }
}

module attributes {stable_mosaic.version = 11 : i64} {
  func.func @_mha_kernel(%arg0: i32, %arg1: i32, %arg2: memref<1x8x32xf32, #tpu.memory_space<vmem>>, %arg3: memref<1x1x8xf32, #tpu.memory_space<vmem>>, %arg4: memref<1x32xf32, #tpu.memory_space<vmem>>, %arg5: memref<1x32xf32, #tpu.memory_space<vmem>>, %arg6: memref<32x32xbf16, #tpu.memory_space<vmem>>, %arg7: memref<1x32xf32, #tpu.memory_space<vmem>>, %arg8: memref<32x64xbf16, #tpu.memory_space<vmem>>, %arg9: memref<1x64xf32, #tpu.memory_space<vmem>>, %arg10: memref<1x32xf32, #tpu.memory_space<vmem>>, %arg11: memref<1x32xf32, #tpu.memory_space<vmem>>, %arg12: memref<32x32xbf16, #tpu.memory_space<vmem>>, %arg13: memref<1x32xf32, #tpu.memory_space<vmem>>, %arg14: memref<32x32xbf16, #tpu.memory_space<vmem>>, %arg15: memref<1x32xf32, #tpu.memory_space<vmem>>, %arg16: memref<1x8x32xf32, #tpu.memory_space<vmem>>, %arg17: memref<8x64xbf16, #tpu.memory_space<vmem>>) attributes {dimension_semantics = [#tpu.dimension_semantics<parallel>, #tpu.dimension_semantics<arbitrary>], iteration_bounds = array<i64: 2, 1>, scalar_prefetch = 0 : i64, scratch_operands = 1 : i64, tpu.core_type = #tpu.core_type<tc>, window_params = [{transform_indices = @transform_0, window_bounds = array<i64: 1, 8, 32>}, {transform_indices = @transform_1, window_bounds = array<i64: 1, 1, 8>}, {pipeline_mode = #tpu.pipeline_mode<synchronous>, transform_indices = @transform_2, window_bounds = array<i64: 1, 32>}, {pipeline_mode = #tpu.pipeline_mode<synchronous>, transform_indices = @transform_3, window_bounds = array<i64: 1, 32>}, {pipeline_mode = #tpu.pipeline_mode<synchronous>, transform_indices = @transform_4, window_bounds = array<i64: 32, 32>}, {pipeline_mode = #tpu.pipeline_mode<synchronous>, transform_indices = @transform_5, window_bounds = array<i64: 1, 32>}, {pipeline_mode = #tpu.pipeline_mode<synchronous>, transform_indices = @transform_6, window_bounds = array<i64: 32, 64>}, {pipeline_mode = #tpu.pipeline_mode<synchronous>, transform_indices = @transform_7, window_bounds = array<i64: 1, 64>}, {pipeline_mode = #tpu.pipeline_mode<synchronous>, transform_indices = @transform_8, window_bounds = array<i64: 1, 32>}, {pipeline_mode = #tpu.pipeline_mode<synchronous>, transform_indices = @transform_9, window_bounds = array<i64: 1, 32>}, {pipeline_mode = #tpu.pipeline_mode<synchronous>, transform_indices = @transform_10, window_bounds = array<i64: 32, 32>}, {pipeline_mode = #tpu.pipeline_mode<synchronous>, transform_indices = @transform_11, window_bounds = array<i64: 1, 32>}, {pipeline_mode = #tpu.pipeline_mode<synchronous>, transform_indices = @transform_12, window_bounds = array<i64: 32, 32>}, {pipeline_mode = #tpu.pipeline_mode<synchronous>, transform_indices = @transform_13, window_bounds = array<i64: 1, 32>}, {transform_indices = @transform_14, window_bounds = array<i64: 1, 8, 32>}]} {
    %c0 = arith.constant 0 : index
    %c0_0 = arith.constant 0 : index
    %0 = vector.load %arg4[%c0, %c0_0] : memref<1x32xf32, #tpu.memory_space<vmem>>, vector<1x32xf32>
    %c0_1 = arith.constant 0 : index
    %c0_2 = arith.constant 0 : index
    %1 = vector.load %arg5[%c0_1, %c0_2] : memref<1x32xf32, #tpu.memory_space<vmem>>, vector<1x32xf32>
    %c0_i32 = arith.constant 0 : i32
    %2 = arith.cmpi eq, %arg1, %c0_i32 : i32
    %3 = arith.extui %2 : i1 to i32
    %c0_i32_3 = arith.constant 0 : i32
    %4 = arith.cmpi ne, %3, %c0_i32_3 : i32
    scf.if %4 {
      %c0_61 = arith.constant 0 : index
      %c0_62 = arith.constant 0 : index
      %c0_63 = arith.constant 0 : index
      %169 = vector.load %arg2[%c0_61, %c0_62, %c0_63] : memref<1x8x32xf32, #tpu.memory_space<vmem>>, vector<1x8x32xf32>
      %170 = vector.shape_cast %169 : vector<1x8x32xf32> to vector<8x32xf32>
      %cst_64 = arith.constant dense<0.000000e+00> : vector<8xf32>
      %171 = vector.multi_reduction <add>, %170, %cst_64 [1] : vector<8x32xf32> to vector<8xf32>
      %172 = vector.shape_cast %171 : vector<8xf32> to vector<8x1xf32>
      %cst_65 = arith.constant 3.200000e+01 : f32
      %173 = vector.broadcast %cst_65 : f32 to vector<8x1xf32>
      %174 = arith.divf %172, %173 : vector<8x1xf32>
      %175 = vector.broadcast %174 : vector<8x1xf32> to vector<8x32xf32>
      %176 = arith.subf %170, %175 : vector<8x32xf32>
      %177 = arith.mulf %176, %176 : vector<8x32xf32>
      %cst_66 = arith.constant dense<0.000000e+00> : vector<8xf32>
      %178 = vector.multi_reduction <add>, %177, %cst_66 [1] : vector<8x32xf32> to vector<8xf32>
      %179 = vector.shape_cast %178 : vector<8xf32> to vector<8x1xf32>
      %cst_67 = arith.constant 3.200000e+01 : f32
      %180 = vector.broadcast %cst_67 : f32 to vector<8x1xf32>
      %181 = arith.divf %179, %180 : vector<8x1xf32>
      %cst_68 = arith.constant 9.99999997E-7 : f32
      %182 = vector.broadcast %cst_68 : f32 to vector<8x1xf32>
      %183 = arith.addf %181, %182 : vector<8x1xf32>
      %184 = math.rsqrt %183 : vector<8x1xf32>
      %185 = vector.broadcast %184 : vector<8x1xf32> to vector<8x32xf32>
      %186 = arith.mulf %176, %185 : vector<8x32xf32>
      %187 = vector.broadcast %0 : vector<1x32xf32> to vector<8x32xf32>
      %188 = arith.mulf %186, %187 : vector<8x32xf32>
      %189 = vector.broadcast %1 : vector<1x32xf32> to vector<8x32xf32>
      %190 = arith.addf %188, %189 : vector<8x32xf32>
      %191 = arith.truncf %190 : vector<8x32xf32> to vector<8x32xbf16>
      %c0_69 = arith.constant 0 : index
      %c0_70 = arith.constant 0 : index
      %192 = vector.load %arg8[%c0_69, %c0_70] : memref<32x64xbf16, #tpu.memory_space<vmem>>, vector<32x64xbf16>
      %cst_71 = arith.constant dense<0.000000e+00> : vector<8x64xf32>
      %193 = tpu.matmul %191, %192, %cst_71 {dimension_numbers = #tpu.dot_dimension_numbers<[1], [0], [0], [1], [0, 0, 1, 1], [], []>} : vector<8x32xbf16>, vector<32x64xbf16>, vector<8x64xf32> -> vector<8x64xf32>
      %c0_72 = arith.constant 0 : index
      %c0_73 = arith.constant 0 : index
      %194 = vector.load %arg9[%c0_72, %c0_73] : memref<1x64xf32, #tpu.memory_space<vmem>>, vector<1x64xf32>
      %195 = vector.broadcast %194 : vector<1x64xf32> to vector<8x64xf32>
      %196 = arith.addf %193, %195 : vector<8x64xf32>
      %197 = arith.truncf %196 : vector<8x64xf32> to vector<8x64xbf16>
      %c0_74 = arith.constant 0 : index
      %c0_75 = arith.constant 0 : index
      %198 = vector.load %arg17[%c0_74, %c0_75] : memref<8x64xbf16, #tpu.memory_space<vmem>>, vector<8x64xbf16>
      tpu.vector_store %arg17[%c0_74, %c0_75], %197 {strides = array<i32>} : memref<8x64xbf16, #tpu.memory_space<vmem>>, vector<8x64xbf16>,
    } else {
    }
    %c8_i32 = arith.constant 8 : i32
    %5 = arith.muli %arg1, %c8_i32 : i32
    %6 = tpu.assume_multiple %5, 8 : i32
    %c0_4 = arith.constant 0 : index
    %7 = arith.index_cast %6 : i32 to index
    %c0_5 = arith.constant 0 : index
    %8 = vector.load %arg2[%c0_4, %7, %c0_5] : memref<1x8x32xf32, #tpu.memory_space<vmem>>, vector<1x8x32xf32>
    %9 = vector.shape_cast %8 : vector<1x8x32xf32> to vector<8x32xf32>
    %cst = arith.constant dense<0.000000e+00> : vector<8xf32>
    %10 = vector.multi_reduction <add>, %9, %cst [1] : vector<8x32xf32> to vector<8xf32>
    %11 = vector.shape_cast %10 : vector<8xf32> to vector<8x1xf32>
    %cst_6 = arith.constant 3.200000e+01 : f32
    %12 = vector.broadcast %cst_6 : f32 to vector<8x1xf32>
    %13 = arith.divf %11, %12 : vector<8x1xf32>
    %14 = vector.broadcast %13 : vector<8x1xf32> to vector<8x32xf32>
    %15 = arith.subf %9, %14 : vector<8x32xf32>
    %16 = arith.mulf %15, %15 : vector<8x32xf32>
    %cst_7 = arith.constant dense<0.000000e+00> : vector<8xf32>
    %17 = vector.multi_reduction <add>, %16, %cst_7 [1] : vector<8x32xf32> to vector<8xf32>
    %18 = vector.shape_cast %17 : vector<8xf32> to vector<8x1xf32>
    %cst_8 = arith.constant 3.200000e+01 : f32
    %19 = vector.broadcast %cst_8 : f32 to vector<8x1xf32>
    %20 = arith.divf %18, %19 : vector<8x1xf32>
    %cst_9 = arith.constant 9.99999997E-7 : f32
    %21 = vector.broadcast %cst_9 : f32 to vector<8x1xf32>
    %22 = arith.addf %20, %21 : vector<8x1xf32>
    %23 = math.rsqrt %22 : vector<8x1xf32>
    %24 = vector.broadcast %23 : vector<8x1xf32> to vector<8x32xf32>
    %25 = arith.mulf %15, %24 : vector<8x32xf32>
    %26 = vector.broadcast %0 : vector<1x32xf32> to vector<8x32xf32>
    %27 = arith.mulf %25, %26 : vector<8x32xf32>
    %28 = vector.broadcast %1 : vector<1x32xf32> to vector<8x32xf32>
    %29 = arith.addf %27, %28 : vector<8x32xf32>
    %30 = arith.truncf %29 : vector<8x32xf32> to vector<8x32xbf16>
    %c0_10 = arith.constant 0 : index
    %c0_11 = arith.constant 0 : index
    %31 = vector.load %arg6[%c0_10, %c0_11] : memref<32x32xbf16, #tpu.memory_space<vmem>>, vector<32x32xbf16>
    %cst_12 = arith.constant dense<0.000000e+00> : vector<8x32xf32>
    %32 = tpu.matmul %30, %31, %cst_12 {dimension_numbers = #tpu.dot_dimension_numbers<[1], [0], [0], [1], [0, 0, 1, 1], [], []>} : vector<8x32xbf16>, vector<32x32xbf16>, vector<8x32xf32> -> vector<8x32xf32>
    %c0_13 = arith.constant 0 : index
    %c0_14 = arith.constant 0 : index
    %33 = vector.load %arg7[%c0_13, %c0_14] : memref<1x32xf32, #tpu.memory_space<vmem>>, vector<1x32xf32>
    %34 = vector.broadcast %33 : vector<1x32xf32> to vector<8x32xf32>
    %35 = arith.addf %32, %34 : vector<8x32xf32>
    %36 = arith.truncf %35 : vector<8x32xf32> to vector<8x32xbf16>
    %c0_15 = arith.constant 0 : index
    %c0_16 = arith.constant 0 : index
    %37 = vector.load %arg17[%c0_15, %c0_16] : memref<8x64xbf16, #tpu.memory_space<vmem>>, vector<8x32xbf16>
    %c0_17 = arith.constant 0 : index
    %c32 = arith.constant 32 : index
    %38 = vector.load %arg17[%c0_17, %c32] : memref<8x64xbf16, #tpu.memory_space<vmem>>, vector<8x32xbf16>
    %39 = vector.extract_strided_slice %36 {offsets = [0, 0], sizes = [8, 8], strides = [1, 1]} : vector<8x32xbf16> to vector<8x8xbf16>
    %40 = vector.extract_strided_slice %36 {offsets = [0, 8], sizes = [8, 8], strides = [1, 1]} : vector<8x32xbf16> to vector<8x8xbf16>
    %41 = vector.extract_strided_slice %36 {offsets = [0, 16], sizes = [8, 8], strides = [1, 1]} : vector<8x32xbf16> to vector<8x8xbf16>
    %42 = vector.extract_strided_slice %36 {offsets = [0, 24], sizes = [8, 8], strides = [1, 1]} : vector<8x32xbf16> to vector<8x8xbf16>
    %43 = vector.shape_cast %39 : vector<8x8xbf16> to vector<1x8x8xbf16>
    %44 = vector.shape_cast %40 : vector<8x8xbf16> to vector<1x8x8xbf16>
    %45 = vector.shape_cast %41 : vector<8x8xbf16> to vector<1x8x8xbf16>
    %46 = vector.shape_cast %42 : vector<8x8xbf16> to vector<1x8x8xbf16>
    %47 = tpu.concatenate %43, %44, %45, %46 in 0 : vector<1x8x8xbf16>, vector<1x8x8xbf16>, vector<1x8x8xbf16>, vector<1x8x8xbf16> -> vector<4x8x8xbf16>
    %48 = vector.extract_strided_slice %37 {offsets = [0, 0], sizes = [8, 8], strides = [1, 1]} : vector<8x32xbf16> to vector<8x8xbf16>
    %49 = vector.extract_strided_slice %37 {offsets = [0, 8], sizes = [8, 8], strides = [1, 1]} : vector<8x32xbf16> to vector<8x8xbf16>
    %50 = vector.extract_strided_slice %37 {offsets = [0, 16], sizes = [8, 8], strides = [1, 1]} : vector<8x32xbf16> to vector<8x8xbf16>
    %51 = vector.extract_strided_slice %37 {offsets = [0, 24], sizes = [8, 8], strides = [1, 1]} : vector<8x32xbf16> to vector<8x8xbf16>
    %52 = vector.shape_cast %48 : vector<8x8xbf16> to vector<1x8x8xbf16>
    %53 = vector.shape_cast %49 : vector<8x8xbf16> to vector<1x8x8xbf16>
    %54 = vector.shape_cast %50 : vector<8x8xbf16> to vector<1x8x8xbf16>
    %55 = vector.shape_cast %51 : vector<8x8xbf16> to vector<1x8x8xbf16>
    %56 = tpu.concatenate %52, %53, %54, %55 in 0 : vector<1x8x8xbf16>, vector<1x8x8xbf16>, vector<1x8x8xbf16>, vector<1x8x8xbf16> -> vector<4x8x8xbf16>
    %57 = vector.extract_strided_slice %38 {offsets = [0, 0], sizes = [8, 8], strides = [1, 1]} : vector<8x32xbf16> to vector<8x8xbf16>
    %58 = vector.extract_strided_slice %38 {offsets = [0, 8], sizes = [8, 8], strides = [1, 1]} : vector<8x32xbf16> to vector<8x8xbf16>
    %59 = vector.extract_strided_slice %38 {offsets = [0, 16], sizes = [8, 8], strides = [1, 1]} : vector<8x32xbf16> to vector<8x8xbf16>
    %60 = vector.extract_strided_slice %38 {offsets = [0, 24], sizes = [8, 8], strides = [1, 1]} : vector<8x32xbf16> to vector<8x8xbf16>
    %61 = vector.shape_cast %57 : vector<8x8xbf16> to vector<1x8x8xbf16>
    %62 = vector.shape_cast %58 : vector<8x8xbf16> to vector<1x8x8xbf16>
    %63 = vector.shape_cast %59 : vector<8x8xbf16> to vector<1x8x8xbf16>
    %64 = vector.shape_cast %60 : vector<8x8xbf16> to vector<1x8x8xbf16>
    %65 = tpu.concatenate %61, %62, %63, %64 in 0 : vector<1x8x8xbf16>, vector<1x8x8xbf16>, vector<1x8x8xbf16>, vector<1x8x8xbf16> -> vector<4x8x8xbf16>
    "tpu.trace_start"() <{level = 10 : i32, message = "hqd,hkd->hqk"}> : () -> ()
    %cst_18 = arith.constant dense<0.000000e+00> : vector<4x8x8xf32>
    %66 = tpu.matmul %47, %56, %cst_18 {dimension_numbers = #tpu.dot_dimension_numbers<[2], [2], [1], [1], [0, 0, 0, 1, 1, 1], [0], [0]>} : vector<4x8x8xbf16>, vector<4x8x8xbf16>, vector<4x8x8xf32> -> vector<4x8x8xf32>
    "tpu.trace_stop"() : () -> ()
    %c0_19 = arith.constant 0 : index
    %c0_20 = arith.constant 0 : index
    %c0_21 = arith.constant 0 : index
    %67 = vector.load %arg3[%c0_19, %c0_20, %c0_21] : memref<1x1x8xf32, #tpu.memory_space<vmem>>, vector<1x1x8xf32>
    %68 = vector.broadcast %67 : vector<1x1x8xf32> to vector<4x8x8xf32>
    %69 = arith.addf %66, %68 : vector<4x8x8xf32>
    %cst_22 = arith.constant dense<0xFF800000> : vector<4x8xf32>
    %70 = vector.multi_reduction <maximumf>, %69, %cst_22 [2] : vector<4x8x8xf32> to vector<4x8xf32>
    %71 = vector.shape_cast %70 : vector<4x8xf32> to vector<4x8x1xf32>
    %72 = vector.broadcast %71 : vector<4x8x1xf32> to vector<4x8x8xf32>
    %73 = arith.subf %69, %72 : vector<4x8x8xf32>
    %74 = math.exp %73 : vector<4x8x8xf32>
    %cst_23 = arith.constant dense<0.000000e+00> : vector<4x8xf32>
    %75 = vector.multi_reduction <add>, %74, %cst_23 [2] : vector<4x8x8xf32> to vector<4x8xf32>
    %76 = vector.shape_cast %75 : vector<4x8xf32> to vector<4x8x1xf32>
    %77 = tpu.reciprocal %76 {approx = true} : vector<4x8x1xf32> -> vector<4x8x1xf32>
    %78 = vector.broadcast %77 : vector<4x8x1xf32> to vector<4x8x8xf32>
    %79 = arith.mulf %74, %78 : vector<4x8x8xf32>
    %80 = arith.truncf %79 : vector<4x8x8xf32> to vector<4x8x8xbf16>
    "tpu.trace_start"() <{level = 10 : i32, message = "hqk,hkd->hqd"}> : () -> ()
    %cst_24 = arith.constant dense<0.000000e+00> : vector<4x8x8xf32>
    %81 = tpu.matmul %80, %65, %cst_24 {dimension_numbers = #tpu.dot_dimension_numbers<[2], [1], [1], [2], [0, 0, 0, 1, 1, 2], [0], [0]>} : vector<4x8x8xbf16>, vector<4x8x8xbf16>, vector<4x8x8xf32> -> vector<4x8x8xf32>
    "tpu.trace_stop"() : () -> ()
    %82 = vector.extract_strided_slice %81 {offsets = [0, 0, 0], sizes = [1, 8, 8], strides = [1, 1, 1]} : vector<4x8x8xf32> to vector<1x8x8xf32>
    %83 = vector.shape_cast %82 : vector<1x8x8xf32> to vector<8x8xf32>
    %84 = vector.extract_strided_slice %81 {offsets = [1, 0, 0], sizes = [1, 8, 8], strides = [1, 1, 1]} : vector<4x8x8xf32> to vector<1x8x8xf32>
    %85 = vector.shape_cast %84 : vector<1x8x8xf32> to vector<8x8xf32>
    %86 = vector.extract_strided_slice %81 {offsets = [2, 0, 0], sizes = [1, 8, 8], strides = [1, 1, 1]} : vector<4x8x8xf32> to vector<1x8x8xf32>
    %87 = vector.shape_cast %86 : vector<1x8x8xf32> to vector<8x8xf32>
    %88 = vector.extract_strided_slice %81 {offsets = [3, 0, 0], sizes = [1, 8, 8], strides = [1, 1, 1]} : vector<4x8x8xf32> to vector<1x8x8xf32>
    %89 = vector.shape_cast %88 : vector<1x8x8xf32> to vector<8x8xf32>
    %90 = tpu.concatenate %83, %85, %87, %89 in 1 : vector<8x8xf32>, vector<8x8xf32>, vector<8x8xf32>, vector<8x8xf32> -> vector<8x32xf32>
    %91 = arith.addf %9, %90 : vector<8x32xf32>
    %c0_25 = arith.constant 0 : index
    %c0_26 = arith.constant 0 : index
    %92 = vector.load %arg10[%c0_25, %c0_26] : memref<1x32xf32, #tpu.memory_space<vmem>>, vector<1x32xf32>
    %c0_27 = arith.constant 0 : index
    %c0_28 = arith.constant 0 : index
    %93 = vector.load %arg11[%c0_27, %c0_28] : memref<1x32xf32, #tpu.memory_space<vmem>>, vector<1x32xf32>
    %cst_29 = arith.constant dense<0.000000e+00> : vector<8xf32>
    %94 = vector.multi_reduction <add>, %91, %cst_29 [1] : vector<8x32xf32> to vector<8xf32>
    %95 = vector.shape_cast %94 : vector<8xf32> to vector<8x1xf32>
    %cst_30 = arith.constant 3.200000e+01 : f32
    %96 = vector.broadcast %cst_30 : f32 to vector<8x1xf32>
    %97 = arith.divf %95, %96 : vector<8x1xf32>
    %98 = vector.broadcast %97 : vector<8x1xf32> to vector<8x32xf32>
    %99 = arith.subf %91, %98 : vector<8x32xf32>
    %100 = arith.mulf %99, %99 : vector<8x32xf32>
    %cst_31 = arith.constant dense<0.000000e+00> : vector<8xf32>
    %101 = vector.multi_reduction <add>, %100, %cst_31 [1] : vector<8x32xf32> to vector<8xf32>
    %102 = vector.shape_cast %101 : vector<8xf32> to vector<8x1xf32>
    %cst_32 = arith.constant 3.200000e+01 : f32
    %103 = vector.broadcast %cst_32 : f32 to vector<8x1xf32>
    %104 = arith.divf %102, %103 : vector<8x1xf32>
    %cst_33 = arith.constant 9.99999997E-7 : f32
    %105 = vector.broadcast %cst_33 : f32 to vector<8x1xf32>
    %106 = arith.addf %104, %105 : vector<8x1xf32>
    %107 = math.rsqrt %106 : vector<8x1xf32>
    %108 = vector.broadcast %107 : vector<8x1xf32> to vector<8x32xf32>
    %109 = arith.mulf %99, %108 : vector<8x32xf32>
    %110 = vector.broadcast %92 : vector<1x32xf32> to vector<8x32xf32>
    %111 = arith.mulf %109, %110 : vector<8x32xf32>
    %112 = vector.broadcast %93 : vector<1x32xf32> to vector<8x32xf32>
    %113 = arith.addf %111, %112 : vector<8x32xf32>
    %114 = arith.truncf %113 : vector<8x32xf32> to vector<8x32xbf16>
    %c0_34 = arith.constant 0 : index
    %c0_35 = arith.constant 0 : index
    %115 = vector.load %arg12[%c0_34, %c0_35] : memref<32x32xbf16, #tpu.memory_space<vmem>>, vector<32x32xbf16>
    %cst_36 = arith.constant dense<0.000000e+00> : vector<8x32xf32>
    %116 = tpu.matmul %114, %115, %cst_36 {dimension_numbers = #tpu.dot_dimension_numbers<[1], [0], [0], [1], [0, 0, 1, 1], [], []>} : vector<8x32xbf16>, vector<32x32xbf16>, vector<8x32xf32> -> vector<8x32xf32>
    %c0_37 = arith.constant 0 : index
    %c0_38 = arith.constant 0 : index
    %117 = vector.load %arg13[%c0_37, %c0_38] : memref<1x32xf32, #tpu.memory_space<vmem>>, vector<1x32xf32>
    %118 = vector.broadcast %117 : vector<1x32xf32> to vector<8x32xf32>
    %119 = arith.addf %116, %118 : vector<8x32xf32>
    %cst_39 = arith.constant 5.000000e-01 : f32
    %120 = vector.broadcast %cst_39 : f32 to vector<8x32xf32>
    %121 = arith.mulf %120, %119 : vector<8x32xf32>
    %cst_40 = arith.constant 0.707106769 : f32
    %122 = vector.broadcast %cst_40 : f32 to vector<8x32xf32>
    %123 = arith.mulf %119, %122 : vector<8x32xf32>
    %124 = math.absf %123 : vector<8x32xf32>
    %cst_41 = arith.constant 0.327591091 : f32
    %125 = vector.broadcast %cst_41 : f32 to vector<8x32xf32>
    %126 = arith.mulf %125, %124 : vector<8x32xf32>
    %cst_42 = arith.constant 1.000000e+00 : f32
    %127 = vector.broadcast %cst_42 : f32 to vector<8x32xf32>
    %128 = arith.addf %127, %126 : vector<8x32xf32>
    %129 = tpu.reciprocal %128 : vector<8x32xf32> -> vector<8x32xf32>
    %cst_43 = arith.constant 1.06140542 : f32
    %130 = vector.broadcast %cst_43 : f32 to vector<8x32xf32>
    %131 = arith.mulf %130, %129 : vector<8x32xf32>
    %cst_44 = arith.constant -1.45315206 : f32
    %132 = vector.broadcast %cst_44 : f32 to vector<8x32xf32>
    %133 = arith.addf %131, %132 : vector<8x32xf32>
    %134 = arith.mulf %133, %129 : vector<8x32xf32>
    %cst_45 = arith.constant 1.42141378 : f32
    %135 = vector.broadcast %cst_45 : f32 to vector<8x32xf32>
    %136 = arith.addf %134, %135 : vector<8x32xf32>
    %137 = arith.mulf %136, %129 : vector<8x32xf32>
    %cst_46 = arith.constant -0.284496725 : f32
    %138 = vector.broadcast %cst_46 : f32 to vector<8x32xf32>
    %139 = arith.addf %137, %138 : vector<8x32xf32>
    %140 = arith.mulf %139, %129 : vector<8x32xf32>
    %cst_47 = arith.constant 0.254829586 : f32
    %141 = vector.broadcast %cst_47 : f32 to vector<8x32xf32>
    %142 = arith.addf %140, %141 : vector<8x32xf32>
    %143 = arith.mulf %142, %129 : vector<8x32xf32>
    %cst_48 = arith.constant 0.000000e+00 : f32
    %144 = vector.broadcast %cst_48 : f32 to vector<8x32xf32>
    %145 = arith.subf %144, %124 : vector<8x32xf32>
    %146 = arith.mulf %145, %124 : vector<8x32xf32>
    %147 = math.exp %146 : vector<8x32xf32>
    %148 = arith.mulf %143, %147 : vector<8x32xf32>
    %cst_49 = arith.constant 1.000000e+00 : f32
    %149 = vector.broadcast %cst_49 : f32 to vector<8x32xf32>
    %150 = arith.subf %149, %148 : vector<8x32xf32>
    %cst_50 = arith.constant 0.000000e+00 : f32
    %151 = vector.broadcast %cst_50 : f32 to vector<8x32xf32>
    %152 = arith.cmpf oge, %123, %151 : vector<8x32xf32>
    %cst_51 = arith.constant 0.000000e+00 : f32
    %153 = vector.broadcast %cst_51 : f32 to vector<8x32xf32>
    %154 = arith.subf %153, %150 : vector<8x32xf32>
    %155 = arith.select %152, %150, %154 : vector<8x32xi1>, vector<8x32xf32>
    %cst_52 = arith.constant 1.000000e+00 : f32
    %156 = vector.broadcast %cst_52 : f32 to vector<8x32xf32>
    %157 = arith.addf %156, %155 : vector<8x32xf32>
    %158 = arith.mulf %121, %157 : vector<8x32xf32>
    %159 = arith.truncf %158 : vector<8x32xf32> to vector<8x32xbf16>
    %c0_53 = arith.constant 0 : index
    %c0_54 = arith.constant 0 : index
    %160 = vector.load %arg14[%c0_53, %c0_54] : memref<32x32xbf16, #tpu.memory_space<vmem>>, vector<32x32xbf16>
    %cst_55 = arith.constant dense<0.000000e+00> : vector<8x32xf32>
    %161 = tpu.matmul %159, %160, %cst_55 {dimension_numbers = #tpu.dot_dimension_numbers<[1], [0], [0], [1], [0, 0, 1, 1], [], []>} : vector<8x32xbf16>, vector<32x32xbf16>, vector<8x32xf32> -> vector<8x32xf32>
    %c0_56 = arith.constant 0 : index
    %c0_57 = arith.constant 0 : index
    %162 = vector.load %arg15[%c0_56, %c0_57] : memref<1x32xf32, #tpu.memory_space<vmem>>, vector<1x32xf32>
    %163 = vector.broadcast %162 : vector<1x32xf32> to vector<8x32xf32>
    %164 = arith.addf %161, %163 : vector<8x32xf32>
    %165 = arith.addf %164, %91 : vector<8x32xf32>
    %c0_58 = arith.constant 0 : index
    %c0_59 = arith.constant 0 : index
    %c0_60 = arith.constant 0 : index
    %166 = vector.load %arg16[%c0_58, %c0_59, %c0_60] : memref<1x8x32xf32, #tpu.memory_space<vmem>>, vector<1x8x32xf32>
    %167 = vector.shape_cast %166 : vector<1x8x32xf32> to vector<8x32xf32>
    %168 = vector.shape_cast %165 : vector<8x32xf32> to vector<1x8x32xf32>
    tpu.vector_store %arg16[%c0_58, %c0_59, %c0_60], %168 {strides = array<i32>} : memref<1x8x32xf32, #tpu.memory_space<vmem>>, vector<1x8x32xf32>,
    return
  }
  func.func @transform_0(%arg0: i32, %arg1: i32) -> (i32, i32, i32) {
    %c0_i32 = arith.constant 0 : i32
    %c0_i32_0 = arith.constant 0 : i32
    %c0_i32_1 = arith.constant 0 : i32
    return %arg0, %c0_i32, %c0_i32_0 : i32, i32, i32
  }
  func.func @transform_1(%arg0: i32, %arg1: i32) -> (i32, i32, i32) {
    %c0_i32 = arith.constant 0 : i32
    %c0_i32_0 = arith.constant 0 : i32
    %c0_i32_1 = arith.constant 0 : i32
    return %arg0, %c0_i32, %c0_i32_0 : i32, i32, i32
  }
  func.func @transform_2(%arg0: i32, %arg1: i32) -> (i32, i32) {
    %c0_i32 = arith.constant 0 : i32
    %c0_i32_0 = arith.constant 0 : i32
    %c0_i32_1 = arith.constant 0 : i32
    return %c0_i32, %c0_i32_0 : i32, i32
  }
  func.func @transform_3(%arg0: i32, %arg1: i32) -> (i32, i32) {
    %c0_i32 = arith.constant 0 : i32
    %c0_i32_0 = arith.constant 0 : i32
    %c0_i32_1 = arith.constant 0 : i32
    return %c0_i32, %c0_i32_0 : i32, i32
  }
  func.func @transform_4(%arg0: i32, %arg1: i32) -> (i32, i32) {
    %c0_i32 = arith.constant 0 : i32
    %c0_i32_0 = arith.constant 0 : i32
    %c0_i32_1 = arith.constant 0 : i32
    return %c0_i32, %c0_i32_0 : i32, i32
  }
  func.func @transform_5(%arg0: i32, %arg1: i32) -> (i32, i32) {
    %c0_i32 = arith.constant 0 : i32
    %c0_i32_0 = arith.constant 0 : i32
    %c0_i32_1 = arith.constant 0 : i32
    return %c0_i32, %c0_i32_0 : i32, i32
  }
  func.func @transform_6(%arg0: i32, %arg1: i32) -> (i32, i32) {
    %c0_i32 = arith.constant 0 : i32
    %c0_i32_0 = arith.constant 0 : i32
    %c0_i32_1 = arith.constant 0 : i32
    return %c0_i32, %c0_i32_0 : i32, i32
  }
  func.func @transform_7(%arg0: i32, %arg1: i32) -> (i32, i32) {
    %c0_i32 = arith.constant 0 : i32
    %c0_i32_0 = arith.constant 0 : i32
    %c0_i32_1 = arith.constant 0 : i32
    return %c0_i32, %c0_i32_0 : i32, i32
  }
  func.func @transform_8(%arg0: i32, %arg1: i32) -> (i32, i32) {
    %c0_i32 = arith.constant 0 : i32
    %c0_i32_0 = arith.constant 0 : i32
    %c0_i32_1 = arith.constant 0 : i32
    return %c0_i32, %c0_i32_0 : i32, i32
  }
  func.func @transform_9(%arg0: i32, %arg1: i32) -> (i32, i32) {
    %c0_i32 = arith.constant 0 : i32
    %c0_i32_0 = arith.constant 0 : i32
    %c0_i32_1 = arith.constant 0 : i32
    return %c0_i32, %c0_i32_0 : i32, i32
  }
  func.func @transform_10(%arg0: i32, %arg1: i32) -> (i32, i32) {
    %c0_i32 = arith.constant 0 : i32
    %c0_i32_0 = arith.constant 0 : i32
    %c0_i32_1 = arith.constant 0 : i32
    return %c0_i32, %c0_i32_0 : i32, i32
  }
  func.func @transform_11(%arg0: i32, %arg1: i32) -> (i32, i32) {
    %c0_i32 = arith.constant 0 : i32
    %c0_i32_0 = arith.constant 0 : i32
    %c0_i32_1 = arith.constant 0 : i32
    return %c0_i32, %c0_i32_0 : i32, i32
  }
  func.func @transform_12(%arg0: i32, %arg1: i32) -> (i32, i32) {
    %c0_i32 = arith.constant 0 : i32
    %c0_i32_0 = arith.constant 0 : i32
    %c0_i32_1 = arith.constant 0 : i32
    return %c0_i32, %c0_i32_0 : i32, i32
  }
  func.func @transform_13(%arg0: i32, %arg1: i32) -> (i32, i32) {
    %c0_i32 = arith.constant 0 : i32
    %c0_i32_0 = arith.constant 0 : i32
    %c0_i32_1 = arith.constant 0 : i32
    return %c0_i32, %c0_i32_0 : i32, i32
  }
  func.func @transform_14(%arg0: i32, %arg1: i32) -> (i32, i32, i32) {
    %c0_i32 = arith.constant 0 : i32
    %c0_i32_0 = arith.constant 0 : i32
    return %arg0, %arg1, %c0_i32 : i32, i32, i32
  }
}

</mosaic_0001>

<llo_original>
// kernel: tpu_custom_call.1
$region0: #{tpu_custom_call.1}
  #allocation0 [shape = 'u32[]', space=smem, size = 0x4, offset = 0x4, fixed_abs, tag = 'smem constant byte address 0x4 - core index']
  #allocation1 [shape = 'u32[144,128]{1,0:T(1,128)}', space=vmem, size = 0x12000, scoped, tag = 'internal scratch']
  #allocation2 [shape = 'bf16[8,64]{1,0:T(8,128)(2,1)}', space=vmem, size = 0x800, scoped, tag = 'scratch operand']
  %s0 = inlined_call_operand.hbm [shape: f32[2,8,32], index: 0, kind: input, shape index: {}]
  %s1 = inlined_call_operand.hbm [shape: f32[2,1,8], index: 1, kind: input, shape index: {}]
  %s2 = inlined_call_operand.vmem [shape: f32[1,32], index: 2, kind: input, shape index: {}]
  %s3 = inlined_call_operand.vmem [shape: f32[1,32], index: 3, kind: input, shape index: {}]
  %s4 = inlined_call_operand.hbm [shape: bf16[32,32], index: 4, kind: input, shape index: {}]
  %s5 = inlined_call_operand.hbm [shape: f32[1,32], index: 5, kind: input, shape index: {}]
  %s6 = inlined_call_operand.hbm [shape: bf16[32,64], index: 6, kind: input, shape index: {}]
  %s7 = inlined_call_operand.hbm [shape: f32[1,64], index: 7, kind: input, shape index: {}]
  %s8 = inlined_call_operand.hbm [shape: f32[1,32], index: 8, kind: input, shape index: {}]
  %s9 = inlined_call_operand.hbm [shape: f32[1,32], index: 9, kind: input, shape index: {}]
  %s10 = inlined_call_operand.vmem [shape: bf16[32,32], index: 10, kind: input, shape index: {}]
  %s11 = inlined_call_operand.vmem [shape: f32[1,32], index: 11, kind: input, shape index: {}]
  %s12 = inlined_call_operand.hbm [shape: bf16[32,32], index: 12, kind: input, shape index: {}]
  %s13 = inlined_call_operand.vmem [shape: f32[1,32], index: 13, kind: input, shape index: {}]
  %s14 = inlined_call_operand.hbm [shape: f32[2,8,32], index: 14, kind: output, shape index: {}]
  %s15 = sld [smem:[#allocation0]]
  $region129: #{tpu_custom_call.1} parent=0
    _
  %s17 = ssub.s32 1, %s15
  %s18 = scalar_select 0, %s17, %s15
  $region1: #{tpu_custom_call.1} parent=0
    #allocation3 [shape = 'u8[8192]{0}', space=vmem, size = 0x2000, scoped, tag = 'input window, operand 0']
    #allocation4 [shape = 's32[2]{0}', space=sflag, size = 0x8, scoped, tag = 'scoped memory for tpu_custom_call.1']
    #allocation5 [shape = 's32[2]{0}', space=sflag, size = 0x8, scoped, tag = 'scoped memory for tpu_custom_call.1']
    #allocation6 [shape = 'u8[1024]{0}', space=vmem, size = 0x400, scoped, tag = 'input window, operand 1']
    #allocation7 [shape = 's32[2]{0}', space=sflag, size = 0x8, scoped, tag = 'scoped memory for tpu_custom_call.1']
    #allocation8 [shape = 'u8[8192]{0}', space=vmem, size = 0x2000, scoped, tag = 'input window, operand 4, single buffered']
    #allocation9 [shape = 'u8[512]{0}', space=vmem, size = 0x400, scoped, tag = 'input window, operand 5, single buffered']
    #allocation10 [shape = 's32[1]{0}', space=sflag, size = 0x4, scoped, tag = 'scoped memory for tpu_custom_call.1']
    #allocation11 [shape = 'u8[8192]{0}', space=vmem, size = 0x2000, scoped, tag = 'input window, operand 6, single buffered']
    #allocation12 [shape = 'u8[512]{0}', space=vmem, size = 0x400, scoped, tag = 'input window, operand 7, single buffered']
    #allocation13 [shape = 's32[1]{0}', space=sflag, size = 0x4, scoped, tag = 'scoped memory for tpu_custom_call.1']
    #allocation14 [shape = 'u8[512]{0}', space=vmem, size = 0x400, scoped, tag = 'input window, operand 8, single buffered']
    #allocation15 [shape = 'u8[512]{0}', space=vmem, size = 0x400, scoped, tag = 'input window, operand 9, single buffered']
    #allocation16 [shape = 's32[1]{0}', space=sflag, size = 0x4, scoped, tag = 'scoped memory for tpu_custom_call.1']
    #allocation17 [shape = 'u8[8192]{0}', space=vmem, size = 0x2000, scoped, tag = 'input window, operand 12, single buffered']
    #allocation18 [shape = 'u8[8192]{0}', space=vmem, size = 0x2000, scoped, tag = 'output window, operand 0']
    %19 = vsyncpa [#allocation4], 0
    %s20 = scalar_lea.sflag [#allocation4], 1
    %21 = vsyncpa %s20, 0
    %22 = vsyncpa [#allocation7], 0
    %s23 = scalar_lea.sflag [#allocation7], 1
    %24 = vsyncpa %s23, 0
    %25 = vsyncpa [#allocation10], 0
    %26 = vsyncpa [#allocation13], 0
    %27 = vsyncpa [#allocation16], 0
    %28 = vsyncpa [#allocation5], 0
    %s29 = scalar_lea.sflag [#allocation5], 1
    %30 = vsyncpa %s29, 0
    loop: start=0, step=1, limit=4
    $region2: #{tpu_custom_call.1} parent=1 // loop_pre_header
      _
    $region3: #{tpu_custom_call.1} parent=1 // loop_header
      %s32 = sphi 0, %s36
      %p33 = scmp.ge.s32.totalorder %s32, 4
      %s39 = sphi 0, %s51
      %s40 = sphi 0, %s47
      %s41 = sphi 0, %s39
      %s42 = sphi 0, %s40
      %s43 = sphi 0, %s41
      %s44 = sphi 0, %s42
      %s54 = sphi 0, %s56
      %s57 = sphi 0, %s54
      %s58 = sphi 0, %s57
      %s74 = sphi 0, %s58
      %s80 = sphi 0, %s82
      %s83 = sphi 0, %s80
      %s84 = sphi 0, %s83
      %s100 = sphi 0, %s84
      %s104 = sphi 0, %s104
      %s106 = sphi 0, %s104
      %s107 = sphi 0, %s106
      %s121 = sphi 0, %s107
      %s125 = sphi 0, %s125
      %s127 = sphi 0, %s125
      %s128 = sphi 0, %s127
      %s142 = sphi 0, %s128
      %s146 = sphi 0, %s146
      %s148 = sphi 0, %s146
      %s149 = sphi 0, %s148
      %s163 = sphi 0, %s149
      %s167 = sphi 0, %s167
      %s169 = sphi 0, %s167
      %s170 = sphi 0, %s169
      %s184 = sphi 0, %s170
      %s188 = sphi 0, %s188
      %s190 = sphi 0, %s188
      %s191 = sphi 0, %s190
      %s205 = sphi 0, %s191
      %s209 = sphi 0, %s209
      %s211 = sphi 0, %s209
      %s212 = sphi 0, %s211
      %s226 = sphi 0, %s212
      %s230 = sphi 0, %s230
      %s232 = sphi 0, %s230
      %s233 = sphi 0, %s232
      %s247 = sphi 0, %s233
      %s251 = sphi 0, %s251
      %s253 = sphi 0, %s251
      %s254 = sphi 0, %s253
      %s268 = sphi 0, %s254
      %s272 = sphi 0, %s272
      %s274 = sphi 0, %s272
      %s275 = sphi 0, %s274
      %s289 = sphi 0, %s275
      %s293 = sphi 0, %s293
      %s295 = sphi 0, %s293
      %s296 = sphi 0, %s295
      %s310 = sphi 0, %s296
      %s314 = sphi 0, %s314
      %s316 = sphi 0, %s314
      %s317 = sphi 0, %s316
      %s331 = sphi 0, %s317
      %s335 = sphi 0, %s335
      %s337 = sphi 0, %s335
      %s338 = sphi 0, %s337
      %s352 = sphi 0, %s338
      %s360 = sphi 0, %s362
      %s363 = sphi 0, %s360
      %s364 = sphi 0, %s363
      %s380 = sphi 0, %s364
    $region4: #{tpu_custom_call.1} parent=1 // loop_header_branch
      %35 = sbr.rel (%p33) target = $region8
    $region5: #{tpu_custom_call.1} parent=1 // loop_body
      %s37 = ssub.s32 %s32, 1
      %s38 = ssub.s32 %s32, 2
      %s45 = sadd.s32 1, %s40
      %p46 = scmp.ge.s32.totalorder %s45, 1
      %s47 = scalar_select %p46, 0, %s45
      %s48 = sadd.s32 1, %s39
      %s49 = scalar_select %p46, %s48, %s39
      %p50 = scmp.ge.s32.totalorder %s49, 2
      %s51 = scalar_select %p50, 0, %s49
      %s52 = ssub.s32 %s39, %s51
      %p53 = scmp.eq.s32.totalorder %s52, 0
      %s55 = sadd.s32 %s54, 1
      %s56 = scalar_select %p53, %s54, %s55
      %p59 = pneg %p53
      %p60 = scmp.eq.s32.totalorder %s32, 1
      %p61 = por %p59, %p60
      %p62 = scmp.ne.s32.totalorder %s54, %s57
      %p63 = scmp.eq.s32.totalorder %s32, 0
      %p64 = por %p62, %p63
      %p65 = scmp.ne.s32.totalorder %s54, %s57
      %p66 = scmp.eq.s32.totalorder %s37, 1
      %p67 = por %p65, %p66
      %p68 = scmp.ne.s32.totalorder %s57, %s58
      %p69 = scmp.eq.s32.totalorder %s37, 0
      %p70 = por %p68, %p69
      %p71 = scmp.ne.s32.totalorder %s57, %s58
      %p72 = scmp.eq.s32.totalorder %s38, 1
      %p73 = por %p71, %p72
      %p75 = scmp.ne.s32.totalorder %s58, %s74
      %p76 = scmp.eq.s32.totalorder %s38, 0
      %p77 = por %p75, %p76
      %s78 = ssub.s32 %s39, %s51
      %p79 = scmp.eq.s32.totalorder %s78, 0
      %s81 = sadd.s32 %s80, 1
      %s82 = scalar_select %p79, %s80, %s81
      %p85 = pneg %p79
      %p86 = scmp.eq.s32.totalorder %s32, 1
      %p87 = por %p85, %p86
      %p88 = scmp.ne.s32.totalorder %s80, %s83
      %p89 = scmp.eq.s32.totalorder %s32, 0
      %p90 = por %p88, %p89
      %p91 = scmp.ne.s32.totalorder %s80, %s83
      %p92 = scmp.eq.s32.totalorder %s37, 1
      %p93 = por %p91, %p92
      %p94 = scmp.ne.s32.totalorder %s83, %s84
      %p95 = scmp.eq.s32.totalorder %s37, 0
      %p96 = por %p94, %p95
      %p97 = scmp.ne.s32.totalorder %s83, %s84
      %p98 = scmp.eq.s32.totalorder %s38, 1
      %p99 = por %p97, %p98
      %p101 = scmp.ne.s32.totalorder %s84, %s100
      %p102 = scmp.eq.s32.totalorder %s38, 0
      %p103 = por %p101, %p102
      %s105 = sadd.s32 %s104, 1
      %p108 = scmp.eq.s32.totalorder %s32, 1
      %p109 = scmp.ne.s32.totalorder %s104, %s106
      %p110 = scmp.eq.s32.totalorder %s32, 0
      %p111 = por %p109, %p110
      %p112 = scmp.ne.s32.totalorder %s104, %s106
      %p113 = scmp.eq.s32.totalorder %s37, 1
      %p114 = por %p112, %p113
      %p115 = scmp.ne.s32.totalorder %s106, %s107
      %p116 = scmp.eq.s32.totalorder %s37, 0
      %p117 = por %p115, %p116
      %p118 = scmp.ne.s32.totalorder %s106, %s107
      %p119 = scmp.eq.s32.totalorder %s38, 1
      %p120 = por %p118, %p119
      %p122 = scmp.ne.s32.totalorder %s107, %s121
      %p123 = scmp.eq.s32.totalorder %s38, 0
      %p124 = por %p122, %p123
      %s126 = sadd.s32 %s125, 1
      %p129 = scmp.eq.s32.totalorder %s32, 1
      %p130 = scmp.ne.s32.totalorder %s125, %s127
      %p131 = scmp.eq.s32.totalorder %s32, 0
      %p132 = por %p130, %p131
      %p133 = scmp.ne.s32.totalorder %s125, %s127
      %p134 = scmp.eq.s32.totalorder %s37, 1
      %p135 = por %p133, %p134
      %p136 = scmp.ne.s32.totalorder %s127, %s128
      %p137 = scmp.eq.s32.totalorder %s37, 0
      %p138 = por %p136, %p137
      %p139 = scmp.ne.s32.totalorder %s127, %s128
      %p140 = scmp.eq.s32.totalorder %s38, 1
      %p141 = por %p139, %p140
      %p143 = scmp.ne.s32.totalorder %s128, %s142
      %p144 = scmp.eq.s32.totalorder %s38, 0
      %p145 = por %p143, %p144
      %s147 = sadd.s32 %s146, 1
      %p150 = scmp.eq.s32.totalorder %s32, 1
      %p151 = scmp.ne.s32.totalorder %s146, %s148
      %p152 = scmp.eq.s32.totalorder %s32, 0
      %p153 = por %p151, %p152
      %p154 = scmp.ne.s32.totalorder %s146, %s148
      %p155 = scmp.eq.s32.totalorder %s37, 1
      %p156 = por %p154, %p155
      %p157 = scmp.ne.s32.totalorder %s148, %s149
      %p158 = scmp.eq.s32.totalorder %s37, 0
      %p159 = por %p157, %p158
      %p160 = scmp.ne.s32.totalorder %s148, %s149
      %p161 = scmp.eq.s32.totalorder %s38, 1
      %p162 = por %p160, %p161
      %p164 = scmp.ne.s32.totalorder %s149, %s163
      %p165 = scmp.eq.s32.totalorder %s38, 0
      %p166 = por %p164, %p165
      %s168 = sadd.s32 %s167, 1
      %p171 = scmp.eq.s32.totalorder %s32, 1
      %p172 = scmp.ne.s32.totalorder %s167, %s169
      %p173 = scmp.eq.s32.totalorder %s32, 0
      %p174 = por %p172, %p173
      %p175 = scmp.ne.s32.totalorder %s167, %s169
      %p176 = scmp.eq.s32.totalorder %s37, 1
      %p177 = por %p175, %p176
      %p178 = scmp.ne.s32.totalorder %s169, %s170
      %p179 = scmp.eq.s32.totalorder %s37, 0
      %p180 = por %p178, %p179
      %p181 = scmp.ne.s32.totalorder %s169, %s170
      %p182 = scmp.eq.s32.totalorder %s38, 1
      %p183 = por %p181, %p182
      %p185 = scmp.ne.s32.totalorder %s170, %s184
      %p186 = scmp.eq.s32.totalorder %s38, 0
      %p187 = por %p185, %p186
      %s189 = sadd.s32 %s188, 1
      %p192 = scmp.eq.s32.totalorder %s32, 1
      %p193 = scmp.ne.s32.totalorder %s188, %s190
      %p194 = scmp.eq.s32.totalorder %s32, 0
      %p195 = por %p193, %p194
      %p196 = scmp.ne.s32.totalorder %s188, %s190
      %p197 = scmp.eq.s32.totalorder %s37, 1
      %p198 = por %p196, %p197
      %p199 = scmp.ne.s32.totalorder %s190, %s191
      %p200 = scmp.eq.s32.totalorder %s37, 0
      %p201 = por %p199, %p200
      %p202 = scmp.ne.s32.totalorder %s190, %s191
      %p203 = scmp.eq.s32.totalorder %s38, 1
      %p204 = por %p202, %p203
      %p206 = scmp.ne.s32.totalorder %s191, %s205
      %p207 = scmp.eq.s32.totalorder %s38, 0
      %p208 = por %p206, %p207
      %s210 = sadd.s32 %s209, 1
      %p213 = scmp.eq.s32.totalorder %s32, 1
      %p214 = scmp.ne.s32.totalorder %s209, %s211
      %p215 = scmp.eq.s32.totalorder %s32, 0
      %p216 = por %p214, %p215
      %p217 = scmp.ne.s32.totalorder %s209, %s211
      %p218 = scmp.eq.s32.totalorder %s37, 1
      %p219 = por %p217, %p218
      %p220 = scmp.ne.s32.totalorder %s211, %s212
      %p221 = scmp.eq.s32.totalorder %s37, 0
      %p222 = por %p220, %p221
      %p223 = scmp.ne.s32.totalorder %s211, %s212
      %p224 = scmp.eq.s32.totalorder %s38, 1
      %p225 = por %p223, %p224
      %p227 = scmp.ne.s32.totalorder %s212, %s226
      %p228 = scmp.eq.s32.totalorder %s38, 0
      %p229 = por %p227, %p228
      %s231 = sadd.s32 %s230, 1
      %p234 = scmp.eq.s32.totalorder %s32, 1
      %p235 = scmp.ne.s32.totalorder %s230, %s232
      %p236 = scmp.eq.s32.totalorder %s32, 0
      %p237 = por %p235, %p236
      %p238 = scmp.ne.s32.totalorder %s230, %s232
      %p239 = scmp.eq.s32.totalorder %s37, 1
      %p240 = por %p238, %p239
      %p241 = scmp.ne.s32.totalorder %s232, %s233
      %p242 = scmp.eq.s32.totalorder %s37, 0
      %p243 = por %p241, %p242
      %p244 = scmp.ne.s32.totalorder %s232, %s233
      %p245 = scmp.eq.s32.totalorder %s38, 1
      %p246 = por %p244, %p245
      %p248 = scmp.ne.s32.totalorder %s233, %s247
      %p249 = scmp.eq.s32.totalorder %s38, 0
      %p250 = por %p248, %p249
      %s252 = sadd.s32 %s251, 1
      %p255 = scmp.eq.s32.totalorder %s32, 1
      %p256 = scmp.ne.s32.totalorder %s251, %s253
      %p257 = scmp.eq.s32.totalorder %s32, 0
      %p258 = por %p256, %p257
      %p259 = scmp.ne.s32.totalorder %s251, %s253
      %p260 = scmp.eq.s32.totalorder %s37, 1
      %p261 = por %p259, %p260
      %p262 = scmp.ne.s32.totalorder %s253, %s254
      %p263 = scmp.eq.s32.totalorder %s37, 0
      %p264 = por %p262, %p263
      %p265 = scmp.ne.s32.totalorder %s253, %s254
      %p266 = scmp.eq.s32.totalorder %s38, 1
      %p267 = por %p265, %p266
      %p269 = scmp.ne.s32.totalorder %s254, %s268
      %p270 = scmp.eq.s32.totalorder %s38, 0
      %p271 = por %p269, %p270
      %s273 = sadd.s32 %s272, 1
      %p276 = scmp.eq.s32.totalorder %s32, 1
      %p277 = scmp.ne.s32.totalorder %s272, %s274
      %p278 = scmp.eq.s32.totalorder %s32, 0
      %p279 = por %p277, %p278
      %p280 = scmp.ne.s32.totalorder %s272, %s274
      %p281 = scmp.eq.s32.totalorder %s37, 1
      %p282 = por %p280, %p281
      %p283 = scmp.ne.s32.totalorder %s274, %s275
      %p284 = scmp.eq.s32.totalorder %s37, 0
      %p285 = por %p283, %p284
      %p286 = scmp.ne.s32.totalorder %s274, %s275
      %p287 = scmp.eq.s32.totalorder %s38, 1
      %p288 = por %p286, %p287
      %p290 = scmp.ne.s32.totalorder %s275, %s289
      %p291 = scmp.eq.s32.totalorder %s38, 0
      %p292 = por %p290, %p291
      %s294 = sadd.s32 %s293, 1
      %p297 = scmp.eq.s32.totalorder %s32, 1
      %p298 = scmp.ne.s32.totalorder %s293, %s295
      %p299 = scmp.eq.s32.totalorder %s32, 0
      %p300 = por %p298, %p299
      %p301 = scmp.ne.s32.totalorder %s293, %s295
      %p302 = scmp.eq.s32.totalorder %s37, 1
      %p303 = por %p301, %p302
      %p304 = scmp.ne.s32.totalorder %s295, %s296
      %p305 = scmp.eq.s32.totalorder %s37, 0
      %p306 = por %p304, %p305
      %p307 = scmp.ne.s32.totalorder %s295, %s296
      %p308 = scmp.eq.s32.totalorder %s38, 1
      %p309 = por %p307, %p308
      %p311 = scmp.ne.s32.totalorder %s296, %s310
      %p312 = scmp.eq.s32.totalorder %s38, 0
      %p313 = por %p311, %p312
      %s315 = sadd.s32 %s314, 1
      %p318 = scmp.eq.s32.totalorder %s32, 1
      %p319 = scmp.ne.s32.totalorder %s314, %s316
      %p320 = scmp.eq.s32.totalorder %s32, 0
      %p321 = por %p319, %p320
      %p322 = scmp.ne.s32.totalorder %s314, %s316
      %p323 = scmp.eq.s32.totalorder %s37, 1
      %p324 = por %p322, %p323
      %p325 = scmp.ne.s32.totalorder %s316, %s317
      %p326 = scmp.eq.s32.totalorder %s37, 0
      %p327 = por %p325, %p326
      %p328 = scmp.ne.s32.totalorder %s316, %s317
      %p329 = scmp.eq.s32.totalorder %s38, 1
      %p330 = por %p328, %p329
      %p332 = scmp.ne.s32.totalorder %s317, %s331
      %p333 = scmp.eq.s32.totalorder %s38, 0
      %p334 = por %p332, %p333
      %s336 = sadd.s32 %s335, 1
      %p339 = scmp.eq.s32.totalorder %s32, 1
      %p340 = scmp.ne.s32.totalorder %s335, %s337
      %p341 = scmp.eq.s32.totalorder %s32, 0
      %p342 = por %p340, %p341
      %p343 = scmp.ne.s32.totalorder %s335, %s337
      %p344 = scmp.eq.s32.totalorder %s37, 1
      %p345 = por %p343, %p344
      %p346 = scmp.ne.s32.totalorder %s337, %s338
      %p347 = scmp.eq.s32.totalorder %s37, 0
      %p348 = por %p346, %p347
      %p349 = scmp.ne.s32.totalorder %s337, %s338
      %p350 = scmp.eq.s32.totalorder %s38, 1
      %p351 = por %p349, %p350
      %p353 = scmp.ne.s32.totalorder %s338, %s352
      %p354 = scmp.eq.s32.totalorder %s38, 0
      %p355 = por %p353, %p354
      %s356 = ssub.s32 %s39, %s51
      %s357 = ssub.s32 %s40, %s47
      %s358 = sor.u32 %s356, %s357
      %p359 = scmp.eq.s32.totalorder %s358, 0
      %s361 = sadd.s32 %s360, 1
      %s362 = scalar_select %p359, %s360, %s361
      %p365 = pneg %p359
      %p366 = scmp.eq.s32.totalorder %s32, 1
      %p367 = por %p365, %p366
      %p368 = scmp.ne.s32.totalorder %s360, %s363
      %p369 = scmp.eq.s32.totalorder %s32, 0
      %p370 = por %p368, %p369
      %p371 = scmp.ne.s32.totalorder %s360, %s363
      %p372 = scmp.eq.s32.totalorder %s37, 1
      %p373 = por %p371, %p372
      %p374 = scmp.ne.s32.totalorder %s363, %s364
      %p375 = scmp.eq.s32.totalorder %s37, 0
      %p376 = por %p374, %p375
      %p377 = scmp.ne.s32.totalorder %s363, %s364
      %p378 = scmp.eq.s32.totalorder %s38, 1
      %p379 = por %p377, %p378
      %p381 = scmp.ne.s32.totalorder %s364, %s380
      %p382 = scmp.eq.s32.totalorder %s38, 0
      %p383 = por %p381, %p382
      %p384 = scmp.le.s32.totalorder 1, %s32
      %p385 = scmp.lt.s32.totalorder %s32, 3
      %p386 = pnand %p384, %p385
      %p387 = pneg %p386
      // Predicated region
      $region9: #{tpu_custom_call.1} parent=5 // pred_check
        _
      $region10: #{tpu_custom_call.1} parent=5 // pred_check_branch
        %389 = sbr.rel (%p386) target = $region12
      $region11: #{tpu_custom_call.1} parent=5 // pred_region
        %s390 = ssub.s32 %s32, 1
        // Predicated region
        $region13: #{tpu_custom_call.1} parent=11 // pred_check
          %p391 = pneg %p117
        $region14: #{tpu_custom_call.1} parent=11 // pred_check_branch
          %393 = sbr.rel (%p391) target = $region16
        $region15: #{tpu_custom_call.1} parent=11 // pred_region
          _
        $region16: #{tpu_custom_call.1} parent=11 // pred_fallthru
          _
        // Predicated region
        $region17: #{tpu_custom_call.1} parent=11 // pred_check
          %p394 = pneg %p138
        $region18: #{tpu_custom_call.1} parent=11 // pred_check_branch
          %396 = sbr.rel (%p394) target = $region20
        $region19: #{tpu_custom_call.1} parent=11 // pred_region
          _
        $region20: #{tpu_custom_call.1} parent=11 // pred_fallthru
          _
        // Predicated region
        $region21: #{tpu_custom_call.1} parent=11 // pred_check
          %p397 = pneg %p159
        $region22: #{tpu_custom_call.1} parent=11 // pred_check_branch
          %399 = sbr.rel (%p397) target = $region24
        $region23: #{tpu_custom_call.1} parent=11 // pred_region
          %s401 = ssub.s32 256, 256
          %402 = vsyncadd [#allocation7], %s401
          %s403 = sshll.u32 [#allocation8], 4
          %s404 = int_to_ptr.vmem [resolvable:$true] %s403
          %409 = dma.hbm_to_vmem [thread:$0]  %s4, 256, %s404, [#allocation7], 64, 64, 4
        $region24: #{tpu_custom_call.1} parent=11 // pred_fallthru
          _
        // Predicated region
        $region25: #{tpu_custom_call.1} parent=11 // pred_check
          %p410 = pneg %p180
        $region26: #{tpu_custom_call.1} parent=11 // pred_check_branch
          %412 = sbr.rel (%p410) target = $region28
        $region27: #{tpu_custom_call.1} parent=11 // pred_region
          %s414 = ssub.s32 16, 16
          %415 = vsyncadd [#allocation10], %s414
          %s417 = sshll.u32 [#allocation9], 4
          %s418 = int_to_ptr.vmem [resolvable:$true] %s417
          %420 = dma.hbm_to_vmem [thread:$0]  %s5, 16, %s418, [#allocation10]
        $region28: #{tpu_custom_call.1} parent=11 // pred_fallthru
          _
        // Predicated region
        $region29: #{tpu_custom_call.1} parent=11 // pred_check
          %p421 = pneg %p201
        $region30: #{tpu_custom_call.1} parent=11 // pred_check_branch
          %423 = sbr.rel (%p421) target = $region32
        $region31: #{tpu_custom_call.1} parent=11 // pred_region
          %s425 = ssub.s32 256, 256
          %426 = vsyncadd [#allocation10], %s425
          %s427 = sshll.u32 [#allocation11], 4
          %s428 = int_to_ptr.vmem [resolvable:$true] %s427
          %433 = dma.hbm_to_vmem [thread:$0]  %s6, 256, %s428, [#allocation10], 64, 64, 4
        $region32: #{tpu_custom_call.1} parent=11 // pred_fallthru
          _
        // Predicated region
        $region33: #{tpu_custom_call.1} parent=11 // pred_check
          %p434 = pneg %p222
        $region34: #{tpu_custom_call.1} parent=11 // pred_check_branch
          %436 = sbr.rel (%p434) target = $region36
        $region35: #{tpu_custom_call.1} parent=11 // pred_region
          %s438 = ssub.s32 16, 16
          %439 = vsyncadd [#allocation13], %s438
          %s441 = sshll.u32 [#allocation12], 4
          %s442 = int_to_ptr.vmem [resolvable:$true] %s441
          %444 = dma.hbm_to_vmem [thread:$0]  %s7, 16, %s442, [#allocation13]
        $region36: #{tpu_custom_call.1} parent=11 // pred_fallthru
          _
        // Predicated region
        $region37: #{tpu_custom_call.1} parent=11 // pred_check
          %p445 = pneg %p243
        $region38: #{tpu_custom_call.1} parent=11 // pred_check_branch
          %447 = sbr.rel (%p445) target = $region40
        $region39: #{tpu_custom_call.1} parent=11 // pred_region
          %s449 = ssub.s32 16, 16
          %450 = vsyncadd [#allocation13], %s449
          %s452 = sshll.u32 [#allocation14], 4
          %s453 = int_to_ptr.vmem [resolvable:$true] %s452
          %455 = dma.hbm_to_vmem [thread:$0]  %s8, 16, %s453, [#allocation13]
        $region40: #{tpu_custom_call.1} parent=11 // pred_fallthru
          _
        // Predicated region
        $region41: #{tpu_custom_call.1} parent=11 // pred_check
          %p456 = pneg %p264
        $region42: #{tpu_custom_call.1} parent=11 // pred_check_branch
          %458 = sbr.rel (%p456) target = $region44
        $region43: #{tpu_custom_call.1} parent=11 // pred_region
          %s460 = ssub.s32 16, 16
          %461 = vsyncadd [#allocation16], %s460
          %s463 = sshll.u32 [#allocation15], 4
          %s464 = int_to_ptr.vmem [resolvable:$true] %s463
          %466 = dma.hbm_to_vmem [thread:$0]  %s9, 16, %s464, [#allocation16]
        $region44: #{tpu_custom_call.1} parent=11 // pred_fallthru
          _
        // Predicated region
        $region45: #{tpu_custom_call.1} parent=11 // pred_check
          %p467 = pneg %p285
        $region46: #{tpu_custom_call.1} parent=11 // pred_check_branch
          %469 = sbr.rel (%p467) target = $region48
        $region47: #{tpu_custom_call.1} parent=11 // pred_region
          _
        $region48: #{tpu_custom_call.1} parent=11 // pred_fallthru
          _
        // Predicated region
        $region49: #{tpu_custom_call.1} parent=11 // pred_check
          %p470 = pneg %p306
        $region50: #{tpu_custom_call.1} parent=11 // pred_check_branch
          %472 = sbr.rel (%p470) target = $region52
        $region51: #{tpu_custom_call.1} parent=11 // pred_region
          _
        $region52: #{tpu_custom_call.1} parent=11 // pred_fallthru
          _
        // Predicated region
        $region53: #{tpu_custom_call.1} parent=11 // pred_check
          %p473 = pneg %p327
        $region54: #{tpu_custom_call.1} parent=11 // pred_check_branch
          %475 = sbr.rel (%p473) target = $region56
        $region55: #{tpu_custom_call.1} parent=11 // pred_region
          %s477 = ssub.s32 256, 256
          %478 = vsyncadd [#allocation16], %s477
          %s479 = sshll.u32 [#allocation17], 4
          %s480 = int_to_ptr.vmem [resolvable:$true] %s479
          %485 = dma.hbm_to_vmem [thread:$0]  %s12, 256, %s480, [#allocation16], 64, 64, 4
        $region56: #{tpu_custom_call.1} parent=11 // pred_fallthru
          _
        // Predicated region
        $region57: #{tpu_custom_call.1} parent=11 // pred_check
          %p486 = pneg %p348
        $region58: #{tpu_custom_call.1} parent=11 // pred_check_branch
          %488 = sbr.rel (%p486) target = $region60
        $region59: #{tpu_custom_call.1} parent=11 // pred_region
          _
        $region60: #{tpu_custom_call.1} parent=11 // pred_fallthru
          _
      $region12: #{tpu_custom_call.1} parent=5 // pred_fallthru
        _
      %p489 = scmp.lt.s32.totalorder %s32, 2
      // Predicated region
      $region61: #{tpu_custom_call.1} parent=5 // pred_check
        %p490 = pneg %p489
      $region62: #{tpu_custom_call.1} parent=5 // pred_check_branch
        %492 = sbr.rel (%p490) target = $region64
      $region63: #{tpu_custom_call.1} parent=5 // pred_region
        // Predicated region
        $region65: #{tpu_custom_call.1} parent=63 // pred_check
          %p493 = pneg %p64
        $region66: #{tpu_custom_call.1} parent=63 // pred_check_branch
          %495 = sbr.rel (%p493) target = $region68
        $region67: #{tpu_custom_call.1} parent=63 // pred_region
          %s496 = sand.u32 %s54, 1
          %s497 = scalar_lea.sflag [#allocation4], %s496
          %s498 = sand.u32 %s54, 1
          %s499 = smul.addr %s498, 8
          %s500 = scalar_lea.vmem [#allocation3], %s499
          %s502 = ssub.s32 128, 128
          %503 = vsyncadd %s497, %s502
          %s504 = smul.addr %s39, 128
          %s505 = scalar_lea.hbm %s0, %s504
          %s507 = sshll.u32 %s500, 4
          %s508 = int_to_ptr.vmem [resolvable:$true] %s507
          %510 = dma.hbm_to_vmem [thread:$0]  %s505, 128, %s508, %s497
        $region68: #{tpu_custom_call.1} parent=63 // pred_fallthru
          _
        // Predicated region
        $region69: #{tpu_custom_call.1} parent=63 // pred_check
          %p511 = pneg %p90
        $region70: #{tpu_custom_call.1} parent=63 // pred_check_branch
          %513 = sbr.rel (%p511) target = $region72
        $region71: #{tpu_custom_call.1} parent=63 // pred_region
          %s514 = sand.u32 %s32, 1
          %s515 = scalar_lea.sflag [#allocation7], %s514
          %s516 = sand.u32 %s80, 1
          %s517 = scalar_lea.vmem [#allocation6], %s516
          %s519 = ssub.s32 16, 16
          %520 = vsyncadd %s515, %s519
          %s521 = smul.addr %s39, 16
          %s522 = scalar_lea.hbm %s1, %s521
          %s524 = sshll.u32 %s517, 4
          %s525 = int_to_ptr.vmem [resolvable:$true] %s524
          %527 = dma.hbm_to_vmem [thread:$0]  %s522, 16, %s525, %s515
        $region72: #{tpu_custom_call.1} parent=63 // pred_fallthru
          _
      $region64: #{tpu_custom_call.1} parent=5 // pred_fallthru
        _
      %p528 = scmp.le.s32.totalorder 1, %s32
      %p529 = scmp.lt.s32.totalorder %s32, 3
      %p530 = pnand %p528, %p529
      %p531 = pneg %p530
      // Predicated region
      $region73: #{tpu_custom_call.1} parent=5 // pred_check
        _
      $region74: #{tpu_custom_call.1} parent=5 // pred_check_branch
        %533 = sbr.rel (%p530) target = $region76
      $region75: #{tpu_custom_call.1} parent=5 // pred_region
        %s534 = ssub.s32 %s32, 1
        %s535 = sand.u32 %s57, 1
        %s536 = scalar_lea.sflag [#allocation4], %s535
        %s537 = sand.u32 %s57, 1
        %s538 = smul.addr %s537, 8
        %s539 = scalar_lea.vmem [#allocation3], %s538
        // Predicated region
        $region77: #{tpu_custom_call.1} parent=75 // pred_check
          %p540 = pneg %p70
        $region78: #{tpu_custom_call.1} parent=75 // pred_check_branch
          %542 = sbr.rel (%p540) target = $region80
        $region79: #{tpu_custom_call.1} parent=75 // pred_region
          %543 = dma.done %s536, 128
        $region80: #{tpu_custom_call.1} parent=75 // pred_fallthru
          _
        %s544 = sand.u32 %s37, 1
        %s545 = scalar_lea.sflag [#allocation7], %s544
        %s546 = sand.u32 %s83, 1
        %s547 = scalar_lea.vmem [#allocation6], %s546
        // Predicated region
        $region81: #{tpu_custom_call.1} parent=75 // pred_check
          %p548 = pneg %p96
        $region82: #{tpu_custom_call.1} parent=75 // pred_check_branch
          %550 = sbr.rel (%p548) target = $region84
        $region83: #{tpu_custom_call.1} parent=75 // pred_region
          %551 = dma.done %s545, 16
        $region84: #{tpu_custom_call.1} parent=75 // pred_fallthru
          _
        // Predicated region
        $region85: #{tpu_custom_call.1} parent=75 // pred_check
          %p552 = pneg %p159
        $region86: #{tpu_custom_call.1} parent=75 // pred_check_branch
          %554 = sbr.rel (%p552) target = $region88
        $region87: #{tpu_custom_call.1} parent=75 // pred_region
          %555 = dma.done [#allocation7], 256
        $region88: #{tpu_custom_call.1} parent=75 // pred_fallthru
          _
        // Predicated region
        $region89: #{tpu_custom_call.1} parent=75 // pred_check
          %p556 = pneg %p180
        $region90: #{tpu_custom_call.1} parent=75 // pred_check_branch
          %558 = sbr.rel (%p556) target = $region92
        $region91: #{tpu_custom_call.1} parent=75 // pred_region
          %559 = dma.done [#allocation10], 16
        $region92: #{tpu_custom_call.1} parent=75 // pred_fallthru
          _
        // Predicated region
        $region93: #{tpu_custom_call.1} parent=75 // pred_check
          %p560 = pneg %p201
        $region94: #{tpu_custom_call.1} parent=75 // pred_check_branch
          %562 = sbr.rel (%p560) target = $region96
        $region95: #{tpu_custom_call.1} parent=75 // pred_region
          %563 = dma.done [#allocation10], 256
        $region96: #{tpu_custom_call.1} parent=75 // pred_fallthru
          _
        // Predicated region
        $region97: #{tpu_custom_call.1} parent=75 // pred_check
          %p564 = pneg %p222
        $region98: #{tpu_custom_call.1} parent=75 // pred_check_branch
          %566 = sbr.rel (%p564) target = $region100
        $region99: #{tpu_custom_call.1} parent=75 // pred_region
          %567 = dma.done [#allocation13], 16
        $region100: #{tpu_custom_call.1} parent=75 // pred_fallthru
          _
        // Predicated region
        $region101: #{tpu_custom_call.1} parent=75 // pred_check
          %p568 = pneg %p243
        $region102: #{tpu_custom_call.1} parent=75 // pred_check_branch
          %570 = sbr.rel (%p568) target = $region104
        $region103: #{tpu_custom_call.1} parent=75 // pred_region
          %571 = dma.done [#allocation13], 16
        $region104: #{tpu_custom_call.1} parent=75 // pred_fallthru
          _
        // Predicated region
        $region105: #{tpu_custom_call.1} parent=75 // pred_check
          %p572 = pneg %p264
        $region106: #{tpu_custom_call.1} parent=75 // pred_check_branch
          %574 = sbr.rel (%p572) target = $region108
        $region107: #{tpu_custom_call.1} parent=75 // pred_region
          %575 = dma.done [#allocation16], 16
        $region108: #{tpu_custom_call.1} parent=75 // pred_fallthru
          _
        // Predicated region
        $region109: #{tpu_custom_call.1} parent=75 // pred_check
          %p576 = pneg %p327
        $region110: #{tpu_custom_call.1} parent=75 // pred_check_branch
          %578 = sbr.rel (%p576) target = $region112
        $region111: #{tpu_custom_call.1} parent=75 // pred_region
          %579 = dma.done [#allocation16], 256
        $region112: #{tpu_custom_call.1} parent=75 // pred_fallthru
          _
        %s580 = sand.u32 %s57, 1
        %s581 = scalar_lea.sflag [#allocation4], %s580
        %s582 = sand.u32 %s57, 1
        %s583 = smul.addr %s582, 8
        %s584 = scalar_lea.vmem [#allocation3], %s583
        %p585 = pneg %p70
        %p586 = pneg %p67
        %s587 = sand.u32 %s37, 1
        %s588 = scalar_lea.sflag [#allocation7], %s587
        %s589 = sand.u32 %s83, 1
        %s590 = scalar_lea.vmem [#allocation6], %s589
        %p591 = pneg %p96
        %p592 = pneg %p93
        %p593 = pneg %p117
        %p594 = pneg %p114
        %p595 = pneg %p138
        %p596 = pneg %p135
        %p597 = pneg %p159
        %p598 = pneg %p156
        %p599 = pneg %p180
        %p600 = pneg %p177
        %p601 = pneg %p201
        %p602 = pneg %p198
        %p603 = pneg %p222
        %p604 = pneg %p219
        %p605 = pneg %p243
        %p606 = pneg %p240
        %p607 = pneg %p264
        %p608 = pneg %p261
        %p609 = pneg %p285
        %p610 = pneg %p282
        %p611 = pneg %p306
        %p612 = pneg %p303
        %p613 = pneg %p327
        %p614 = pneg %p324
        %p615 = pneg %p348
        %p616 = pneg %p345
        %p617 = pneg %p376
        %p618 = pneg %p373
        %s619 = sand.u32 %s363, 1
        %s620 = scalar_lea.sflag [#allocation5], %s619
        %s621 = sand.u32 %s363, 1
        %s622 = smul.addr %s621, 8
        %s623 = scalar_lea.vmem [#allocation18], %s622
        %v625 = vld [vmem:[%s2] sm:$0x1]
        %v626 = vld [vmem:[%s3] sm:$0x1]
        %p627 = scmp.eq.s32.totalorder %s42, 0
        // Predicated region
        $region113: #{tpu_custom_call.1} parent=75 // pred_check
          %p628 = pneg %p627
        $region114: #{tpu_custom_call.1} parent=75 // pred_check_branch
          %630 = sbr.rel (%p628) target = $region116
        $region115: #{tpu_custom_call.1} parent=75 // pred_region
          %v631 = vld [vmem:[%s539] sm:$0xff]
          %vm632 = vcmask 261120
          %v633 = vsel %vm632, %v631, 0.0
          %634 = vadd.xlane.f32.xlu0 %v633
          %v635 = vpop.xlane.xlu0 %634
          %v636 = vrcp.pop 32.0
          %v637 = vmul.f32 %v635, %v636
          %v638 = vsub.f32 %v631, %v637
          %v639 = vmul.f32 %v638, %v638
          %v640 = vsel %vm632, %v639, 0.0
          %641 = vadd.xlane.f32.xlu0 %v640
          %v642 = vpop.xlane.xlu0 %641
          %v643 = vmul.f32 %v642, %v636
          %v644 = vadd.f32 %v643, 1e-06
          %v645 = vrsqrt.pop %v644
          %v646 = vmul.f32 %v638, %v645
          %v648 = vlaneseq
          %v649 = vshrl.u32 %v648, 7
          %v650 = vsub.s32 0, %v649
          %v651 = vrot.slane %v625, %v650
          %v653 = vmul.f32 %v646, %v651
          %v655 = vlaneseq
          %v656 = vshrl.u32 %v655, 7
          %v657 = vsub.s32 0, %v656
          %v658 = vrot.slane %v626, %v657
          %v660 = vadd.f32 %v653, %v658
          %v661 = vpack.c.bf16 %v660, %v660
          %v662 = vld [vmem:[#allocation11] sm:$0xf]
          %v663 = vld [vmem:[#allocation11 + $0x4] sm:$0xf]
          %v664 = vld [vmem:[#allocation11 + $0x8] sm:$0xf]
          %v665 = vld [vmem:[#allocation11 + $0xc] sm:$0xf]
          %v666 = vld [vmem:[#allocation12] sm:$0x1]
          %v668 = vlaneseq
          %v669 = vshrl.u32 %v668, 7
          %v670 = vsub.s32 0, %v669
          %v671 = vrot.slane %v666, %v670
          %v677 = vunpack.c.l.b16 %v662
          %v678 = vunpack.c.l.b16 %v663
          %v679 = vunpack.c.l.b16 %v664
          %v680 = vunpack.c.l.b16 %v665
          %v681 = vpack.c.b16 %v678, %v677
          %v682 = vpack.c.b16 %v680, %v679
          %v686 = vsel %vm632, %v661, 0
          %688 = vmatprep.subr.bf16.mxu0 0
          %689 = vmatpush1.bf16.msra.mxu0 0
          %690 = vmatprep.subr.bf16.mxu0 0
          %691 = vmatpush1.bf16.msra.mxu0 0
          %692 = vmatprep.subr.bf16.mxu0 0
          %693 = vmatpush1.bf16.msra.mxu0 0
          %694 = vmatprep.subr.bf16.mxu0 0
          %695 = vmatpush1.bf16.msra.mxu0 0
          %696 = vmatprep.subr.bf16.mxu0 0
          %697 = vmatpush1.bf16.msra.mxu0 0
          %698 = vmatprep.subr.bf16.mxu0 0
          %699 = vmatpush1.bf16.msra.mxu0 0
          %700 = vmatprep.subr.bf16.mxu0 0
          %701 = vmatpush1.bf16.msra.mxu0 %v682
          %702 = vmatprep.subr.bf16.mxu0 0
          %703 = vmatpush1.bf16.msra.mxu0 %v681
          %704 = vmatprep.subr.bf16.mxu0 0
          %705 = vmatpush2.bf16.msra.mxu0 0
          %706 = vmatprep.subr.bf16.mxu0 0
          %707 = vmatpush2.bf16.msra.mxu0 0
          %708 = vmatprep.subr.bf16.mxu0 0
          %709 = vmatpush2.bf16.msra.mxu0 0
          %710 = vmatprep.subr.bf16.mxu0 0
          %711 = vmatpush2.bf16.msra.mxu0 0
          %712 = vmatprep.subr.bf16.mxu0 0
          %713 = vmatpush2.bf16.msra.mxu0 0
          %714 = vmatprep.subr.bf16.mxu0 0
          %715 = vmatpush2.bf16.msra.mxu0 0
          %716 = vmatprep.subr.bf16.mxu0 0
          %717 = vmatpush2.bf16.msra.mxu0 0
          %718 = vmatprep.subr.bf16.mxu0 0
          %719 = vmatpush2.bf16.msra.mxu0 0
          %720 = vmatprep.mubr.bf16.mxu0 0
          %721 = vmatmul.mubr.bf16.gmra.mxu0 %v686
          %v722 = vpop.f32.mrf.mxu0
          %v723 = vadd.f32 %v671, %v722
          %v724 = vpop.f32.mrf.mxu0
          %v725 = vpop.f32.mrf.mxu0
          %v726 = vpop.f32.mrf.mxu0
          %727 = vdwg.mxu0
          %v728 = vpack.c.bf16 %v723, %v723
          %vm729 = vcmask 519168
          %730 = vst.msk [vmem:[#allocation2] sm:$0xf] %vm729, %v728
        $region116: #{tpu_custom_call.1} parent=75 // pred_fallthru
          _
        %s731 = smul.u32 %s42, 8
        %s732 = scalar_lea.vmem %s539, %s731 [#allocation3]
        %v733 = vld [vmem:[%s732] sm:$0xff]
        %vm734 = vcmask 261120
        %v735 = vsel %vm734, %v733, 0.0
        %736 = vadd.xlane.f32.xlu0 %v735
        %v737 = vpop.xlane.xlu0 %736
        %v738 = vrcp.pop 32.0
        %v739 = vmul.f32 %v737, %v738
        %v740 = vsub.f32 %v733, %v739
        %v741 = vmul.f32 %v740, %v740
        %v742 = vsel %vm734, %v741, 0.0
        %743 = vadd.xlane.f32.xlu0 %v742
        %v744 = vpop.xlane.xlu0 %743
        %v745 = vmul.f32 %v744, %v738
        %v746 = vadd.f32 %v745, 1e-06
        %v747 = vrsqrt.pop %v746
        %v748 = vmul.f32 %v740, %v747
        %v750 = vlaneseq
        %v751 = vshrl.u32 %v750, 7
        %v752 = vsub.s32 0, %v751
        %v753 = vrot.slane %v625, %v752
        %v755 = vmul.f32 %v748, %v753
        %v757 = vlaneseq
        %v758 = vshrl.u32 %v757, 7
        %v759 = vsub.s32 0, %v758
        %v760 = vrot.slane %v626, %v759
        %v762 = vadd.f32 %v755, %v760
        %v763 = vpack.c.bf16 %v762, %v762
        %v764 = vld [vmem:[#allocation8] sm:$0xf]
        %v765 = vld [vmem:[#allocation8 + $0x4] sm:$0xf]
        %v766 = vld [vmem:[#allocation8 + $0x8] sm:$0xf]
        %v767 = vld [vmem:[#allocation8 + $0xc] sm:$0xf]
        %v768 = vld [vmem:[#allocation9] sm:$0x1]
        %v770 = vlaneseq
        %v771 = vshrl.u32 %v770, 7
        %v772 = vsub.s32 0, %v771
        %v773 = vrot.slane %v768, %v772
        %v779 = vunpack.c.l.b16 %v764
        %v780 = vunpack.c.l.b16 %v765
        %v781 = vunpack.c.l.b16 %v766
        %v782 = vunpack.c.l.b16 %v767
        %v783 = vpack.c.b16 %v780, %v779
        %v784 = vpack.c.b16 %v782, %v781
        %v788 = vsel %vm734, %v763, 0
        %790 = vmatprep.subr.bf16.mxu0 0
        %791 = vmatpush1.bf16.msra.mxu0 0
        %792 = vmatprep.subr.bf16.mxu0 0
        %793 = vmatpush1.bf16.msra.mxu0 0
        %794 = vmatprep.subr.bf16.mxu0 0
        %795 = vmatpush1.bf16.msra.mxu0 0
        %796 = vmatprep.subr.bf16.mxu0 0
        %797 = vmatpush1.bf16.msra.mxu0 0
        %798 = vmatprep.subr.bf16.mxu0 0
        %799 = vmatpush1.bf16.msra.mxu0 0
        %800 = vmatprep.subr.bf16.mxu0 0
        %801 = vmatpush1.bf16.msra.mxu0 0
        %802 = vmatprep.subr.bf16.mxu0 0
        %803 = vmatpush1.bf16.msra.mxu0 %v784
        %804 = vmatprep.subr.bf16.mxu0 0
        %805 = vmatpush1.bf16.msra.mxu0 %v783
        %806 = vmatprep.subr.bf16.mxu0 0
        %807 = vmatpush2.bf16.msra.mxu0 0
        %808 = vmatprep.subr.bf16.mxu0 0
        %809 = vmatpush2.bf16.msra.mxu0 0
        %810 = vmatprep.subr.bf16.mxu0 0
        %811 = vmatpush2.bf16.msra.mxu0 0
        %812 = vmatprep.subr.bf16.mxu0 0
        %813 = vmatpush2.bf16.msra.mxu0 0
        %814 = vmatprep.subr.bf16.mxu0 0
        %815 = vmatpush2.bf16.msra.mxu0 0
        %816 = vmatprep.subr.bf16.mxu0 0
        %817 = vmatpush2.bf16.msra.mxu0 0
        %818 = vmatprep.subr.bf16.mxu0 0
        %819 = vmatpush2.bf16.msra.mxu0 0
        %820 = vmatprep.subr.bf16.mxu0 0
        %821 = vmatpush2.bf16.msra.mxu0 0
        %822 = vmatprep.mubr.bf16.mxu0 0
        %823 = vmatmul.mubr.bf16.gmra.mxu0 %v788
        %v824 = vpop.f32.mrf.mxu0
        %v825 = vadd.f32 %v773, %v824
        %v826 = vpop.f32.mrf.mxu0
        %v827 = vpop.f32.mrf.mxu0
        %v828 = vpop.f32.mrf.mxu0
        %829 = vdwg.mxu0
        %v830 = vpack.c.bf16 %v825, %v825
        %v831 = vld [vmem:[#allocation2] sm:$0xf]
        %833 = vrot.lane.b32.xlu0 %v830, 120
        %v834 = vpop.permute.xlu0 %833
        %835 = vrot.lane.b32.xlu0 %v830, 112
        %v836 = vpop.permute.xlu0 %835
        %837 = vrot.lane.b32.xlu0 %v830, 104
        %v838 = vpop.permute.xlu0 %837
        %840 = vrot.lane.b32.xlu0 %v831, 120
        %v841 = vpop.permute.xlu0 %840
        %842 = vrot.lane.b32.xlu0 %v831, 112
        %v843 = vpop.permute.xlu0 %842
        %844 = vrot.lane.b32.xlu0 %v831, 104
        %v845 = vpop.permute.xlu0 %844
        %v846 = vld [vmem:[%s547] sm:$0x1]
        %v848 = vlaneseq
        %v849 = vshrl.u32 %v848, 7
        %v850 = vsub.s32 0, %v849
        %v851 = vrot.slane %v846, %v850
        %vm853 = vcmask 64512
        %v855 = vsel %vm853, %v830, 0
        %v858 = vsel %vm853, %v831, 0
        %860 = vmatprep.subr.bf16.mxu0 0
        %861 = vmatpush1.bf16.xpose.msra.mxu0 0
        %862 = vmatprep.subr.bf16.mxu0 0
        %863 = vmatpush1.bf16.xpose.msra.mxu0 0
        %864 = vmatprep.subr.bf16.mxu0 0
        %865 = vmatpush1.bf16.xpose.msra.mxu0 0
        %866 = vmatprep.subr.bf16.mxu0 0
        %867 = vmatpush1.bf16.xpose.msra.mxu0 0
        %868 = vmatprep.subr.bf16.mxu0 0
        %869 = vmatpush1.bf16.xpose.msra.mxu0 0
        %870 = vmatprep.subr.bf16.mxu0 0
        %871 = vmatpush1.bf16.xpose.msra.mxu0 0
        %872 = vmatprep.subr.bf16.mxu0 0
        %873 = vmatpush1.bf16.xpose.msra.mxu0 0
        %874 = vmatprep.subr.bf16.mxu0 0
        %875 = vmatpush1.bf16.xpose.msra.mxu0 %v858
        %876 = vmatprep.subr.bf16.mxu0 0
        %877 = vmatpush2.bf16.xpose.msra.mxu0 0
        %878 = vmatprep.subr.bf16.mxu0 0
        %879 = vmatpush2.bf16.xpose.msra.mxu0 0
        %880 = vmatprep.subr.bf16.mxu0 0
        %881 = vmatpush2.bf16.xpose.msra.mxu0 0
        %882 = vmatprep.subr.bf16.mxu0 0
        %883 = vmatpush2.bf16.xpose.msra.mxu0 0
        %884 = vmatprep.subr.bf16.mxu0 0
        %885 = vmatpush2.bf16.xpose.msra.mxu0 0
        %886 = vmatprep.subr.bf16.mxu0 0
        %887 = vmatpush2.bf16.xpose.msra.mxu0 0
        %888 = vmatprep.subr.bf16.mxu0 0
        %889 = vmatpush2.bf16.xpose.msra.mxu0 0
        %890 = vmatprep.subr.bf16.mxu0 0
        %891 = vmatpush2.bf16.xpose.msra.mxu0 0
        %892 = vmatprep.mubr.bf16.mxu0 0
        %893 = vmatmul.mubr.bf16.gmra.mxu0 %v855
        %v894 = vpop.f32.mrf.mxu0
        %v895 = vadd.f32 %v851, %v894
        %v896 = vpop.f32.mrf.mxu0
        %v897 = vpop.f32.mrf.mxu0
        %v898 = vpop.f32.mrf.mxu0
        %899 = vdwg.mxu0
        %v901 = vsel %vm853, %v834, 0
        %v904 = vsel %vm853, %v841, 0
        %906 = vmatprep.subr.bf16.mxu0 0
        %907 = vmatpush1.bf16.xpose.msra.mxu0 0
        %908 = vmatprep.subr.bf16.mxu0 0
        %909 = vmatpush1.bf16.xpose.msra.mxu0 0
        %910 = vmatprep.subr.bf16.mxu0 0
        %911 = vmatpush1.bf16.xpose.msra.mxu0 0
        %912 = vmatprep.subr.bf16.mxu0 0
        %913 = vmatpush1.bf16.xpose.msra.mxu0 0
        %914 = vmatprep.subr.bf16.mxu0 0
        %915 = vmatpush1.bf16.xpose.msra.mxu0 0
        %916 = vmatprep.subr.bf16.mxu0 0
        %917 = vmatpush1.bf16.xpose.msra.mxu0 0
        %918 = vmatprep.subr.bf16.mxu0 0
        %919 = vmatpush1.bf16.xpose.msra.mxu0 0
        %920 = vmatprep.subr.bf16.mxu0 0
        %921 = vmatpush1.bf16.xpose.msra.mxu0 %v904
        %922 = vmatprep.subr.bf16.mxu0 0
        %923 = vmatpush2.bf16.xpose.msra.mxu0 0
        %924 = vmatprep.subr.bf16.mxu0 0
        %925 = vmatpush2.bf16.xpose.msra.mxu0 0
        %926 = vmatprep.subr.bf16.mxu0 0
        %927 = vmatpush2.bf16.xpose.msra.mxu0 0
        %928 = vmatprep.subr.bf16.mxu0 0
        %929 = vmatpush2.bf16.xpose.msra.mxu0 0
        %930 = vmatprep.subr.bf16.mxu0 0
        %931 = vmatpush2.bf16.xpose.msra.mxu0 0
        %932 = vmatprep.subr.bf16.mxu0 0
        %933 = vmatpush2.bf16.xpose.msra.mxu0 0
        %934 = vmatprep.subr.bf16.mxu0 0
        %935 = vmatpush2.bf16.xpose.msra.mxu0 0
        %936 = vmatprep.subr.bf16.mxu0 0
        %937 = vmatpush2.bf16.xpose.msra.mxu0 0
        %938 = vmatprep.mubr.bf16.mxu0 0
        %939 = vmatmul.mubr.bf16.gmra.mxu0 %v901
        %v940 = vpop.f32.mrf.mxu0
        %v941 = vadd.f32 %v851, %v940
        %v942 = vpop.f32.mrf.mxu0
        %v943 = vpop.f32.mrf.mxu0
        %v944 = vpop.f32.mrf.mxu0
        %945 = vdwg.mxu0
        %v947 = vsel %vm853, %v836, 0
        %v950 = vsel %vm853, %v843, 0
        %952 = vmatprep.subr.bf16.mxu0 0
        %953 = vmatpush1.bf16.xpose.msra.mxu0 0
        %954 = vmatprep.subr.bf16.mxu0 0
        %955 = vmatpush1.bf16.xpose.msra.mxu0 0
        %956 = vmatprep.subr.bf16.mxu0 0
        %957 = vmatpush1.bf16.xpose.msra.mxu0 0
        %958 = vmatprep.subr.bf16.mxu0 0
        %959 = vmatpush1.bf16.xpose.msra.mxu0 0
        %960 = vmatprep.subr.bf16.mxu0 0
        %961 = vmatpush1.bf16.xpose.msra.mxu0 0
        %962 = vmatprep.subr.bf16.mxu0 0
        %963 = vmatpush1.bf16.xpose.msra.mxu0 0
        %964 = vmatprep.subr.bf16.mxu0 0
        %965 = vmatpush1.bf16.xpose.msra.mxu0 0
        %966 = vmatprep.subr.bf16.mxu0 0
        %967 = vmatpush1.bf16.xpose.msra.mxu0 %v950
        %968 = vmatprep.subr.bf16.mxu0 0
        %969 = vmatpush2.bf16.xpose.msra.mxu0 0
        %970 = vmatprep.subr.bf16.mxu0 0
        %971 = vmatpush2.bf16.xpose.msra.mxu0 0
        %972 = vmatprep.subr.bf16.mxu0 0
        %973 = vmatpush2.bf16.xpose.msra.mxu0 0
        %974 = vmatprep.subr.bf16.mxu0 0
        %975 = vmatpush2.bf16.xpose.msra.mxu0 0
        %976 = vmatprep.subr.bf16.mxu0 0
        %977 = vmatpush2.bf16.xpose.msra.mxu0 0
        %978 = vmatprep.subr.bf16.mxu0 0
        %979 = vmatpush2.bf16.xpose.msra.mxu0 0
        %980 = vmatprep.subr.bf16.mxu0 0
        %981 = vmatpush2.bf16.xpose.msra.mxu0 0
        %982 = vmatprep.subr.bf16.mxu0 0
        %983 = vmatpush2.bf16.xpose.msra.mxu0 0
        %984 = vmatprep.mubr.bf16.mxu0 0
        %985 = vmatmul.mubr.bf16.gmra.mxu0 %v947
        %v986 = vpop.f32.mrf.mxu0
        %v987 = vadd.f32 %v851, %v986
        %v988 = vpop.f32.mrf.mxu0
        %v989 = vpop.f32.mrf.mxu0
        %v990 = vpop.f32.mrf.mxu0
        %991 = vdwg.mxu0
        %v993 = vsel %vm853, %v838, 0
        %v996 = vsel %vm853, %v845, 0
        %998 = vmatprep.subr.bf16.mxu0 0
        %999 = vmatpush1.bf16.xpose.msra.mxu0 0
        %1000 = vmatprep.subr.bf16.mxu0 0
        %1001 = vmatpush1.bf16.xpose.msra.mxu0 0
        %1002 = vmatprep.subr.bf16.mxu0 0
        %1003 = vmatpush1.bf16.xpose.msra.mxu0 0
        %1004 = vmatprep.subr.bf16.mxu0 0
        %1005 = vmatpush1.bf16.xpose.msra.mxu0 0
        %1006 = vmatprep.subr.bf16.mxu0 0
        %1007 = vmatpush1.bf16.xpose.msra.mxu0 0
        %1008 = vmatprep.subr.bf16.mxu0 0
        %1009 = vmatpush1.bf16.xpose.msra.mxu0 0
        %1010 = vmatprep.subr.bf16.mxu0 0
        %1011 = vmatpush1.bf16.xpose.msra.mxu0 0
        %1012 = vmatprep.subr.bf16.mxu0 0
        %1013 = vmatpush1.bf16.xpose.msra.mxu0 %v996
        %1014 = vmatprep.subr.bf16.mxu0 0
        %1015 = vmatpush2.bf16.xpose.msra.mxu0 0
        %1016 = vmatprep.subr.bf16.mxu0 0
        %1017 = vmatpush2.bf16.xpose.msra.mxu0 0
        %1018 = vmatprep.subr.bf16.mxu0 0
        %1019 = vmatpush2.bf16.xpose.msra.mxu0 0
        %1020 = vmatprep.subr.bf16.mxu0 0
        %1021 = vmatpush2.bf16.xpose.msra.mxu0 0
        %1022 = vmatprep.subr.bf16.mxu0 0
        %1023 = vmatpush2.bf16.xpose.msra.mxu0 0
        %1024 = vmatprep.subr.bf16.mxu0 0
        %1025 = vmatpush2.bf16.xpose.msra.mxu0 0
        %1026 = vmatprep.subr.bf16.mxu0 0
        %1027 = vmatpush2.bf16.xpose.msra.mxu0 0
        %1028 = vmatprep.subr.bf16.mxu0 0
        %1029 = vmatpush2.bf16.xpose.msra.mxu0 0
        %1030 = vmatprep.mubr.bf16.mxu0 0
        %1031 = vmatmul.mubr.bf16.gmra.mxu0 %v993
        %v1032 = vpop.f32.mrf.mxu0
        %v1033 = vadd.f32 %v851, %v1032
        %v1034 = vpop.f32.mrf.mxu0
        %v1035 = vpop.f32.mrf.mxu0
        %v1036 = vpop.f32.mrf.mxu0
        %1037 = vdwg.mxu0
        %v1038 = vsel %vm853, %v895, -inf
        %1039 = vmax.xlane.f32.xlu0 %v1038
        %v1040 = vpop.xlane.xlu0 %1039
        %v1041 = vsel %vm853, %v941, -inf
        %1042 = vmax.xlane.f32.xlu0 %v1041
        %v1043 = vpop.xlane.xlu0 %1042
        %v1044 = vsel %vm853, %v987, -inf
        %1045 = vmax.xlane.f32.xlu0 %v1044
        %v1046 = vpop.xlane.xlu0 %1045
        %v1047 = vsel %vm853, %v1033, -inf
        %1048 = vmax.xlane.f32.xlu0 %v1047
        %v1049 = vpop.xlane.xlu0 %1048
        %v1050 = vsub.f32 %v895, %v1040
        %v1051 = vsub.f32 %v941, %v1043
        %v1052 = vsub.f32 %v987, %v1046
        %v1053 = vsub.f32 %v1033, %v1049
        %v1054 = vmul.f32 %v1050, 1.442695
        %v1055 = vpow.pop %v1054
        %v1056 = vmul.f32 %v1051, 1.442695
        %v1057 = vpow.pop %v1056
        %v1058 = vmul.f32 %v1052, 1.442695
        %v1059 = vpow.pop %v1058
        %v1060 = vmul.f32 %v1053, 1.442695
        %v1061 = vpow.pop %v1060
        %v1062 = vsel %vm853, %v1055, 0.0
        %1063 = vadd.xlane.f32.xlu0 %v1062
        %v1064 = vpop.xlane.xlu0 %1063
        %v1065 = vsel %vm853, %v1057, 0.0
        %1066 = vadd.xlane.f32.xlu0 %v1065
        %v1067 = vpop.xlane.xlu0 %1066
        %v1068 = vsel %vm853, %v1059, 0.0
        %1069 = vadd.xlane.f32.xlu0 %v1068
        %v1070 = vpop.xlane.xlu0 %1069
        %v1071 = vsel %vm853, %v1061, 0.0
        %1072 = vadd.xlane.f32.xlu0 %v1071
        %v1073 = vpop.xlane.xlu0 %1072
        %v1074 = vrcp.pop %v1064
        %v1075 = vrcp.pop %v1067
        %v1076 = vrcp.pop %v1070
        %v1077 = vrcp.pop %v1073
        %v1078 = vmul.f32 %v1055, %v1074
        %v1079 = vmul.f32 %v1057, %v1075
        %v1080 = vmul.f32 %v1059, %v1076
        %v1081 = vmul.f32 %v1061, %v1077
        %v1082 = vpack.c.bf16 %v1078, %v1078
        %v1083 = vpack.c.bf16 %v1079, %v1079
        %v1084 = vpack.c.bf16 %v1080, %v1080
        %v1085 = vpack.c.bf16 %v1081, %v1081
        %v1086 = vunpack.c.l.b16 %v831
        %v1087 = vpack.c.b16 %v1086, %v1086
        %1088 = vrot.lane.b32.xlu0 %v1087, 96
        %v1089 = vpop.permute.xlu0 %1088
        %v1091 = vsel %vm853, %v1082, 0
        %vm1093 = vcmask 1043456
        %v1095 = vsel %vm1093, %v1089, 0
        %1097 = vmatprep.subr.bf16.mxu0 0
        %1098 = vmatpush1.bf16.msra.mxu0 0
        %1099 = vmatprep.subr.bf16.mxu0 0
        %1100 = vmatpush1.bf16.msra.mxu0 0
        %1101 = vmatprep.subr.bf16.mxu0 0
        %1102 = vmatpush1.bf16.msra.mxu0 0
        %1103 = vmatprep.subr.bf16.mxu0 0
        %1104 = vmatpush1.bf16.msra.mxu0 0
        %1105 = vmatprep.subr.bf16.mxu0 0
        %1106 = vmatpush1.bf16.msra.mxu0 0
        %1107 = vmatprep.subr.bf16.mxu0 0
        %1108 = vmatpush1.bf16.msra.mxu0 0
        %1109 = vmatprep.subr.bf16.mxu0 0
        %1110 = vmatpush1.bf16.msra.mxu0 0
        %1111 = vmatprep.subr.bf16.mxu0 0
        %1112 = vmatpush1.bf16.msra.mxu0 %v1095
        %1113 = vmatprep.subr.bf16.mxu0 0
        %1114 = vmatpush2.bf16.msra.mxu0 0
        %1115 = vmatprep.subr.bf16.mxu0 0
        %1116 = vmatpush2.bf16.msra.mxu0 0
        %1117 = vmatprep.subr.bf16.mxu0 0
        %1118 = vmatpush2.bf16.msra.mxu0 0
        %1119 = vmatprep.subr.bf16.mxu0 0
        %1120 = vmatpush2.bf16.msra.mxu0 0
        %1121 = vmatprep.subr.bf16.mxu0 0
        %1122 = vmatpush2.bf16.msra.mxu0 0
        %1123 = vmatprep.subr.bf16.mxu0 0
        %1124 = vmatpush2.bf16.msra.mxu0 0
        %1125 = vmatprep.subr.bf16.mxu0 0
        %1126 = vmatpush2.bf16.msra.mxu0 0
        %1127 = vmatprep.subr.bf16.mxu0 0
        %1128 = vmatpush2.bf16.msra.mxu0 0
        %1129 = vmatprep.mubr.bf16.mxu0 0
        %1130 = vmatmul.mubr.bf16.gmra.mxu0 %v1091
        %v1131 = vpop.f32.mrf.mxu0
        %v1132 = vadd.f32 0.0, %v1131
        %v1133 = vpop.f32.mrf.mxu0
        %v1134 = vpop.f32.mrf.mxu0
        %v1135 = vpop.f32.mrf.mxu0
        %1136 = vdwg.mxu0
        %v1137 = vunpack.c.l.b16 %v841
        %v1138 = vpack.c.b16 %v1137, %v1137
        %1139 = vrot.lane.b32.xlu0 %v1138, 96
        %v1140 = vpop.permute.xlu0 %1139
        %v1142 = vsel %vm853, %v1083, 0
        %v1145 = vsel %vm1093, %v1140, 0
        %1147 = vmatprep.subr.bf16.mxu0 0
        %1148 = vmatpush1.bf16.msra.mxu0 0
        %1149 = vmatprep.subr.bf16.mxu0 0
        %1150 = vmatpush1.bf16.msra.mxu0 0
        %1151 = vmatprep.subr.bf16.mxu0 0
        %1152 = vmatpush1.bf16.msra.mxu0 0
        %1153 = vmatprep.subr.bf16.mxu0 0
        %1154 = vmatpush1.bf16.msra.mxu0 0
        %1155 = vmatprep.subr.bf16.mxu0 0
        %1156 = vmatpush1.bf16.msra.mxu0 0
        %1157 = vmatprep.subr.bf16.mxu0 0
        %1158 = vmatpush1.bf16.msra.mxu0 0
        %1159 = vmatprep.subr.bf16.mxu0 0
        %1160 = vmatpush1.bf16.msra.mxu0 0
        %1161 = vmatprep.subr.bf16.mxu0 0
        %1162 = vmatpush1.bf16.msra.mxu0 %v1145
        %1163 = vmatprep.subr.bf16.mxu0 0
        %1164 = vmatpush2.bf16.msra.mxu0 0
        %1165 = vmatprep.subr.bf16.mxu0 0
        %1166 = vmatpush2.bf16.msra.mxu0 0
        %1167 = vmatprep.subr.bf16.mxu0 0
        %1168 = vmatpush2.bf16.msra.mxu0 0
        %1169 = vmatprep.subr.bf16.mxu0 0
        %1170 = vmatpush2.bf16.msra.mxu0 0
        %1171 = vmatprep.subr.bf16.mxu0 0
        %1172 = vmatpush2.bf16.msra.mxu0 0
        %1173 = vmatprep.subr.bf16.mxu0 0
        %1174 = vmatpush2.bf16.msra.mxu0 0
        %1175 = vmatprep.subr.bf16.mxu0 0
        %1176 = vmatpush2.bf16.msra.mxu0 0
        %1177 = vmatprep.subr.bf16.mxu0 0
        %1178 = vmatpush2.bf16.msra.mxu0 0
        %1179 = vmatprep.mubr.bf16.mxu0 0
        %1180 = vmatmul.mubr.bf16.gmra.mxu0 %v1142
        %v1181 = vpop.f32.mrf.mxu0
        %v1182 = vadd.f32 0.0, %v1181
        %v1183 = vpop.f32.mrf.mxu0
        %v1184 = vpop.f32.mrf.mxu0
        %v1185 = vpop.f32.mrf.mxu0
        %1186 = vdwg.mxu0
        %v1187 = vunpack.c.l.b16 %v843
        %v1188 = vpack.c.b16 %v1187, %v1187
        %1189 = vrot.lane.b32.xlu0 %v1188, 96
        %v1190 = vpop.permute.xlu0 %1189
        %v1192 = vsel %vm853, %v1084, 0
        %v1195 = vsel %vm1093, %v1190, 0
        %1197 = vmatprep.subr.bf16.mxu0 0
        %1198 = vmatpush1.bf16.msra.mxu0 0
        %1199 = vmatprep.subr.bf16.mxu0 0
        %1200 = vmatpush1.bf16.msra.mxu0 0
        %1201 = vmatprep.subr.bf16.mxu0 0
        %1202 = vmatpush1.bf16.msra.mxu0 0
        %1203 = vmatprep.subr.bf16.mxu0 0
        %1204 = vmatpush1.bf16.msra.mxu0 0
        %1205 = vmatprep.subr.bf16.mxu0 0
        %1206 = vmatpush1.bf16.msra.mxu0 0
        %1207 = vmatprep.subr.bf16.mxu0 0
        %1208 = vmatpush1.bf16.msra.mxu0 0
        %1209 = vmatprep.subr.bf16.mxu0 0
        %1210 = vmatpush1.bf16.msra.mxu0 0
        %1211 = vmatprep.subr.bf16.mxu0 0
        %1212 = vmatpush1.bf16.msra.mxu0 %v1195
        %1213 = vmatprep.subr.bf16.mxu0 0
        %1214 = vmatpush2.bf16.msra.mxu0 0
        %1215 = vmatprep.subr.bf16.mxu0 0
        %1216 = vmatpush2.bf16.msra.mxu0 0
        %1217 = vmatprep.subr.bf16.mxu0 0
        %1218 = vmatpush2.bf16.msra.mxu0 0
        %1219 = vmatprep.subr.bf16.mxu0 0
        %1220 = vmatpush2.bf16.msra.mxu0 0
        %1221 = vmatprep.subr.bf16.mxu0 0
        %1222 = vmatpush2.bf16.msra.mxu0 0
        %1223 = vmatprep.subr.bf16.mxu0 0
        %1224 = vmatpush2.bf16.msra.mxu0 0
        %1225 = vmatprep.subr.bf16.mxu0 0
        %1226 = vmatpush2.bf16.msra.mxu0 0
        %1227 = vmatprep.subr.bf16.mxu0 0
        %1228 = vmatpush2.bf16.msra.mxu0 0
        %1229 = vmatprep.mubr.bf16.mxu0 0
        %1230 = vmatmul.mubr.bf16.gmra.mxu0 %v1192
        %v1231 = vpop.f32.mrf.mxu0
        %v1232 = vadd.f32 0.0, %v1231
        %v1233 = vpop.f32.mrf.mxu0
        %v1234 = vpop.f32.mrf.mxu0
        %v1235 = vpop.f32.mrf.mxu0
        %1236 = vdwg.mxu0
        %v1237 = vunpack.c.l.b16 %v845
        %v1238 = vpack.c.b16 %v1237, %v1237
        %1239 = vrot.lane.b32.xlu0 %v1238, 96
        %v1240 = vpop.permute.xlu0 %1239
        %v1242 = vsel %vm853, %v1085, 0
        %v1245 = vsel %vm1093, %v1240, 0
        %1247 = vmatprep.subr.bf16.mxu0 0
        %1248 = vmatpush1.bf16.msra.mxu0 0
        %1249 = vmatprep.subr.bf16.mxu0 0
        %1250 = vmatpush1.bf16.msra.mxu0 0
        %1251 = vmatprep.subr.bf16.mxu0 0
        %1252 = vmatpush1.bf16.msra.mxu0 0
        %1253 = vmatprep.subr.bf16.mxu0 0
        %1254 = vmatpush1.bf16.msra.mxu0 0
        %1255 = vmatprep.subr.bf16.mxu0 0
        %1256 = vmatpush1.bf16.msra.mxu0 0
        %1257 = vmatprep.subr.bf16.mxu0 0
        %1258 = vmatpush1.bf16.msra.mxu0 0
        %1259 = vmatprep.subr.bf16.mxu0 0
        %1260 = vmatpush1.bf16.msra.mxu0 0
        %1261 = vmatprep.subr.bf16.mxu0 0
        %1262 = vmatpush1.bf16.msra.mxu0 %v1245
        %1263 = vmatprep.subr.bf16.mxu0 0
        %1264 = vmatpush2.bf16.msra.mxu0 0
        %1265 = vmatprep.subr.bf16.mxu0 0
        %1266 = vmatpush2.bf16.msra.mxu0 0
        %1267 = vmatprep.subr.bf16.mxu0 0
        %1268 = vmatpush2.bf16.msra.mxu0 0
        %1269 = vmatprep.subr.bf16.mxu0 0
        %1270 = vmatpush2.bf16.msra.mxu0 0
        %1271 = vmatprep.subr.bf16.mxu0 0
        %1272 = vmatpush2.bf16.msra.mxu0 0
        %1273 = vmatprep.subr.bf16.mxu0 0
        %1274 = vmatpush2.bf16.msra.mxu0 0
        %1275 = vmatprep.subr.bf16.mxu0 0
        %1276 = vmatpush2.bf16.msra.mxu0 0
        %1277 = vmatprep.subr.bf16.mxu0 0
        %1278 = vmatpush2.bf16.msra.mxu0 0
        %1279 = vmatprep.mubr.bf16.mxu0 0
        %1280 = vmatmul.mubr.bf16.gmra.mxu0 %v1242
        %v1281 = vpop.f32.mrf.mxu0
        %v1282 = vadd.f32 0.0, %v1281
        %v1283 = vpop.f32.mrf.mxu0
        %v1284 = vpop.f32.mrf.mxu0
        %v1285 = vpop.f32.mrf.mxu0
        %1286 = vdwg.mxu0
        %1288 = vrot.lane.b32.xlu0 %v1182, 8
        %v1289 = vpop.permute.xlu0 %1288
        %1292 = vrot.lane.b32.xlu0 %v1232, 16
        %v1293 = vpop.permute.xlu0 %1292
        %1296 = vrot.lane.b32.xlu0 %v1282, 24
        %v1297 = vpop.permute.xlu0 %1296
        %v1299 = vsel %vm853, %v1132, %v1289
        %vm1300 = vcmask 130048
        %v1301 = vsel %vm1300, %v1299, %v1293
        %vm1302 = vcmask 195584
        %v1303 = vsel %vm1302, %v1301, %v1297
        %v1304 = vadd.f32 %v733, %v1303
        %v1305 = vld [vmem:[#allocation14] sm:$0x1]
        %v1306 = vld [vmem:[#allocation15] sm:$0x1]
        %v1307 = vsel %vm734, %v1304, 0.0
        %1308 = vadd.xlane.f32.xlu0 %v1307
        %v1309 = vpop.xlane.xlu0 %1308
        %v1310 = vmul.f32 %v1309, %v738
        %v1311 = vsub.f32 %v1304, %v1310
        %v1312 = vmul.f32 %v1311, %v1311
        %v1313 = vsel %vm734, %v1312, 0.0
        %1314 = vadd.xlane.f32.xlu0 %v1313
        %v1315 = vpop.xlane.xlu0 %1314
        %v1316 = vmul.f32 %v1315, %v738
        %v1317 = vadd.f32 %v1316, 1e-06
        %v1318 = vrsqrt.pop %v1317
        %v1319 = vmul.f32 %v1311, %v1318
        %v1321 = vlaneseq
        %v1322 = vshrl.u32 %v1321, 7
        %v1323 = vsub.s32 0, %v1322
        %v1324 = vrot.slane %v1305, %v1323
        %v1326 = vmul.f32 %v1319, %v1324
        %v1328 = vlaneseq
        %v1329 = vshrl.u32 %v1328, 7
        %v1330 = vsub.s32 0, %v1329
        %v1331 = vrot.slane %v1306, %v1330
        %v1333 = vadd.f32 %v1326, %v1331
        %v1334 = vpack.c.bf16 %v1333, %v1333
        %v1335 = vld [vmem:[%s10] sm:$0xf]
        %v1336 = vld [vmem:[%s10 + $0x4] sm:$0xf]
        %v1337 = vld [vmem:[%s10 + $0x8] sm:$0xf]
        %v1338 = vld [vmem:[%s10 + $0xc] sm:$0xf]
        %v1339 = vld [vmem:[%s11] sm:$0x1]
        %v1341 = vlaneseq
        %v1342 = vshrl.u32 %v1341, 7
        %v1343 = vsub.s32 0, %v1342
        %v1344 = vrot.slane %v1339, %v1343
        %v1350 = vunpack.c.l.b16 %v1335
        %v1351 = vunpack.c.l.b16 %v1336
        %v1352 = vunpack.c.l.b16 %v1337
        %v1353 = vunpack.c.l.b16 %v1338
        %v1354 = vpack.c.b16 %v1351, %v1350
        %v1355 = vpack.c.b16 %v1353, %v1352
        %v1359 = vsel %vm734, %v1334, 0
        %1361 = vmatprep.subr.bf16.mxu0 0
        %1362 = vmatpush1.bf16.msra.mxu0 0
        %1363 = vmatprep.subr.bf16.mxu0 0
        %1364 = vmatpush1.bf16.msra.mxu0 0
        %1365 = vmatprep.subr.bf16.mxu0 0
        %1366 = vmatpush1.bf16.msra.mxu0 0
        %1367 = vmatprep.subr.bf16.mxu0 0
        %1368 = vmatpush1.bf16.msra.mxu0 0
        %1369 = vmatprep.subr.bf16.mxu0 0
        %1370 = vmatpush1.bf16.msra.mxu0 0
        %1371 = vmatprep.subr.bf16.mxu0 0
        %1372 = vmatpush1.bf16.msra.mxu0 0
        %1373 = vmatprep.subr.bf16.mxu0 0
        %1374 = vmatpush1.bf16.msra.mxu0 %v1355
        %1375 = vmatprep.subr.bf16.mxu0 0
        %1376 = vmatpush1.bf16.msra.mxu0 %v1354
        %1377 = vmatprep.subr.bf16.mxu0 0
        %1378 = vmatpush2.bf16.msra.mxu0 0
        %1379 = vmatprep.subr.bf16.mxu0 0
        %1380 = vmatpush2.bf16.msra.mxu0 0
        %1381 = vmatprep.subr.bf16.mxu0 0
        %1382 = vmatpush2.bf16.msra.mxu0 0
        %1383 = vmatprep.subr.bf16.mxu0 0
        %1384 = vmatpush2.bf16.msra.mxu0 0
        %1385 = vmatprep.subr.bf16.mxu0 0
        %1386 = vmatpush2.bf16.msra.mxu0 0
        %1387 = vmatprep.subr.bf16.mxu0 0
        %1388 = vmatpush2.bf16.msra.mxu0 0
        %1389 = vmatprep.subr.bf16.mxu0 0
        %1390 = vmatpush2.bf16.msra.mxu0 0
        %1391 = vmatprep.subr.bf16.mxu0 0
        %1392 = vmatpush2.bf16.msra.mxu0 0
        %1393 = vmatprep.mubr.bf16.mxu0 0
        %1394 = vmatmul.mubr.bf16.gmra.mxu0 %v1359
        %v1395 = vpop.f32.mrf.mxu0
        %v1396 = vadd.f32 %v1344, %v1395
        %v1397 = vpop.f32.mrf.mxu0
        %v1398 = vpop.f32.mrf.mxu0
        %v1399 = vpop.f32.mrf.mxu0
        %1400 = vdwg.mxu0
        %v1401 = vmul.f32 %v1396, 0.5
        %v1402 = vmul.f32 %v1396, 0.70710677
        %v1403 = vand.u32 2147483647, %v1402
        %v1404 = vmul.f32 %v1403, 0.3275911
        %v1405 = vadd.f32 %v1404, 1.0
        %v1406 = vrcp.pop %v1405
        %v1407 = vmul.f32 %v1406, 1.0614054
        %v1408 = vadd.f32 %v1407, -1.4531521
        %v1409 = vmul.f32 %v1408, %v1406
        %v1410 = vadd.f32 %v1409, 1.4214138
        %v1411 = vmul.f32 %v1410, %v1406
        %v1412 = vadd.f32 %v1411, -0.28449672
        %v1413 = vmul.f32 %v1412, %v1406
        %v1414 = vadd.f32 %v1413, 0.2548296
        %v1415 = vmul.f32 %v1414, %v1406
        %v1416 = vsub.f32 0.0, %v1403
        %v1417 = vmul.f32 %v1416, %v1403
        %v1418 = vmul.f32 %v1417, 1.442695
        %v1419 = vpow.pop %v1418
        %v1420 = vmul.f32 %v1415, %v1419
        %v1421 = vsub.f32 1.0, %v1420
        %vm1422 = vcmp.ge.f32.partialorder %v1402, 0.0
        %v1423 = vsub.f32 0.0, %v1421
        %v1424 = vsel %vm1422, %v1421, %v1423
        %v1425 = vadd.f32 %v1424, 1.0
        %v1426 = vmul.f32 %v1401, %v1425
        %v1427 = vpack.c.bf16 %v1426, %v1426
        %v1428 = vld [vmem:[#allocation17] sm:$0xf]
        %v1429 = vld [vmem:[#allocation17 + $0x4] sm:$0xf]
        %v1430 = vld [vmem:[#allocation17 + $0x8] sm:$0xf]
        %v1431 = vld [vmem:[#allocation17 + $0xc] sm:$0xf]
        %v1432 = vld [vmem:[%s13] sm:$0x1]
        %v1434 = vlaneseq
        %v1435 = vshrl.u32 %v1434, 7
        %v1436 = vsub.s32 0, %v1435
        %v1437 = vrot.slane %v1432, %v1436
        %v1443 = vunpack.c.l.b16 %v1428
        %v1444 = vunpack.c.l.b16 %v1429
        %v1445 = vunpack.c.l.b16 %v1430
        %v1446 = vunpack.c.l.b16 %v1431
        %v1447 = vpack.c.b16 %v1444, %v1443
        %v1448 = vpack.c.b16 %v1446, %v1445
        %v1452 = vsel %vm734, %v1427, 0
        %1454 = vmatprep.subr.bf16.mxu0 0
        %1455 = vmatpush1.bf16.msra.mxu0 0
        %1456 = vmatprep.subr.bf16.mxu0 0
        %1457 = vmatpush1.bf16.msra.mxu0 0
        %1458 = vmatprep.subr.bf16.mxu0 0
        %1459 = vmatpush1.bf16.msra.mxu0 0
        %1460 = vmatprep.subr.bf16.mxu0 0
        %1461 = vmatpush1.bf16.msra.mxu0 0
        %1462 = vmatprep.subr.bf16.mxu0 0
        %1463 = vmatpush1.bf16.msra.mxu0 0
        %1464 = vmatprep.subr.bf16.mxu0 0
        %1465 = vmatpush1.bf16.msra.mxu0 0
        %1466 = vmatprep.subr.bf16.mxu0 0
        %1467 = vmatpush1.bf16.msra.mxu0 %v1448
        %1468 = vmatprep.subr.bf16.mxu0 0
        %1469 = vmatpush1.bf16.msra.mxu0 %v1447
        %1470 = vmatprep.subr.bf16.mxu0 0
        %1471 = vmatpush2.bf16.msra.mxu0 0
        %1472 = vmatprep.subr.bf16.mxu0 0
        %1473 = vmatpush2.bf16.msra.mxu0 0
        %1474 = vmatprep.subr.bf16.mxu0 0
        %1475 = vmatpush2.bf16.msra.mxu0 0
        %1476 = vmatprep.subr.bf16.mxu0 0
        %1477 = vmatpush2.bf16.msra.mxu0 0
        %1478 = vmatprep.subr.bf16.mxu0 0
        %1479 = vmatpush2.bf16.msra.mxu0 0
        %1480 = vmatprep.subr.bf16.mxu0 0
        %1481 = vmatpush2.bf16.msra.mxu0 0
        %1482 = vmatprep.subr.bf16.mxu0 0
        %1483 = vmatpush2.bf16.msra.mxu0 0
        %1484 = vmatprep.subr.bf16.mxu0 0
        %1485 = vmatpush2.bf16.msra.mxu0 0
        %1486 = vmatprep.mubr.bf16.mxu0 0
        %1487 = vmatmul.mubr.bf16.gmra.mxu0 %v1452
        %v1488 = vpop.f32.mrf.mxu0
        %v1489 = vadd.f32 %v1437, %v1488
        %v1490 = vpop.f32.mrf.mxu0
        %v1491 = vpop.f32.mrf.mxu0
        %v1492 = vpop.f32.mrf.mxu0
        %1493 = vdwg.mxu0
        %v1494 = vadd.f32 %v1489, %v1304
        %1495 = vst.msk [vmem:[%s623] sm:$0xff] %vm734, %v1494
        %s1496 = sand.u32 %s363, 1
        %s1497 = scalar_lea.sflag [#allocation5], %s1496
        %s1498 = sand.u32 %s363, 1
        %s1499 = smul.addr %s1498, 8
        %s1500 = scalar_lea.vmem [#allocation18], %s1499
        // Predicated region
        $region117: #{tpu_custom_call.1} parent=75 // pred_check
          %p1501 = pneg %p373
        $region118: #{tpu_custom_call.1} parent=75 // pred_check_branch
          %1503 = sbr.rel (%p1501) target = $region120
        $region119: #{tpu_custom_call.1} parent=75 // pred_region
          %s1505 = ssub.s32 128, 128
          %1506 = vsyncadd %s1497, %s1505
          %s1507 = sadd.s32 %s42, %s41
          %s1508 = smul.addr %s1507, 128
          %s1509 = scalar_lea.hbm %s14, %s1508
          %s1511 = sshll.u32 %s1500, 4
          %s1512 = int_to_ptr.vmem [resolvable:$true] %s1511
          %1514 = dma.vmem_to_hbm [thread:$0]  %s1512, 128, %s1509, %s1497
        $region120: #{tpu_custom_call.1} parent=75 // pred_fallthru
          _
      $region76: #{tpu_custom_call.1} parent=5 // pred_fallthru
        _
      %p1515 = scmp.le.s32.totalorder 2, %s32
      // Predicated region
      $region121: #{tpu_custom_call.1} parent=5 // pred_check
        %p1516 = pneg %p1515
      $region122: #{tpu_custom_call.1} parent=5 // pred_check_branch
        %1518 = sbr.rel (%p1516) target = $region124
      $region123: #{tpu_custom_call.1} parent=5 // pred_region
        %s1519 = ssub.s32 %s32, 2
        // Predicated region
        $region125: #{tpu_custom_call.1} parent=123 // pred_check
          %p1520 = pneg %p379
        $region126: #{tpu_custom_call.1} parent=123 // pred_check_branch
          %1522 = sbr.rel (%p1520) target = $region128
        $region127: #{tpu_custom_call.1} parent=123 // pred_region
          %s1523 = sand.u32 %s364, 1
          %s1524 = scalar_lea.sflag [#allocation5], %s1523
          %s1525 = sand.u32 %s364, 1
          %s1526 = smul.addr %s1525, 8
          %s1527 = scalar_lea.vmem [#allocation18], %s1526
          %1528 = dma.done %s1524, 128
        $region128: #{tpu_custom_call.1} parent=123 // pred_fallthru
          _
      $region124: #{tpu_custom_call.1} parent=5 // pred_fallthru
        _
    $region6: #{tpu_custom_call.1} parent=1 // loop_footer
      %s36 = sadd.s32 1, %s32
    $region7: #{tpu_custom_call.1} parent=1 // loop_footer_branch
      %31 = sbr.rel target = $region3
    $region8: #{tpu_custom_call.1} parent=1 // loop_exit
      _
    %1529 = vsyncpa [#allocation4], 1
    %s1530 = scalar_lea.sflag [#allocation4], 1
    %1531 = vsyncpa %s1530, 1
    %1532 = vsyncpa [#allocation7], 1
    %s1533 = scalar_lea.sflag [#allocation7], 1
    %1534 = vsyncpa %s1533, 1
    %1535 = vsyncpa [#allocation10], 1
    %1536 = vsyncpa [#allocation13], 1
    %1537 = vsyncpa [#allocation16], 1
    %1538 = vsyncpa [#allocation5], 1
    %s1539 = scalar_lea.sflag [#allocation5], 1
    %1540 = vsyncpa %s1539, 1

// kernel: tpu_custom_call.1
$region0: #{tpu_custom_call.1}
  #allocation0 [shape = 'u32[]', space=smem, size = 0x4, offset = 0x4, fixed_abs, tag = 'smem constant byte address 0x4 - core index']
  #allocation1 [shape = 'u32[144,128]{1,0:T(1,128)}', space=vmem, size = 0x12000, scoped, tag = 'internal scratch']
  #allocation2 [shape = 'bf16[8,64]{1,0:T(8,128)(2,1)}', space=vmem, size = 0x800, scoped, tag = 'scratch operand']
  %s0 = inlined_call_operand.hbm [shape: f32[2,8,32], index: 0, kind: input, shape index: {}]
  %s1 = inlined_call_operand.hbm [shape: f32[2,1,8], index: 1, kind: input, shape index: {}]
  %s2 = inlined_call_operand.vmem [shape: f32[1,32], index: 2, kind: input, shape index: {}]
  %s3 = inlined_call_operand.vmem [shape: f32[1,32], index: 3, kind: input, shape index: {}]
  %s4 = inlined_call_operand.hbm [shape: bf16[32,32], index: 4, kind: input, shape index: {}]
  %s5 = inlined_call_operand.hbm [shape: f32[1,32], index: 5, kind: input, shape index: {}]
  %s6 = inlined_call_operand.hbm [shape: bf16[32,64], index: 6, kind: input, shape index: {}]
  %s7 = inlined_call_operand.hbm [shape: f32[1,64], index: 7, kind: input, shape index: {}]
  %s8 = inlined_call_operand.hbm [shape: f32[1,32], index: 8, kind: input, shape index: {}]
  %s9 = inlined_call_operand.hbm [shape: f32[1,32], index: 9, kind: input, shape index: {}]
  %s10 = inlined_call_operand.vmem [shape: bf16[32,32], index: 10, kind: input, shape index: {}]
  %s11 = inlined_call_operand.vmem [shape: f32[1,32], index: 11, kind: input, shape index: {}]
  %s12 = inlined_call_operand.hbm [shape: bf16[32,32], index: 12, kind: input, shape index: {}]
  %s13 = inlined_call_operand.vmem [shape: f32[1,32], index: 13, kind: input, shape index: {}]
  %s14 = inlined_call_operand.hbm [shape: f32[2,8,32], index: 14, kind: output, shape index: {}]
  %s15 = sld [smem:[#allocation0]]
  $region129: #{tpu_custom_call.1} parent=0
    _
  %s17 = ssub.s32 1, %s15
  %s18 = scalar_select 0, %s17, %s15
  $region1: #{tpu_custom_call.1} parent=0
    #allocation3 [shape = 'u8[8192]{0}', space=vmem, size = 0x2000, scoped, tag = 'input window, operand 0']
    #allocation4 [shape = 's32[2]{0}', space=sflag, size = 0x8, scoped, tag = 'scoped memory for tpu_custom_call.1']
    #allocation5 [shape = 's32[2]{0}', space=sflag, size = 0x8, scoped, tag = 'scoped memory for tpu_custom_call.1']
    #allocation6 [shape = 'u8[1024]{0}', space=vmem, size = 0x400, scoped, tag = 'input window, operand 1']
    #allocation7 [shape = 's32[2]{0}', space=sflag, size = 0x8, scoped, tag = 'scoped memory for tpu_custom_call.1']
    #allocation8 [shape = 'u8[8192]{0}', space=vmem, size = 0x2000, scoped, tag = 'input window, operand 4, single buffered']
    #allocation9 [shape = 'u8[512]{0}', space=vmem, size = 0x400, scoped, tag = 'input window, operand 5, single buffered']
    #allocation10 [shape = 's32[1]{0}', space=sflag, size = 0x4, scoped, tag = 'scoped memory for tpu_custom_call.1']
    #allocation11 [shape = 'u8[8192]{0}', space=vmem, size = 0x2000, scoped, tag = 'input window, operand 6, single buffered']
    #allocation12 [shape = 'u8[512]{0}', space=vmem, size = 0x400, scoped, tag = 'input window, operand 7, single buffered']
    #allocation13 [shape = 's32[1]{0}', space=sflag, size = 0x4, scoped, tag = 'scoped memory for tpu_custom_call.1']
    #allocation14 [shape = 'u8[512]{0}', space=vmem, size = 0x400, scoped, tag = 'input window, operand 8, single buffered']
    #allocation15 [shape = 'u8[512]{0}', space=vmem, size = 0x400, scoped, tag = 'input window, operand 9, single buffered']
    #allocation16 [shape = 's32[1]{0}', space=sflag, size = 0x4, scoped, tag = 'scoped memory for tpu_custom_call.1']
    #allocation17 [shape = 'u8[8192]{0}', space=vmem, size = 0x2000, scoped, tag = 'input window, operand 12, single buffered']
    #allocation18 [shape = 'u8[8192]{0}', space=vmem, size = 0x2000, scoped, tag = 'output window, operand 0']
    %19 = vsyncpa [#allocation4], 0
    %s20 = scalar_lea.sflag [#allocation4], 1
    %21 = vsyncpa %s20, 0
    %22 = vsyncpa [#allocation7], 0
    %s23 = scalar_lea.sflag [#allocation7], 1
    %24 = vsyncpa %s23, 0
    %25 = vsyncpa [#allocation10], 0
    %26 = vsyncpa [#allocation13], 0
    %27 = vsyncpa [#allocation16], 0
    %28 = vsyncpa [#allocation5], 0
    %s29 = scalar_lea.sflag [#allocation5], 1
    %30 = vsyncpa %s29, 0
    loop: start=0, step=1, limit=4
    $region2: #{tpu_custom_call.1} parent=1 // loop_pre_header
      _
    $region3: #{tpu_custom_call.1} parent=1 // loop_header
      %s32 = sphi 0, %s36
      %p33 = scmp.ge.s32.totalorder %s32, 4
      %s39 = sphi 0, %s51
      %s40 = sphi 0, %s47
      %s41 = sphi 0, %s39
      %s42 = sphi 0, %s40
      %s43 = sphi 0, %s41
      %s44 = sphi 0, %s42
      %s54 = sphi 0, %s56
      %s57 = sphi 0, %s54
      %s58 = sphi 0, %s57
      %s74 = sphi 0, %s58
      %s80 = sphi 0, %s82
      %s83 = sphi 0, %s80
      %s84 = sphi 0, %s83
      %s100 = sphi 0, %s84
      %s104 = sphi 0, %s104
      %s106 = sphi 0, %s104
      %s107 = sphi 0, %s106
      %s121 = sphi 0, %s107
      %s125 = sphi 0, %s125
      %s127 = sphi 0, %s125
      %s128 = sphi 0, %s127
      %s142 = sphi 0, %s128
      %s146 = sphi 0, %s146
      %s148 = sphi 0, %s146
      %s149 = sphi 0, %s148
      %s163 = sphi 0, %s149
      %s167 = sphi 0, %s167
      %s169 = sphi 0, %s167
      %s170 = sphi 0, %s169
      %s184 = sphi 0, %s170
      %s188 = sphi 0, %s188
      %s190 = sphi 0, %s188
      %s191 = sphi 0, %s190
      %s205 = sphi 0, %s191
      %s209 = sphi 0, %s209
      %s211 = sphi 0, %s209
      %s212 = sphi 0, %s211
      %s226 = sphi 0, %s212
      %s230 = sphi 0, %s230
      %s232 = sphi 0, %s230
      %s233 = sphi 0, %s232
      %s247 = sphi 0, %s233
      %s251 = sphi 0, %s251
      %s253 = sphi 0, %s251
      %s254 = sphi 0, %s253
      %s268 = sphi 0, %s254
      %s272 = sphi 0, %s272
      %s274 = sphi 0, %s272
      %s275 = sphi 0, %s274
      %s289 = sphi 0, %s275
      %s293 = sphi 0, %s293
      %s295 = sphi 0, %s293
      %s296 = sphi 0, %s295
      %s310 = sphi 0, %s296
      %s314 = sphi 0, %s314
      %s316 = sphi 0, %s314
      %s317 = sphi 0, %s316
      %s331 = sphi 0, %s317
      %s335 = sphi 0, %s335
      %s337 = sphi 0, %s335
      %s338 = sphi 0, %s337
      %s352 = sphi 0, %s338
      %s360 = sphi 0, %s362
      %s363 = sphi 0, %s360
      %s364 = sphi 0, %s363
      %s380 = sphi 0, %s364
    $region4: #{tpu_custom_call.1} parent=1 // loop_header_branch
      %35 = sbr.rel (%p33) target = $region8
    $region5: #{tpu_custom_call.1} parent=1 // loop_body
      %s37 = ssub.s32 %s32, 1
      %s38 = ssub.s32 %s32, 2
      %s45 = sadd.s32 1, %s40
      %p46 = scmp.ge.s32.totalorder %s45, 1
      %s47 = scalar_select %p46, 0, %s45
      %s48 = sadd.s32 1, %s39
      %s49 = scalar_select %p46, %s48, %s39
      %p50 = scmp.ge.s32.totalorder %s49, 2
      %s51 = scalar_select %p50, 0, %s49
      %s52 = ssub.s32 %s39, %s51
      %p53 = scmp.eq.s32.totalorder %s52, 0
      %s55 = sadd.s32 %s54, 1
      %s56 = scalar_select %p53, %s54, %s55
      %p59 = pneg %p53
      %p60 = scmp.eq.s32.totalorder %s32, 1
      %p61 = por %p59, %p60
      %p62 = scmp.ne.s32.totalorder %s54, %s57
      %p63 = scmp.eq.s32.totalorder %s32, 0
      %p64 = por %p62, %p63
      %p65 = scmp.ne.s32.totalorder %s54, %s57
      %p66 = scmp.eq.s32.totalorder %s37, 1
      %p67 = por %p65, %p66
      %p68 = scmp.ne.s32.totalorder %s57, %s58
      %p69 = scmp.eq.s32.totalorder %s37, 0
      %p70 = por %p68, %p69
      %p71 = scmp.ne.s32.totalorder %s57, %s58
      %p72 = scmp.eq.s32.totalorder %s38, 1
      %p73 = por %p71, %p72
      %p75 = scmp.ne.s32.totalorder %s58, %s74
      %p76 = scmp.eq.s32.totalorder %s38, 0
      %p77 = por %p75, %p76
      %s78 = ssub.s32 %s39, %s51
      %p79 = scmp.eq.s32.totalorder %s78, 0
      %s81 = sadd.s32 %s80, 1
      %s82 = scalar_select %p79, %s80, %s81
      %p85 = pneg %p79
      %p86 = scmp.eq.s32.totalorder %s32, 1
      %p87 = por %p85, %p86
      %p88 = scmp.ne.s32.totalorder %s80, %s83
      %p89 = scmp.eq.s32.totalorder %s32, 0
      %p90 = por %p88, %p89
      %p91 = scmp.ne.s32.totalorder %s80, %s83
      %p92 = scmp.eq.s32.totalorder %s37, 1
      %p93 = por %p91, %p92
      %p94 = scmp.ne.s32.totalorder %s83, %s84
      %p95 = scmp.eq.s32.totalorder %s37, 0
      %p96 = por %p94, %p95
      %p97 = scmp.ne.s32.totalorder %s83, %s84
      %p98 = scmp.eq.s32.totalorder %s38, 1
      %p99 = por %p97, %p98
      %p101 = scmp.ne.s32.totalorder %s84, %s100
      %p102 = scmp.eq.s32.totalorder %s38, 0
      %p103 = por %p101, %p102
      %s105 = sadd.s32 %s104, 1
      %p108 = scmp.eq.s32.totalorder %s32, 1
      %p109 = scmp.ne.s32.totalorder %s104, %s106
      %p110 = scmp.eq.s32.totalorder %s32, 0
      %p111 = por %p109, %p110
      %p112 = scmp.ne.s32.totalorder %s104, %s106
      %p113 = scmp.eq.s32.totalorder %s37, 1
      %p114 = por %p112, %p113
      %p115 = scmp.ne.s32.totalorder %s106, %s107
      %p116 = scmp.eq.s32.totalorder %s37, 0
      %p117 = por %p115, %p116
      %p118 = scmp.ne.s32.totalorder %s106, %s107
      %p119 = scmp.eq.s32.totalorder %s38, 1
      %p120 = por %p118, %p119
      %p122 = scmp.ne.s32.totalorder %s107, %s121
      %p123 = scmp.eq.s32.totalorder %s38, 0
      %p124 = por %p122, %p123
      %s126 = sadd.s32 %s125, 1
      %p129 = scmp.eq.s32.totalorder %s32, 1
      %p130 = scmp.ne.s32.totalorder %s125, %s127
      %p131 = scmp.eq.s32.totalorder %s32, 0
      %p132 = por %p130, %p131
      %p133 = scmp.ne.s32.totalorder %s125, %s127
      %p134 = scmp.eq.s32.totalorder %s37, 1
      %p135 = por %p133, %p134
      %p136 = scmp.ne.s32.totalorder %s127, %s128
      %p137 = scmp.eq.s32.totalorder %s37, 0
      %p138 = por %p136, %p137
      %p139 = scmp.ne.s32.totalorder %s127, %s128
      %p140 = scmp.eq.s32.totalorder %s38, 1
      %p141 = por %p139, %p140
      %p143 = scmp.ne.s32.totalorder %s128, %s142
      %p144 = scmp.eq.s32.totalorder %s38, 0
      %p145 = por %p143, %p144
      %s147 = sadd.s32 %s146, 1
      %p150 = scmp.eq.s32.totalorder %s32, 1
      %p151 = scmp.ne.s32.totalorder %s146, %s148
      %p152 = scmp.eq.s32.totalorder %s32, 0
      %p153 = por %p151, %p152
      %p154 = scmp.ne.s32.totalorder %s146, %s148
      %p155 = scmp.eq.s32.totalorder %s37, 1
      %p156 = por %p154, %p155
      %p157 = scmp.ne.s32.totalorder %s148, %s149
      %p158 = scmp.eq.s32.totalorder %s37, 0
      %p159 = por %p157, %p158
      %p160 = scmp.ne.s32.totalorder %s148, %s149
      %p161 = scmp.eq.s32.totalorder %s38, 1
      %p162 = por %p160, %p161
      %p164 = scmp.ne.s32.totalorder %s149, %s163
      %p165 = scmp.eq.s32.totalorder %s38, 0
      %p166 = por %p164, %p165
      %s168 = sadd.s32 %s167, 1
      %p171 = scmp.eq.s32.totalorder %s32, 1
      %p172 = scmp.ne.s32.totalorder %s167, %s169
      %p173 = scmp.eq.s32.totalorder %s32, 0
      %p174 = por %p172, %p173
      %p175 = scmp.ne.s32.totalorder %s167, %s169
      %p176 = scmp.eq.s32.totalorder %s37, 1
      %p177 = por %p175, %p176
      %p178 = scmp.ne.s32.totalorder %s169, %s170
      %p179 = scmp.eq.s32.totalorder %s37, 0
      %p180 = por %p178, %p179
      %p181 = scmp.ne.s32.totalorder %s169, %s170
      %p182 = scmp.eq.s32.totalorder %s38, 1
      %p183 = por %p181, %p182
      %p185 = scmp.ne.s32.totalorder %s170, %s184
      %p186 = scmp.eq.s32.totalorder %s38, 0
      %p187 = por %p185, %p186
      %s189 = sadd.s32 %s188, 1
      %p192 = scmp.eq.s32.totalorder %s32, 1
      %p193 = scmp.ne.s32.totalorder %s188, %s190
      %p194 = scmp.eq.s32.totalorder %s32, 0
      %p195 = por %p193, %p194
      %p196 = scmp.ne.s32.totalorder %s188, %s190
      %p197 = scmp.eq.s32.totalorder %s37, 1
      %p198 = por %p196, %p197
      %p199 = scmp.ne.s32.totalorder %s190, %s191
      %p200 = scmp.eq.s32.totalorder %s37, 0
      %p201 = por %p199, %p200
      %p202 = scmp.ne.s32.totalorder %s190, %s191
      %p203 = scmp.eq.s32.totalorder %s38, 1
      %p204 = por %p202, %p203
      %p206 = scmp.ne.s32.totalorder %s191, %s205
      %p207 = scmp.eq.s32.totalorder %s38, 0
      %p208 = por %p206, %p207
      %s210 = sadd.s32 %s209, 1
      %p213 = scmp.eq.s32.totalorder %s32, 1
      %p214 = scmp.ne.s32.totalorder %s209, %s211
      %p215 = scmp.eq.s32.totalorder %s32, 0
      %p216 = por %p214, %p215
      %p217 = scmp.ne.s32.totalorder %s209, %s211
      %p218 = scmp.eq.s32.totalorder %s37, 1
      %p219 = por %p217, %p218
      %p220 = scmp.ne.s32.totalorder %s211, %s212
      %p221 = scmp.eq.s32.totalorder %s37, 0
      %p222 = por %p220, %p221
      %p223 = scmp.ne.s32.totalorder %s211, %s212
      %p224 = scmp.eq.s32.totalorder %s38, 1
      %p225 = por %p223, %p224
      %p227 = scmp.ne.s32.totalorder %s212, %s226
      %p228 = scmp.eq.s32.totalorder %s38, 0
      %p229 = por %p227, %p228
      %s231 = sadd.s32 %s230, 1
      %p234 = scmp.eq.s32.totalorder %s32, 1
      %p235 = scmp.ne.s32.totalorder %s230, %s232
      %p236 = scmp.eq.s32.totalorder %s32, 0
      %p237 = por %p235, %p236
      %p238 = scmp.ne.s32.totalorder %s230, %s232
      %p239 = scmp.eq.s32.totalorder %s37, 1
      %p240 = por %p238, %p239
      %p241 = scmp.ne.s32.totalorder %s232, %s233
      %p242 = scmp.eq.s32.totalorder %s37, 0
      %p243 = por %p241, %p242
      %p244 = scmp.ne.s32.totalorder %s232, %s233
      %p245 = scmp.eq.s32.totalorder %s38, 1
      %p246 = por %p244, %p245
      %p248 = scmp.ne.s32.totalorder %s233, %s247
      %p249 = scmp.eq.s32.totalorder %s38, 0
      %p250 = por %p248, %p249
      %s252 = sadd.s32 %s251, 1
      %p255 = scmp.eq.s32.totalorder %s32, 1
      %p256 = scmp.ne.s32.totalorder %s251, %s253
      %p257 = scmp.eq.s32.totalorder %s32, 0
      %p258 = por %p256, %p257
      %p259 = scmp.ne.s32.totalorder %s251, %s253
      %p260 = scmp.eq.s32.totalorder %s37, 1
      %p261 = por %p259, %p260
      %p262 = scmp.ne.s32.totalorder %s253, %s254
      %p263 = scmp.eq.s32.totalorder %s37, 0
      %p264 = por %p262, %p263
      %p265 = scmp.ne.s32.totalorder %s253, %s254
      %p266 = scmp.eq.s32.totalorder %s38, 1
      %p267 = por %p265, %p266
      %p269 = scmp.ne.s32.totalorder %s254, %s268
      %p270 = scmp.eq.s32.totalorder %s38, 0
      %p271 = por %p269, %p270
      %s273 = sadd.s32 %s272, 1
      %p276 = scmp.eq.s32.totalorder %s32, 1
      %p277 = scmp.ne.s32.totalorder %s272, %s274
      %p278 = scmp.eq.s32.totalorder %s32, 0
      %p279 = por %p277, %p278
      %p280 = scmp.ne.s32.totalorder %s272, %s274
      %p281 = scmp.eq.s32.totalorder %s37, 1
      %p282 = por %p280, %p281
      %p283 = scmp.ne.s32.totalorder %s274, %s275
      %p284 = scmp.eq.s32.totalorder %s37, 0
      %p285 = por %p283, %p284
      %p286 = scmp.ne.s32.totalorder %s274, %s275
      %p287 = scmp.eq.s32.totalorder %s38, 1
      %p288 = por %p286, %p287
      %p290 = scmp.ne.s32.totalorder %s275, %s289
      %p291 = scmp.eq.s32.totalorder %s38, 0
      %p292 = por %p290, %p291
      %s294 = sadd.s32 %s293, 1
      %p297 = scmp.eq.s32.totalorder %s32, 1
      %p298 = scmp.ne.s32.totalorder %s293, %s295
      %p299 = scmp.eq.s32.totalorder %s32, 0
      %p300 = por %p298, %p299
      %p301 = scmp.ne.s32.totalorder %s293, %s295
      %p302 = scmp.eq.s32.totalorder %s37, 1
      %p303 = por %p301, %p302
      %p304 = scmp.ne.s32.totalorder %s295, %s296
      %p305 = scmp.eq.s32.totalorder %s37, 0
      %p306 = por %p304, %p305
      %p307 = scmp.ne.s32.totalorder %s295, %s296
      %p308 = scmp.eq.s32.totalorder %s38, 1
      %p309 = por %p307, %p308
      %p311 = scmp.ne.s32.totalorder %s296, %s310
      %p312 = scmp.eq.s32.totalorder %s38, 0
      %p313 = por %p311, %p312
      %s315 = sadd.s32 %s314, 1
      %p318 = scmp.eq.s32.totalorder %s32, 1
      %p319 = scmp.ne.s32.totalorder %s314, %s316
      %p320 = scmp.eq.s32.totalorder %s32, 0
      %p321 = por %p319, %p320
      %p322 = scmp.ne.s32.totalorder %s314, %s316
      %p323 = scmp.eq.s32.totalorder %s37, 1
      %p324 = por %p322, %p323
      %p325 = scmp.ne.s32.totalorder %s316, %s317
      %p326 = scmp.eq.s32.totalorder %s37, 0
      %p327 = por %p325, %p326
      %p328 = scmp.ne.s32.totalorder %s316, %s317
      %p329 = scmp.eq.s32.totalorder %s38, 1
      %p330 = por %p328, %p329
      %p332 = scmp.ne.s32.totalorder %s317, %s331
      %p333 = scmp.eq.s32.totalorder %s38, 0
      %p334 = por %p332, %p333
      %s336 = sadd.s32 %s335, 1
      %p339 = scmp.eq.s32.totalorder %s32, 1
      %p340 = scmp.ne.s32.totalorder %s335, %s337
      %p341 = scmp.eq.s32.totalorder %s32, 0
      %p342 = por %p340, %p341
      %p343 = scmp.ne.s32.totalorder %s335, %s337
      %p344 = scmp.eq.s32.totalorder %s37, 1
      %p345 = por %p343, %p344
      %p346 = scmp.ne.s32.totalorder %s337, %s338
      %p347 = scmp.eq.s32.totalorder %s37, 0
      %p348 = por %p346, %p347
      %p349 = scmp.ne.s32.totalorder %s337, %s338
      %p350 = scmp.eq.s32.totalorder %s38, 1
      %p351 = por %p349, %p350
      %p353 = scmp.ne.s32.totalorder %s338, %s352
      %p354 = scmp.eq.s32.totalorder %s38, 0
      %p355 = por %p353, %p354
      %s356 = ssub.s32 %s39, %s51
      %s357 = ssub.s32 %s40, %s47
      %s358 = sor.u32 %s356, %s357
      %p359 = scmp.eq.s32.totalorder %s358, 0
      %s361 = sadd.s32 %s360, 1
      %s362 = scalar_select %p359, %s360, %s361
      %p365 = pneg %p359
      %p366 = scmp.eq.s32.totalorder %s32, 1
      %p367 = por %p365, %p366
      %p368 = scmp.ne.s32.totalorder %s360, %s363
      %p369 = scmp.eq.s32.totalorder %s32, 0
      %p370 = por %p368, %p369
      %p371 = scmp.ne.s32.totalorder %s360, %s363
      %p372 = scmp.eq.s32.totalorder %s37, 1
      %p373 = por %p371, %p372
      %p374 = scmp.ne.s32.totalorder %s363, %s364
      %p375 = scmp.eq.s32.totalorder %s37, 0
      %p376 = por %p374, %p375
      %p377 = scmp.ne.s32.totalorder %s363, %s364
      %p378 = scmp.eq.s32.totalorder %s38, 1
      %p379 = por %p377, %p378
      %p381 = scmp.ne.s32.totalorder %s364, %s380
      %p382 = scmp.eq.s32.totalorder %s38, 0
      %p383 = por %p381, %p382
      %p384 = scmp.le.s32.totalorder 1, %s32
      %p385 = scmp.lt.s32.totalorder %s32, 3
      %p386 = pnand %p384, %p385
      %p387 = pneg %p386
      // Predicated region
      $region9: #{tpu_custom_call.1} parent=5 // pred_check
        _
      $region10: #{tpu_custom_call.1} parent=5 // pred_check_branch
        %389 = sbr.rel (%p386) target = $region12
      $region11: #{tpu_custom_call.1} parent=5 // pred_region
        %s390 = ssub.s32 %s32, 1
        // Predicated region
        $region13: #{tpu_custom_call.1} parent=11 // pred_check
          %p391 = pneg %p117
        $region14: #{tpu_custom_call.1} parent=11 // pred_check_branch
          %393 = sbr.rel (%p391) target = $region16
        $region15: #{tpu_custom_call.1} parent=11 // pred_region
          _
        $region16: #{tpu_custom_call.1} parent=11 // pred_fallthru
          _
        // Predicated region
        $region17: #{tpu_custom_call.1} parent=11 // pred_check
          %p394 = pneg %p138
        $region18: #{tpu_custom_call.1} parent=11 // pred_check_branch
          %396 = sbr.rel (%p394) target = $region20
        $region19: #{tpu_custom_call.1} parent=11 // pred_region
          _
        $region20: #{tpu_custom_call.1} parent=11 // pred_fallthru
          _
        // Predicated region
        $region21: #{tpu_custom_call.1} parent=11 // pred_check
          %p397 = pneg %p159
        $region22: #{tpu_custom_call.1} parent=11 // pred_check_branch
          %399 = sbr.rel (%p397) target = $region24
        $region23: #{tpu_custom_call.1} parent=11 // pred_region
          %s401 = ssub.s32 256, 256
          %402 = vsyncadd [#allocation7], %s401
          %s403 = sshll.u32 [#allocation8], 4
          %s404 = int_to_ptr.vmem [resolvable:$true] %s403
          %409 = dma.hbm_to_vmem [thread:$0]  %s4, 256, %s404, [#allocation7], 64, 64, 4
        $region24: #{tpu_custom_call.1} parent=11 // pred_fallthru
          _
        // Predicated region
        $region25: #{tpu_custom_call.1} parent=11 // pred_check
          %p410 = pneg %p180
        $region26: #{tpu_custom_call.1} parent=11 // pred_check_branch
          %412 = sbr.rel (%p410) target = $region28
        $region27: #{tpu_custom_call.1} parent=11 // pred_region
          %s414 = ssub.s32 16, 16
          %415 = vsyncadd [#allocation10], %s414
          %s417 = sshll.u32 [#allocation9], 4
          %s418 = int_to_ptr.vmem [resolvable:$true] %s417
          %420 = dma.hbm_to_vmem [thread:$0]  %s5, 16, %s418, [#allocation10]
        $region28: #{tpu_custom_call.1} parent=11 // pred_fallthru
          _
        // Predicated region
        $region29: #{tpu_custom_call.1} parent=11 // pred_check
          %p421 = pneg %p201
        $region30: #{tpu_custom_call.1} parent=11 // pred_check_branch
          %423 = sbr.rel (%p421) target = $region32
        $region31: #{tpu_custom_call.1} parent=11 // pred_region
          %s425 = ssub.s32 256, 256
          %426 = vsyncadd [#allocation10], %s425
          %s427 = sshll.u32 [#allocation11], 4
          %s428 = int_to_ptr.vmem [resolvable:$true] %s427
          %433 = dma.hbm_to_vmem [thread:$0]  %s6, 256, %s428, [#allocation10], 64, 64, 4
        $region32: #{tpu_custom_call.1} parent=11 // pred_fallthru
          _
        // Predicated region
        $region33: #{tpu_custom_call.1} parent=11 // pred_check
          %p434 = pneg %p222
        $region34: #{tpu_custom_call.1} parent=11 // pred_check_branch
          %436 = sbr.rel (%p434) target = $region36
        $region35: #{tpu_custom_call.1} parent=11 // pred_region
          %s438 = ssub.s32 16, 16
          %439 = vsyncadd [#allocation13], %s438
          %s441 = sshll.u32 [#allocation12], 4
          %s442 = int_to_ptr.vmem [resolvable:$true] %s441
          %444 = dma.hbm_to_vmem [thread:$0]  %s7, 16, %s442, [#allocation13]
        $region36: #{tpu_custom_call.1} parent=11 // pred_fallthru
          _
        // Predicated region
        $region37: #{tpu_custom_call.1} parent=11 // pred_check
          %p445 = pneg %p243
        $region38: #{tpu_custom_call.1} parent=11 // pred_check_branch
          %447 = sbr.rel (%p445) target = $region40
        $region39: #{tpu_custom_call.1} parent=11 // pred_region
          %s449 = ssub.s32 16, 16
          %450 = vsyncadd [#allocation13], %s449
          %s452 = sshll.u32 [#allocation14], 4
          %s453 = int_to_ptr.vmem [resolvable:$true] %s452
          %455 = dma.hbm_to_vmem [thread:$0]  %s8, 16, %s453, [#allocation13]
        $region40: #{tpu_custom_call.1} parent=11 // pred_fallthru
          _
        // Predicated region
        $region41: #{tpu_custom_call.1} parent=11 // pred_check
          %p456 = pneg %p264
        $region42: #{tpu_custom_call.1} parent=11 // pred_check_branch
          %458 = sbr.rel (%p456) target = $region44
        $region43: #{tpu_custom_call.1} parent=11 // pred_region
          %s460 = ssub.s32 16, 16
          %461 = vsyncadd [#allocation16], %s460
          %s463 = sshll.u32 [#allocation15], 4
          %s464 = int_to_ptr.vmem [resolvable:$true] %s463
          %466 = dma.hbm_to_vmem [thread:$0]  %s9, 16, %s464, [#allocation16]
        $region44: #{tpu_custom_call.1} parent=11 // pred_fallthru
          _
        // Predicated region
        $region45: #{tpu_custom_call.1} parent=11 // pred_check
          %p467 = pneg %p285
        $region46: #{tpu_custom_call.1} parent=11 // pred_check_branch
          %469 = sbr.rel (%p467) target = $region48
        $region47: #{tpu_custom_call.1} parent=11 // pred_region
          _
        $region48: #{tpu_custom_call.1} parent=11 // pred_fallthru
          _
        // Predicated region
        $region49: #{tpu_custom_call.1} parent=11 // pred_check
          %p470 = pneg %p306
        $region50: #{tpu_custom_call.1} parent=11 // pred_check_branch
          %472 = sbr.rel (%p470) target = $region52
        $region51: #{tpu_custom_call.1} parent=11 // pred_region
          _
        $region52: #{tpu_custom_call.1} parent=11 // pred_fallthru
          _
        // Predicated region
        $region53: #{tpu_custom_call.1} parent=11 // pred_check
          %p473 = pneg %p327
        $region54: #{tpu_custom_call.1} parent=11 // pred_check_branch
          %475 = sbr.rel (%p473) target = $region56
        $region55: #{tpu_custom_call.1} parent=11 // pred_region
          %s477 = ssub.s32 256, 256
          %478 = vsyncadd [#allocation16], %s477
          %s479 = sshll.u32 [#allocation17], 4
          %s480 = int_to_ptr.vmem [resolvable:$true] %s479
          %485 = dma.hbm_to_vmem [thread:$0]  %s12, 256, %s480, [#allocation16], 64, 64, 4
        $region56: #{tpu_custom_call.1} parent=11 // pred_fallthru
          _
        // Predicated region
        $region57: #{tpu_custom_call.1} parent=11 // pred_check
          %p486 = pneg %p348
        $region58: #{tpu_custom_call.1} parent=11 // pred_check_branch
          %488 = sbr.rel (%p486) target = $region60
        $region59: #{tpu_custom_call.1} parent=11 // pred_region
          _
        $region60: #{tpu_custom_call.1} parent=11 // pred_fallthru
          _
      $region12: #{tpu_custom_call.1} parent=5 // pred_fallthru
        _
      %p489 = scmp.lt.s32.totalorder %s32, 2
      // Predicated region
      $region61: #{tpu_custom_call.1} parent=5 // pred_check
        %p490 = pneg %p489
      $region62: #{tpu_custom_call.1} parent=5 // pred_check_branch
        %492 = sbr.rel (%p490) target = $region64
      $region63: #{tpu_custom_call.1} parent=5 // pred_region
        // Predicated region
        $region65: #{tpu_custom_call.1} parent=63 // pred_check
          %p493 = pneg %p64
        $region66: #{tpu_custom_call.1} parent=63 // pred_check_branch
          %495 = sbr.rel (%p493) target = $region68
        $region67: #{tpu_custom_call.1} parent=63 // pred_region
          %s496 = sand.u32 %s54, 1
          %s497 = scalar_lea.sflag [#allocation4], %s496
          %s498 = sand.u32 %s54, 1
          %s499 = smul.addr %s498, 8
          %s500 = scalar_lea.vmem [#allocation3], %s499
          %s502 = ssub.s32 128, 128
          %503 = vsyncadd %s497, %s502
          %s504 = smul.addr %s39, 128
          %s505 = scalar_lea.hbm %s0, %s504
          %s507 = sshll.u32 %s500, 4
          %s508 = int_to_ptr.vmem [resolvable:$true] %s507
          %510 = dma.hbm_to_vmem [thread:$0]  %s505, 128, %s508, %s497
        $region68: #{tpu_custom_call.1} parent=63 // pred_fallthru
          _
        // Predicated region
        $region69: #{tpu_custom_call.1} parent=63 // pred_check
          %p511 = pneg %p90
        $region70: #{tpu_custom_call.1} parent=63 // pred_check_branch
          %513 = sbr.rel (%p511) target = $region72
        $region71: #{tpu_custom_call.1} parent=63 // pred_region
          %s514 = sand.u32 %s32, 1
          %s515 = scalar_lea.sflag [#allocation7], %s514
          %s516 = sand.u32 %s80, 1
          %s517 = scalar_lea.vmem [#allocation6], %s516
          %s519 = ssub.s32 16, 16
          %520 = vsyncadd %s515, %s519
          %s521 = smul.addr %s39, 16
          %s522 = scalar_lea.hbm %s1, %s521
          %s524 = sshll.u32 %s517, 4
          %s525 = int_to_ptr.vmem [resolvable:$true] %s524
          %527 = dma.hbm_to_vmem [thread:$0]  %s522, 16, %s525, %s515
        $region72: #{tpu_custom_call.1} parent=63 // pred_fallthru
          _
      $region64: #{tpu_custom_call.1} parent=5 // pred_fallthru
        _
      %p528 = scmp.le.s32.totalorder 1, %s32
      %p529 = scmp.lt.s32.totalorder %s32, 3
      %p530 = pnand %p528, %p529
      %p531 = pneg %p530
      // Predicated region
      $region73: #{tpu_custom_call.1} parent=5 // pred_check
        _
      $region74: #{tpu_custom_call.1} parent=5 // pred_check_branch
        %533 = sbr.rel (%p530) target = $region76
      $region75: #{tpu_custom_call.1} parent=5 // pred_region
        %s534 = ssub.s32 %s32, 1
        %s535 = sand.u32 %s57, 1
        %s536 = scalar_lea.sflag [#allocation4], %s535
        %s537 = sand.u32 %s57, 1
        %s538 = smul.addr %s537, 8
        %s539 = scalar_lea.vmem [#allocation3], %s538
        // Predicated region
        $region77: #{tpu_custom_call.1} parent=75 // pred_check
          %p540 = pneg %p70
        $region78: #{tpu_custom_call.1} parent=75 // pred_check_branch
          %542 = sbr.rel (%p540) target = $region80
        $region79: #{tpu_custom_call.1} parent=75 // pred_region
          %543 = dma.done %s536, 128
        $region80: #{tpu_custom_call.1} parent=75 // pred_fallthru
          _
        %s544 = sand.u32 %s37, 1
        %s545 = scalar_lea.sflag [#allocation7], %s544
        %s546 = sand.u32 %s83, 1
        %s547 = scalar_lea.vmem [#allocation6], %s546
        // Predicated region
        $region81: #{tpu_custom_call.1} parent=75 // pred_check
          %p548 = pneg %p96
        $region82: #{tpu_custom_call.1} parent=75 // pred_check_branch
          %550 = sbr.rel (%p548) target = $region84
        $region83: #{tpu_custom_call.1} parent=75 // pred_region
          %551 = dma.done %s545, 16
        $region84: #{tpu_custom_call.1} parent=75 // pred_fallthru
          _
        // Predicated region
        $region85: #{tpu_custom_call.1} parent=75 // pred_check
          %p552 = pneg %p159
        $region86: #{tpu_custom_call.1} parent=75 // pred_check_branch
          %554 = sbr.rel (%p552) target = $region88
        $region87: #{tpu_custom_call.1} parent=75 // pred_region
          %555 = dma.done [#allocation7], 256
        $region88: #{tpu_custom_call.1} parent=75 // pred_fallthru
          _
        // Predicated region
        $region89: #{tpu_custom_call.1} parent=75 // pred_check
          %p556 = pneg %p180
        $region90: #{tpu_custom_call.1} parent=75 // pred_check_branch
          %558 = sbr.rel (%p556) target = $region92
        $region91: #{tpu_custom_call.1} parent=75 // pred_region
          %559 = dma.done [#allocation10], 16
        $region92: #{tpu_custom_call.1} parent=75 // pred_fallthru
          _
        // Predicated region
        $region93: #{tpu_custom_call.1} parent=75 // pred_check
          %p560 = pneg %p201
        $region94: #{tpu_custom_call.1} parent=75 // pred_check_branch
          %562 = sbr.rel (%p560) target = $region96
        $region95: #{tpu_custom_call.1} parent=75 // pred_region
          %563 = dma.done [#allocation10], 256
        $region96: #{tpu_custom_call.1} parent=75 // pred_fallthru
          _
        // Predicated region
        $region97: #{tpu_custom_call.1} parent=75 // pred_check
          %p564 = pneg %p222
        $region98: #{tpu_custom_call.1} parent=75 // pred_check_branch
          %566 = sbr.rel (%p564) target = $region100
        $region99: #{tpu_custom_call.1} parent=75 // pred_region
          %567 = dma.done [#allocation13], 16
        $region100: #{tpu_custom_call.1} parent=75 // pred_fallthru
          _
        // Predicated region
        $region101: #{tpu_custom_call.1} parent=75 // pred_check
          %p568 = pneg %p243
        $region102: #{tpu_custom_call.1} parent=75 // pred_check_branch
          %570 = sbr.rel (%p568) target = $region104
        $region103: #{tpu_custom_call.1} parent=75 // pred_region
          %571 = dma.done [#allocation13], 16
        $region104: #{tpu_custom_call.1} parent=75 // pred_fallthru
          _
        // Predicated region
        $region105: #{tpu_custom_call.1} parent=75 // pred_check
          %p572 = pneg %p264
        $region106: #{tpu_custom_call.1} parent=75 // pred_check_branch
          %574 = sbr.rel (%p572) target = $region108
        $region107: #{tpu_custom_call.1} parent=75 // pred_region
          %575 = dma.done [#allocation16], 16
        $region108: #{tpu_custom_call.1} parent=75 // pred_fallthru
          _
        // Predicated region
        $region109: #{tpu_custom_call.1} parent=75 // pred_check
          %p576 = pneg %p327
        $region110: #{tpu_custom_call.1} parent=75 // pred_check_branch
          %578 = sbr.rel (%p576) target = $region112
        $region111: #{tpu_custom_call.1} parent=75 // pred_region
          %579 = dma.done [#allocation16], 256
        $region112: #{tpu_custom_call.1} parent=75 // pred_fallthru
          _
        %s580 = sand.u32 %s57, 1
        %s581 = scalar_lea.sflag [#allocation4], %s580
        %s582 = sand.u32 %s57, 1
        %s583 = smul.addr %s582, 8
        %s584 = scalar_lea.vmem [#allocation3], %s583
        %p585 = pneg %p70
        %p586 = pneg %p67
        %s587 = sand.u32 %s37, 1
        %s588 = scalar_lea.sflag [#allocation7], %s587
        %s589 = sand.u32 %s83, 1
        %s590 = scalar_lea.vmem [#allocation6], %s589
        %p591 = pneg %p96
        %p592 = pneg %p93
        %p593 = pneg %p117
        %p594 = pneg %p114
        %p595 = pneg %p138
        %p596 = pneg %p135
        %p597 = pneg %p159
        %p598 = pneg %p156
        %p599 = pneg %p180
        %p600 = pneg %p177
        %p601 = pneg %p201
        %p602 = pneg %p198
        %p603 = pneg %p222
        %p604 = pneg %p219
        %p605 = pneg %p243
        %p606 = pneg %p240
        %p607 = pneg %p264
        %p608 = pneg %p261
        %p609 = pneg %p285
        %p610 = pneg %p282
        %p611 = pneg %p306
        %p612 = pneg %p303
        %p613 = pneg %p327
        %p614 = pneg %p324
        %p615 = pneg %p348
        %p616 = pneg %p345
        %p617 = pneg %p376
        %p618 = pneg %p373
        %s619 = sand.u32 %s363, 1
        %s620 = scalar_lea.sflag [#allocation5], %s619
        %s621 = sand.u32 %s363, 1
        %s622 = smul.addr %s621, 8
        %s623 = scalar_lea.vmem [#allocation18], %s622
        %v625 = vld [vmem:[%s2] sm:$0x1]
        %v626 = vld [vmem:[%s3] sm:$0x1]
        %p627 = scmp.eq.s32.totalorder %s42, 0
        // Predicated region
        $region113: #{tpu_custom_call.1} parent=75 // pred_check
          %p628 = pneg %p627
        $region114: #{tpu_custom_call.1} parent=75 // pred_check_branch
          %630 = sbr.rel (%p628) target = $region116
        $region115: #{tpu_custom_call.1} parent=75 // pred_region
          %v631 = vld [vmem:[%s539] sm:$0xff]
          %vm632 = vcmask 261120
          %v633 = vsel %vm632, %v631, 0.0
          %634 = vadd.xlane.f32.xlu0 %v633
          %v635 = vpop.xlane.xlu0 %634
          %v636 = vrcp.pop 32.0
          %v637 = vmul.f32 %v635, %v636
          %v638 = vsub.f32 %v631, %v637
          %v639 = vmul.f32 %v638, %v638
          %v640 = vsel %vm632, %v639, 0.0
          %641 = vadd.xlane.f32.xlu0 %v640
          %v642 = vpop.xlane.xlu0 %641
          %v643 = vmul.f32 %v642, %v636
          %v644 = vadd.f32 %v643, 1e-06
          %v645 = vrsqrt.pop %v644
          %v646 = vmul.f32 %v638, %v645
          %v648 = vlaneseq
          %v649 = vshrl.u32 %v648, 7
          %v650 = vsub.s32 0, %v649
          %v651 = vrot.slane %v625, %v650
          %v653 = vmul.f32 %v646, %v651
          %v655 = vlaneseq
          %v656 = vshrl.u32 %v655, 7
          %v657 = vsub.s32 0, %v656
          %v658 = vrot.slane %v626, %v657
          %v660 = vadd.f32 %v653, %v658
          %v661 = vpack.c.bf16 %v660, %v660
          %v662 = vld [vmem:[#allocation11] sm:$0xf]
          %v663 = vld [vmem:[#allocation11 + $0x4] sm:$0xf]
          %v664 = vld [vmem:[#allocation11 + $0x8] sm:$0xf]
          %v665 = vld [vmem:[#allocation11 + $0xc] sm:$0xf]
          %v666 = vld [vmem:[#allocation12] sm:$0x1]
          %v668 = vlaneseq
          %v669 = vshrl.u32 %v668, 7
          %v670 = vsub.s32 0, %v669
          %v671 = vrot.slane %v666, %v670
          %v677 = vunpack.c.l.b16 %v662
          %v678 = vunpack.c.l.b16 %v663
          %v679 = vunpack.c.l.b16 %v664
          %v680 = vunpack.c.l.b16 %v665
          %v681 = vpack.c.b16 %v678, %v677
          %v682 = vpack.c.b16 %v680, %v679
          %v686 = vsel %vm632, %v661, 0
          %688 = vmatprep.subr.bf16.mxu0 0
          %689 = vmatpush1.bf16.msra.mxu0 0
          %690 = vmatprep.subr.bf16.mxu0 0
          %691 = vmatpush1.bf16.msra.mxu0 0
          %692 = vmatprep.subr.bf16.mxu0 0
          %693 = vmatpush1.bf16.msra.mxu0 0
          %694 = vmatprep.subr.bf16.mxu0 0
          %695 = vmatpush1.bf16.msra.mxu0 0
          %696 = vmatprep.subr.bf16.mxu0 0
          %697 = vmatpush1.bf16.msra.mxu0 0
          %698 = vmatprep.subr.bf16.mxu0 0
          %699 = vmatpush1.bf16.msra.mxu0 0
          %700 = vmatprep.subr.bf16.mxu0 0
          %701 = vmatpush1.bf16.msra.mxu0 %v682
          %702 = vmatprep.subr.bf16.mxu0 0
          %703 = vmatpush1.bf16.msra.mxu0 %v681
          %704 = vmatprep.subr.bf16.mxu0 0
          %705 = vmatpush2.bf16.msra.mxu0 0
          %706 = vmatprep.subr.bf16.mxu0 0
          %707 = vmatpush2.bf16.msra.mxu0 0
          %708 = vmatprep.subr.bf16.mxu0 0
          %709 = vmatpush2.bf16.msra.mxu0 0
          %710 = vmatprep.subr.bf16.mxu0 0
          %711 = vmatpush2.bf16.msra.mxu0 0
          %712 = vmatprep.subr.bf16.mxu0 0
          %713 = vmatpush2.bf16.msra.mxu0 0
          %714 = vmatprep.subr.bf16.mxu0 0
          %715 = vmatpush2.bf16.msra.mxu0 0
          %716 = vmatprep.subr.bf16.mxu0 0
          %717 = vmatpush2.bf16.msra.mxu0 0
          %718 = vmatprep.subr.bf16.mxu0 0
          %719 = vmatpush2.bf16.msra.mxu0 0
          %720 = vmatprep.mubr.bf16.mxu0 0
          %721 = vmatmul.mubr.bf16.gmra.mxu0 %v686
          %v722 = vpop.f32.mrf.mxu0
          %v723 = vadd.f32 %v671, %v722
          %v724 = vpop.f32.mrf.mxu0
          %v725 = vpop.f32.mrf.mxu0
          %v726 = vpop.f32.mrf.mxu0
          %727 = vdwg.mxu0
          %v728 = vpack.c.bf16 %v723, %v723
          %vm729 = vcmask 519168
          %730 = vst.msk [vmem:[#allocation2] sm:$0xf] %vm729, %v728
        $region116: #{tpu_custom_call.1} parent=75 // pred_fallthru
          _
        %s731 = smul.u32 %s42, 8
        %s732 = scalar_lea.vmem %s539, %s731 [#allocation3]
        %v733 = vld [vmem:[%s732] sm:$0xff]
        %vm734 = vcmask 261120
        %v735 = vsel %vm734, %v733, 0.0
        %736 = vadd.xlane.f32.xlu0 %v735
        %v737 = vpop.xlane.xlu0 %736
        %v738 = vrcp.pop 32.0
        %v739 = vmul.f32 %v737, %v738
        %v740 = vsub.f32 %v733, %v739
        %v741 = vmul.f32 %v740, %v740
        %v742 = vsel %vm734, %v741, 0.0
        %743 = vadd.xlane.f32.xlu0 %v742
        %v744 = vpop.xlane.xlu0 %743
        %v745 = vmul.f32 %v744, %v738
        %v746 = vadd.f32 %v745, 1e-06
        %v747 = vrsqrt.pop %v746
        %v748 = vmul.f32 %v740, %v747
        %v750 = vlaneseq
        %v751 = vshrl.u32 %v750, 7
        %v752 = vsub.s32 0, %v751
        %v753 = vrot.slane %v625, %v752
        %v755 = vmul.f32 %v748, %v753
        %v757 = vlaneseq
        %v758 = vshrl.u32 %v757, 7
        %v759 = vsub.s32 0, %v758
        %v760 = vrot.slane %v626, %v759
        %v762 = vadd.f32 %v755, %v760
        %v763 = vpack.c.bf16 %v762, %v762
        %v764 = vld [vmem:[#allocation8] sm:$0xf]
        %v765 = vld [vmem:[#allocation8 + $0x4] sm:$0xf]
        %v766 = vld [vmem:[#allocation8 + $0x8] sm:$0xf]
        %v767 = vld [vmem:[#allocation8 + $0xc] sm:$0xf]
        %v768 = vld [vmem:[#allocation9] sm:$0x1]
        %v770 = vlaneseq
        %v771 = vshrl.u32 %v770, 7
        %v772 = vsub.s32 0, %v771
        %v773 = vrot.slane %v768, %v772
        %v779 = vunpack.c.l.b16 %v764
        %v780 = vunpack.c.l.b16 %v765
        %v781 = vunpack.c.l.b16 %v766
        %v782 = vunpack.c.l.b16 %v767
        %v783 = vpack.c.b16 %v780, %v779
        %v784 = vpack.c.b16 %v782, %v781
        %v788 = vsel %vm734, %v763, 0
        %790 = vmatprep.subr.bf16.mxu0 0
        %791 = vmatpush1.bf16.msra.mxu0 0
        %792 = vmatprep.subr.bf16.mxu0 0
        %793 = vmatpush1.bf16.msra.mxu0 0
        %794 = vmatprep.subr.bf16.mxu0 0
        %795 = vmatpush1.bf16.msra.mxu0 0
        %796 = vmatprep.subr.bf16.mxu0 0
        %797 = vmatpush1.bf16.msra.mxu0 0
        %798 = vmatprep.subr.bf16.mxu0 0
        %799 = vmatpush1.bf16.msra.mxu0 0
        %800 = vmatprep.subr.bf16.mxu0 0
        %801 = vmatpush1.bf16.msra.mxu0 0
        %802 = vmatprep.subr.bf16.mxu0 0
        %803 = vmatpush1.bf16.msra.mxu0 %v784
        %804 = vmatprep.subr.bf16.mxu0 0
        %805 = vmatpush1.bf16.msra.mxu0 %v783
        %806 = vmatprep.subr.bf16.mxu0 0
        %807 = vmatpush2.bf16.msra.mxu0 0
        %808 = vmatprep.subr.bf16.mxu0 0
        %809 = vmatpush2.bf16.msra.mxu0 0
        %810 = vmatprep.subr.bf16.mxu0 0
        %811 = vmatpush2.bf16.msra.mxu0 0
        %812 = vmatprep.subr.bf16.mxu0 0
        %813 = vmatpush2.bf16.msra.mxu0 0
        %814 = vmatprep.subr.bf16.mxu0 0
        %815 = vmatpush2.bf16.msra.mxu0 0
        %816 = vmatprep.subr.bf16.mxu0 0
        %817 = vmatpush2.bf16.msra.mxu0 0
        %818 = vmatprep.subr.bf16.mxu0 0
        %819 = vmatpush2.bf16.msra.mxu0 0
        %820 = vmatprep.subr.bf16.mxu0 0
        %821 = vmatpush2.bf16.msra.mxu0 0
        %822 = vmatprep.mubr.bf16.mxu0 0
        %823 = vmatmul.mubr.bf16.gmra.mxu0 %v788
        %v824 = vpop.f32.mrf.mxu0
        %v825 = vadd.f32 %v773, %v824
        %v826 = vpop.f32.mrf.mxu0
        %v827 = vpop.f32.mrf.mxu0
        %v828 = vpop.f32.mrf.mxu0
        %829 = vdwg.mxu0
        %v830 = vpack.c.bf16 %v825, %v825
        %v831 = vld [vmem:[#allocation2] sm:$0xf]
        %833 = vrot.lane.b32.xlu0 %v830, 120
        %v834 = vpop.permute.xlu0 %833
        %835 = vrot.lane.b32.xlu0 %v830, 112
        %v836 = vpop.permute.xlu0 %835
        %837 = vrot.lane.b32.xlu0 %v830, 104
        %v838 = vpop.permute.xlu0 %837
        %840 = vrot.lane.b32.xlu0 %v831, 120
        %v841 = vpop.permute.xlu0 %840
        %842 = vrot.lane.b32.xlu0 %v831, 112
        %v843 = vpop.permute.xlu0 %842
        %844 = vrot.lane.b32.xlu0 %v831, 104
        %v845 = vpop.permute.xlu0 %844
        %v846 = vld [vmem:[%s547] sm:$0x1]
        %v848 = vlaneseq
        %v849 = vshrl.u32 %v848, 7
        %v850 = vsub.s32 0, %v849
        %v851 = vrot.slane %v846, %v850
        %vm853 = vcmask 64512
        %v855 = vsel %vm853, %v830, 0
        %v858 = vsel %vm853, %v831, 0
        %860 = vmatprep.subr.bf16.mxu0 0
        %861 = vmatpush1.bf16.xpose.msra.mxu0 0
        %862 = vmatprep.subr.bf16.mxu0 0
        %863 = vmatpush1.bf16.xpose.msra.mxu0 0
        %864 = vmatprep.subr.bf16.mxu0 0
        %865 = vmatpush1.bf16.xpose.msra.mxu0 0
        %866 = vmatprep.subr.bf16.mxu0 0
        %867 = vmatpush1.bf16.xpose.msra.mxu0 0
        %868 = vmatprep.subr.bf16.mxu0 0
        %869 = vmatpush1.bf16.xpose.msra.mxu0 0
        %870 = vmatprep.subr.bf16.mxu0 0
        %871 = vmatpush1.bf16.xpose.msra.mxu0 0
        %872 = vmatprep.subr.bf16.mxu0 0
        %873 = vmatpush1.bf16.xpose.msra.mxu0 0
        %874 = vmatprep.subr.bf16.mxu0 0
        %875 = vmatpush1.bf16.xpose.msra.mxu0 %v858
        %876 = vmatprep.subr.bf16.mxu0 0
        %877 = vmatpush2.bf16.xpose.msra.mxu0 0
        %878 = vmatprep.subr.bf16.mxu0 0
        %879 = vmatpush2.bf16.xpose.msra.mxu0 0
        %880 = vmatprep.subr.bf16.mxu0 0
        %881 = vmatpush2.bf16.xpose.msra.mxu0 0
        %882 = vmatprep.subr.bf16.mxu0 0
        %883 = vmatpush2.bf16.xpose.msra.mxu0 0
        %884 = vmatprep.subr.bf16.mxu0 0
        %885 = vmatpush2.bf16.xpose.msra.mxu0 0
        %886 = vmatprep.subr.bf16.mxu0 0
        %887 = vmatpush2.bf16.xpose.msra.mxu0 0
        %888 = vmatprep.subr.bf16.mxu0 0
        %889 = vmatpush2.bf16.xpose.msra.mxu0 0
        %890 = vmatprep.subr.bf16.mxu0 0
        %891 = vmatpush2.bf16.xpose.msra.mxu0 0
        %892 = vmatprep.mubr.bf16.mxu0 0
        %893 = vmatmul.mubr.bf16.gmra.mxu0 %v855
        %v894 = vpop.f32.mrf.mxu0
        %v895 = vadd.f32 %v851, %v894
        %v896 = vpop.f32.mrf.mxu0
        %v897 = vpop.f32.mrf.mxu0
        %v898 = vpop.f32.mrf.mxu0
        %899 = vdwg.mxu0
        %v901 = vsel %vm853, %v834, 0
        %v904 = vsel %vm853, %v841, 0
        %906 = vmatprep.subr.bf16.mxu0 0
        %907 = vmatpush1.bf16.xpose.msra.mxu0 0
        %908 = vmatprep.subr.bf16.mxu0 0
        %909 = vmatpush1.bf16.xpose.msra.mxu0 0
        %910 = vmatprep.subr.bf16.mxu0 0
        %911 = vmatpush1.bf16.xpose.msra.mxu0 0
        %912 = vmatprep.subr.bf16.mxu0 0
        %913 = vmatpush1.bf16.xpose.msra.mxu0 0
        %914 = vmatprep.subr.bf16.mxu0 0
        %915 = vmatpush1.bf16.xpose.msra.mxu0 0
        %916 = vmatprep.subr.bf16.mxu0 0
        %917 = vmatpush1.bf16.xpose.msra.mxu0 0
        %918 = vmatprep.subr.bf16.mxu0 0
        %919 = vmatpush1.bf16.xpose.msra.mxu0 0
        %920 = vmatprep.subr.bf16.mxu0 0
        %921 = vmatpush1.bf16.xpose.msra.mxu0 %v904
        %922 = vmatprep.subr.bf16.mxu0 0
        %923 = vmatpush2.bf16.xpose.msra.mxu0 0
        %924 = vmatprep.subr.bf16.mxu0 0
        %925 = vmatpush2.bf16.xpose.msra.mxu0 0
        %926 = vmatprep.subr.bf16.mxu0 0
        %927 = vmatpush2.bf16.xpose.msra.mxu0 0
        %928 = vmatprep.subr.bf16.mxu0 0
        %929 = vmatpush2.bf16.xpose.msra.mxu0 0
        %930 = vmatprep.subr.bf16.mxu0 0
        %931 = vmatpush2.bf16.xpose.msra.mxu0 0
        %932 = vmatprep.subr.bf16.mxu0 0
        %933 = vmatpush2.bf16.xpose.msra.mxu0 0
        %934 = vmatprep.subr.bf16.mxu0 0
        %935 = vmatpush2.bf16.xpose.msra.mxu0 0
        %936 = vmatprep.subr.bf16.mxu0 0
        %937 = vmatpush2.bf16.xpose.msra.mxu0 0
        %938 = vmatprep.mubr.bf16.mxu0 0
        %939 = vmatmul.mubr.bf16.gmra.mxu0 %v901
        %v940 = vpop.f32.mrf.mxu0
        %v941 = vadd.f32 %v851, %v940
        %v942 = vpop.f32.mrf.mxu0
        %v943 = vpop.f32.mrf.mxu0
        %v944 = vpop.f32.mrf.mxu0
        %945 = vdwg.mxu0
        %v947 = vsel %vm853, %v836, 0
        %v950 = vsel %vm853, %v843, 0
        %952 = vmatprep.subr.bf16.mxu0 0
        %953 = vmatpush1.bf16.xpose.msra.mxu0 0
        %954 = vmatprep.subr.bf16.mxu0 0
        %955 = vmatpush1.bf16.xpose.msra.mxu0 0
        %956 = vmatprep.subr.bf16.mxu0 0
        %957 = vmatpush1.bf16.xpose.msra.mxu0 0
        %958 = vmatprep.subr.bf16.mxu0 0
        %959 = vmatpush1.bf16.xpose.msra.mxu0 0
        %960 = vmatprep.subr.bf16.mxu0 0
        %961 = vmatpush1.bf16.xpose.msra.mxu0 0
        %962 = vmatprep.subr.bf16.mxu0 0
        %963 = vmatpush1.bf16.xpose.msra.mxu0 0
        %964 = vmatprep.subr.bf16.mxu0 0
        %965 = vmatpush1.bf16.xpose.msra.mxu0 0
        %966 = vmatprep.subr.bf16.mxu0 0
        %967 = vmatpush1.bf16.xpose.msra.mxu0 %v950
        %968 = vmatprep.subr.bf16.mxu0 0
        %969 = vmatpush2.bf16.xpose.msra.mxu0 0
        %970 = vmatprep.subr.bf16.mxu0 0
        %971 = vmatpush2.bf16.xpose.msra.mxu0 0
        %972 = vmatprep.subr.bf16.mxu0 0
        %973 = vmatpush2.bf16.xpose.msra.mxu0 0
        %974 = vmatprep.subr.bf16.mxu0 0
        %975 = vmatpush2.bf16.xpose.msra.mxu0 0
        %976 = vmatprep.subr.bf16.mxu0 0
        %977 = vmatpush2.bf16.xpose.msra.mxu0 0
        %978 = vmatprep.subr.bf16.mxu0 0
        %979 = vmatpush2.bf16.xpose.msra.mxu0 0
        %980 = vmatprep.subr.bf16.mxu0 0
        %981 = vmatpush2.bf16.xpose.msra.mxu0 0
        %982 = vmatprep.subr.bf16.mxu0 0
        %983 = vmatpush2.bf16.xpose.msra.mxu0 0
        %984 = vmatprep.mubr.bf16.mxu0 0
        %985 = vmatmul.mubr.bf16.gmra.mxu0 %v947
        %v986 = vpop.f32.mrf.mxu0
        %v987 = vadd.f32 %v851, %v986
        %v988 = vpop.f32.mrf.mxu0
        %v989 = vpop.f32.mrf.mxu0
        %v990 = vpop.f32.mrf.mxu0
        %991 = vdwg.mxu0
        %v993 = vsel %vm853, %v838, 0
        %v996 = vsel %vm853, %v845, 0
        %998 = vmatprep.subr.bf16.mxu0 0
        %999 = vmatpush1.bf16.xpose.msra.mxu0 0
        %1000 = vmatprep.subr.bf16.mxu0 0
        %1001 = vmatpush1.bf16.xpose.msra.mxu0 0
        %1002 = vmatprep.subr.bf16.mxu0 0
        %1003 = vmatpush1.bf16.xpose.msra.mxu0 0
        %1004 = vmatprep.subr.bf16.mxu0 0
        %1005 = vmatpush1.bf16.xpose.msra.mxu0 0
        %1006 = vmatprep.subr.bf16.mxu0 0
        %1007 = vmatpush1.bf16.xpose.msra.mxu0 0
        %1008 = vmatprep.subr.bf16.mxu0 0
        %1009 = vmatpush1.bf16.xpose.msra.mxu0 0
        %1010 = vmatprep.subr.bf16.mxu0 0
        %1011 = vmatpush1.bf16.xpose.msra.mxu0 0
        %1012 = vmatprep.subr.bf16.mxu0 0
        %1013 = vmatpush1.bf16.xpose.msra.mxu0 %v996
        %1014 = vmatprep.subr.bf16.mxu0 0
        %1015 = vmatpush2.bf16.xpose.msra.mxu0 0
        %1016 = vmatprep.subr.bf16.mxu0 0
        %1017 = vmatpush2.bf16.xpose.msra.mxu0 0
        %1018 = vmatprep.subr.bf16.mxu0 0
        %1019 = vmatpush2.bf16.xpose.msra.mxu0 0
        %1020 = vmatprep.subr.bf16.mxu0 0
        %1021 = vmatpush2.bf16.xpose.msra.mxu0 0
        %1022 = vmatprep.subr.bf16.mxu0 0
        %1023 = vmatpush2.bf16.xpose.msra.mxu0 0
        %1024 = vmatprep.subr.bf16.mxu0 0
        %1025 = vmatpush2.bf16.xpose.msra.mxu0 0
        %1026 = vmatprep.subr.bf16.mxu0 0
        %1027 = vmatpush2.bf16.xpose.msra.mxu0 0
        %1028 = vmatprep.subr.bf16.mxu0 0
        %1029 = vmatpush2.bf16.xpose.msra.mxu0 0
        %1030 = vmatprep.mubr.bf16.mxu0 0
        %1031 = vmatmul.mubr.bf16.gmra.mxu0 %v993
        %v1032 = vpop.f32.mrf.mxu0
        %v1033 = vadd.f32 %v851, %v1032
        %v1034 = vpop.f32.mrf.mxu0
        %v1035 = vpop.f32.mrf.mxu0
        %v1036 = vpop.f32.mrf.mxu0
        %1037 = vdwg.mxu0
        %v1038 = vsel %vm853, %v895, -inf
        %1039 = vmax.xlane.f32.xlu0 %v1038
        %v1040 = vpop.xlane.xlu0 %1039
        %v1041 = vsel %vm853, %v941, -inf
        %1042 = vmax.xlane.f32.xlu0 %v1041
        %v1043 = vpop.xlane.xlu0 %1042
        %v1044 = vsel %vm853, %v987, -inf
        %1045 = vmax.xlane.f32.xlu0 %v1044
        %v1046 = vpop.xlane.xlu0 %1045
        %v1047 = vsel %vm853, %v1033, -inf
        %1048 = vmax.xlane.f32.xlu0 %v1047
        %v1049 = vpop.xlane.xlu0 %1048
        %v1050 = vsub.f32 %v895, %v1040
        %v1051 = vsub.f32 %v941, %v1043
        %v1052 = vsub.f32 %v987, %v1046
        %v1053 = vsub.f32 %v1033, %v1049
        %v1054 = vmul.f32 %v1050, 1.442695
        %v1055 = vpow.pop %v1054
        %v1056 = vmul.f32 %v1051, 1.442695
        %v1057 = vpow.pop %v1056
        %v1058 = vmul.f32 %v1052, 1.442695
        %v1059 = vpow.pop %v1058
        %v1060 = vmul.f32 %v1053, 1.442695
        %v1061 = vpow.pop %v1060
        %v1062 = vsel %vm853, %v1055, 0.0
        %1063 = vadd.xlane.f32.xlu0 %v1062
        %v1064 = vpop.xlane.xlu0 %1063
        %v1065 = vsel %vm853, %v1057, 0.0
        %1066 = vadd.xlane.f32.xlu0 %v1065
        %v1067 = vpop.xlane.xlu0 %1066
        %v1068 = vsel %vm853, %v1059, 0.0
        %1069 = vadd.xlane.f32.xlu0 %v1068
        %v1070 = vpop.xlane.xlu0 %1069
        %v1071 = vsel %vm853, %v1061, 0.0
        %1072 = vadd.xlane.f32.xlu0 %v1071
        %v1073 = vpop.xlane.xlu0 %1072
        %v1074 = vrcp.pop %v1064
        %v1075 = vrcp.pop %v1067
        %v1076 = vrcp.pop %v1070
        %v1077 = vrcp.pop %v1073
        %v1078 = vmul.f32 %v1055, %v1074
        %v1079 = vmul.f32 %v1057, %v1075
        %v1080 = vmul.f32 %v1059, %v1076
        %v1081 = vmul.f32 %v1061, %v1077
        %v1082 = vpack.c.bf16 %v1078, %v1078
        %v1083 = vpack.c.bf16 %v1079, %v1079
        %v1084 = vpack.c.bf16 %v1080, %v1080
        %v1085 = vpack.c.bf16 %v1081, %v1081
        %v1086 = vunpack.c.l.b16 %v831
        %v1087 = vpack.c.b16 %v1086, %v1086
        %1088 = vrot.lane.b32.xlu0 %v1087, 96
        %v1089 = vpop.permute.xlu0 %1088
        %v1091 = vsel %vm853, %v1082, 0
        %vm1093 = vcmask 1043456
        %v1095 = vsel %vm1093, %v1089, 0
        %1097 = vmatprep.subr.bf16.mxu0 0
        %1098 = vmatpush1.bf16.msra.mxu0 0
        %1099 = vmatprep.subr.bf16.mxu0 0
        %1100 = vmatpush1.bf16.msra.mxu0 0
        %1101 = vmatprep.subr.bf16.mxu0 0
        %1102 = vmatpush1.bf16.msra.mxu0 0
        %1103 = vmatprep.subr.bf16.mxu0 0
        %1104 = vmatpush1.bf16.msra.mxu0 0
        %1105 = vmatprep.subr.bf16.mxu0 0
        %1106 = vmatpush1.bf16.msra.mxu0 0
        %1107 = vmatprep.subr.bf16.mxu0 0
        %1108 = vmatpush1.bf16.msra.mxu0 0
        %1109 = vmatprep.subr.bf16.mxu0 0
        %1110 = vmatpush1.bf16.msra.mxu0 0
        %1111 = vmatprep.subr.bf16.mxu0 0
        %1112 = vmatpush1.bf16.msra.mxu0 %v1095
        %1113 = vmatprep.subr.bf16.mxu0 0
        %1114 = vmatpush2.bf16.msra.mxu0 0
        %1115 = vmatprep.subr.bf16.mxu0 0
        %1116 = vmatpush2.bf16.msra.mxu0 0
        %1117 = vmatprep.subr.bf16.mxu0 0
        %1118 = vmatpush2.bf16.msra.mxu0 0
        %1119 = vmatprep.subr.bf16.mxu0 0
        %1120 = vmatpush2.bf16.msra.mxu0 0
        %1121 = vmatprep.subr.bf16.mxu0 0
        %1122 = vmatpush2.bf16.msra.mxu0 0
        %1123 = vmatprep.subr.bf16.mxu0 0
        %1124 = vmatpush2.bf16.msra.mxu0 0
        %1125 = vmatprep.subr.bf16.mxu0 0
        %1126 = vmatpush2.bf16.msra.mxu0 0
        %1127 = vmatprep.subr.bf16.mxu0 0
        %1128 = vmatpush2.bf16.msra.mxu0 0
        %1129 = vmatprep.mubr.bf16.mxu0 0
        %1130 = vmatmul.mubr.bf16.gmra.mxu0 %v1091
        %v1131 = vpop.f32.mrf.mxu0
        %v1132 = vadd.f32 0.0, %v1131
        %v1133 = vpop.f32.mrf.mxu0
        %v1134 = vpop.f32.mrf.mxu0
        %v1135 = vpop.f32.mrf.mxu0
        %1136 = vdwg.mxu0
        %v1137 = vunpack.c.l.b16 %v841
        %v1138 = vpack.c.b16 %v1137, %v1137
        %1139 = vrot.lane.b32.xlu0 %v1138, 96
        %v1140 = vpop.permute.xlu0 %1139
        %v1142 = vsel %vm853, %v1083, 0
        %v1145 = vsel %vm1093, %v1140, 0
        %1147 = vmatprep.subr.bf16.mxu0 0
        %1148 = vmatpush1.bf16.msra.mxu0 0
        %1149 = vmatprep.subr.bf16.mxu0 0
        %1150 = vmatpush1.bf16.msra.mxu0 0
        %1151 = vmatprep.subr.bf16.mxu0 0
        %1152 = vmatpush1.bf16.msra.mxu0 0
        %1153 = vmatprep.subr.bf16.mxu0 0
        %1154 = vmatpush1.bf16.msra.mxu0 0
        %1155 = vmatprep.subr.bf16.mxu0 0
        %1156 = vmatpush1.bf16.msra.mxu0 0
        %1157 = vmatprep.subr.bf16.mxu0 0
        %1158 = vmatpush1.bf16.msra.mxu0 0
        %1159 = vmatprep.subr.bf16.mxu0 0
        %1160 = vmatpush1.bf16.msra.mxu0 0
        %1161 = vmatprep.subr.bf16.mxu0 0
        %1162 = vmatpush1.bf16.msra.mxu0 %v1145
        %1163 = vmatprep.subr.bf16.mxu0 0
        %1164 = vmatpush2.bf16.msra.mxu0 0
        %1165 = vmatprep.subr.bf16.mxu0 0
        %1166 = vmatpush2.bf16.msra.mxu0 0
        %1167 = vmatprep.subr.bf16.mxu0 0
        %1168 = vmatpush2.bf16.msra.mxu0 0
        %1169 = vmatprep.subr.bf16.mxu0 0
        %1170 = vmatpush2.bf16.msra.mxu0 0
        %1171 = vmatprep.subr.bf16.mxu0 0
        %1172 = vmatpush2.bf16.msra.mxu0 0
        %1173 = vmatprep.subr.bf16.mxu0 0
        %1174 = vmatpush2.bf16.msra.mxu0 0
        %1175 = vmatprep.subr.bf16.mxu0 0
        %1176 = vmatpush2.bf16.msra.mxu0 0
        %1177 = vmatprep.subr.bf16.mxu0 0
        %1178 = vmatpush2.bf16.msra.mxu0 0
        %1179 = vmatprep.mubr.bf16.mxu0 0
        %1180 = vmatmul.mubr.bf16.gmra.mxu0 %v1142
        %v1181 = vpop.f32.mrf.mxu0
        %v1182 = vadd.f32 0.0, %v1181
        %v1183 = vpop.f32.mrf.mxu0
        %v1184 = vpop.f32.mrf.mxu0
        %v1185 = vpop.f32.mrf.mxu0
        %1186 = vdwg.mxu0
        %v1187 = vunpack.c.l.b16 %v843
        %v1188 = vpack.c.b16 %v1187, %v1187
        %1189 = vrot.lane.b32.xlu0 %v1188, 96
        %v1190 = vpop.permute.xlu0 %1189
        %v1192 = vsel %vm853, %v1084, 0
        %v1195 = vsel %vm1093, %v1190, 0
        %1197 = vmatprep.subr.bf16.mxu0 0
        %1198 = vmatpush1.bf16.msra.mxu0 0
        %1199 = vmatprep.subr.bf16.mxu0 0
        %1200 = vmatpush1.bf16.msra.mxu0 0
        %1201 = vmatprep.subr.bf16.mxu0 0
        %1202 = vmatpush1.bf16.msra.mxu0 0
        %1203 = vmatprep.subr.bf16.mxu0 0
        %1204 = vmatpush1.bf16.msra.mxu0 0
        %1205 = vmatprep.subr.bf16.mxu0 0
        %1206 = vmatpush1.bf16.msra.mxu0 0
        %1207 = vmatprep.subr.bf16.mxu0 0
        %1208 = vmatpush1.bf16.msra.mxu0 0
        %1209 = vmatprep.subr.bf16.mxu0 0
        %1210 = vmatpush1.bf16.msra.mxu0 0
        %1211 = vmatprep.subr.bf16.mxu0 0
        %1212 = vmatpush1.bf16.msra.mxu0 %v1195
        %1213 = vmatprep.subr.bf16.mxu0 0
        %1214 = vmatpush2.bf16.msra.mxu0 0
        %1215 = vmatprep.subr.bf16.mxu0 0
        %1216 = vmatpush2.bf16.msra.mxu0 0
        %1217 = vmatprep.subr.bf16.mxu0 0
        %1218 = vmatpush2.bf16.msra.mxu0 0
        %1219 = vmatprep.subr.bf16.mxu0 0
        %1220 = vmatpush2.bf16.msra.mxu0 0
        %1221 = vmatprep.subr.bf16.mxu0 0
        %1222 = vmatpush2.bf16.msra.mxu0 0
        %1223 = vmatprep.subr.bf16.mxu0 0
        %1224 = vmatpush2.bf16.msra.mxu0 0
        %1225 = vmatprep.subr.bf16.mxu0 0
        %1226 = vmatpush2.bf16.msra.mxu0 0
        %1227 = vmatprep.subr.bf16.mxu0 0
        %1228 = vmatpush2.bf16.msra.mxu0 0
        %1229 = vmatprep.mubr.bf16.mxu0 0
        %1230 = vmatmul.mubr.bf16.gmra.mxu0 %v1192
        %v1231 = vpop.f32.mrf.mxu0
        %v1232 = vadd.f32 0.0, %v1231
        %v1233 = vpop.f32.mrf.mxu0
        %v1234 = vpop.f32.mrf.mxu0
        %v1235 = vpop.f32.mrf.mxu0
        %1236 = vdwg.mxu0
        %v1237 = vunpack.c.l.b16 %v845
        %v1238 = vpack.c.b16 %v1237, %v1237
        %1239 = vrot.lane.b32.xlu0 %v1238, 96
        %v1240 = vpop.permute.xlu0 %1239
        %v1242 = vsel %vm853, %v1085, 0
        %v1245 = vsel %vm1093, %v1240, 0
        %1247 = vmatprep.subr.bf16.mxu0 0
        %1248 = vmatpush1.bf16.msra.mxu0 0
        %1249 = vmatprep.subr.bf16.mxu0 0
        %1250 = vmatpush1.bf16.msra.mxu0 0
        %1251 = vmatprep.subr.bf16.mxu0 0
        %1252 = vmatpush1.bf16.msra.mxu0 0
        %1253 = vmatprep.subr.bf16.mxu0 0
        %1254 = vmatpush1.bf16.msra.mxu0 0
        %1255 = vmatprep.subr.bf16.mxu0 0
        %1256 = vmatpush1.bf16.msra.mxu0 0
        %1257 = vmatprep.subr.bf16.mxu0 0
        %1258 = vmatpush1.bf16.msra.mxu0 0
        %1259 = vmatprep.subr.bf16.mxu0 0
        %1260 = vmatpush1.bf16.msra.mxu0 0
        %1261 = vmatprep.subr.bf16.mxu0 0
        %1262 = vmatpush1.bf16.msra.mxu0 %v1245
        %1263 = vmatprep.subr.bf16.mxu0 0
        %1264 = vmatpush2.bf16.msra.mxu0 0
        %1265 = vmatprep.subr.bf16.mxu0 0
        %1266 = vmatpush2.bf16.msra.mxu0 0
        %1267 = vmatprep.subr.bf16.mxu0 0
        %1268 = vmatpush2.bf16.msra.mxu0 0
        %1269 = vmatprep.subr.bf16.mxu0 0
        %1270 = vmatpush2.bf16.msra.mxu0 0
        %1271 = vmatprep.subr.bf16.mxu0 0
        %1272 = vmatpush2.bf16.msra.mxu0 0
        %1273 = vmatprep.subr.bf16.mxu0 0
        %1274 = vmatpush2.bf16.msra.mxu0 0
        %1275 = vmatprep.subr.bf16.mxu0 0
        %1276 = vmatpush2.bf16.msra.mxu0 0
        %1277 = vmatprep.subr.bf16.mxu0 0
        %1278 = vmatpush2.bf16.msra.mxu0 0
        %1279 = vmatprep.mubr.bf16.mxu0 0
        %1280 = vmatmul.mubr.bf16.gmra.mxu0 %v1242
        %v1281 = vpop.f32.mrf.mxu0
        %v1282 = vadd.f32 0.0, %v1281
        %v1283 = vpop.f32.mrf.mxu0
        %v1284 = vpop.f32.mrf.mxu0
        %v1285 = vpop.f32.mrf.mxu0
        %1286 = vdwg.mxu0
        %1288 = vrot.lane.b32.xlu0 %v1182, 8
        %v1289 = vpop.permute.xlu0 %1288
        %1292 = vrot.lane.b32.xlu0 %v1232, 16
        %v1293 = vpop.permute.xlu0 %1292
        %1296 = vrot.lane.b32.xlu0 %v1282, 24
        %v1297 = vpop.permute.xlu0 %1296
        %v1299 = vsel %vm853, %v1132, %v1289
        %vm1300 = vcmask 130048
        %v1301 = vsel %vm1300, %v1299, %v1293
        %vm1302 = vcmask 195584
        %v1303 = vsel %vm1302, %v1301, %v1297
        %v1304 = vadd.f32 %v733, %v1303
        %v1305 = vld [vmem:[#allocation14] sm:$0x1]
        %v1306 = vld [vmem:[#allocation15] sm:$0x1]
        %v1307 = vsel %vm734, %v1304, 0.0
        %1308 = vadd.xlane.f32.xlu0 %v1307
        %v1309 = vpop.xlane.xlu0 %1308
        %v1310 = vmul.f32 %v1309, %v738
        %v1311 = vsub.f32 %v1304, %v1310
        %v1312 = vmul.f32 %v1311, %v1311
        %v1313 = vsel %vm734, %v1312, 0.0
        %1314 = vadd.xlane.f32.xlu0 %v1313
        %v1315 = vpop.xlane.xlu0 %1314
        %v1316 = vmul.f32 %v1315, %v738
        %v1317 = vadd.f32 %v1316, 1e-06
        %v1318 = vrsqrt.pop %v1317
        %v1319 = vmul.f32 %v1311, %v1318
        %v1321 = vlaneseq
        %v1322 = vshrl.u32 %v1321, 7
        %v1323 = vsub.s32 0, %v1322
        %v1324 = vrot.slane %v1305, %v1323
        %v1326 = vmul.f32 %v1319, %v1324
        %v1328 = vlaneseq
        %v1329 = vshrl.u32 %v1328, 7
        %v1330 = vsub.s32 0, %v1329
        %v1331 = vrot.slane %v1306, %v1330
        %v1333 = vadd.f32 %v1326, %v1331
        %v1334 = vpack.c.bf16 %v1333, %v1333
        %v1335 = vld [vmem:[%s10] sm:$0xf]
        %v1336 = vld [vmem:[%s10 + $0x4] sm:$0xf]
        %v1337 = vld [vmem:[%s10 + $0x8] sm:$0xf]
        %v1338 = vld [vmem:[%s10 + $0xc] sm:$0xf]
        %v1339 = vld [vmem:[%s11] sm:$0x1]
        %v1341 = vlaneseq
        %v1342 = vshrl.u32 %v1341, 7
        %v1343 = vsub.s32 0, %v1342
        %v1344 = vrot.slane %v1339, %v1343
        %v1350 = vunpack.c.l.b16 %v1335
        %v1351 = vunpack.c.l.b16 %v1336
        %v1352 = vunpack.c.l.b16 %v1337
        %v1353 = vunpack.c.l.b16 %v1338
        %v1354 = vpack.c.b16 %v1351, %v1350
        %v1355 = vpack.c.b16 %v1353, %v1352
        %v1359 = vsel %vm734, %v1334, 0
        %1361 = vmatprep.subr.bf16.mxu0 0
        %1362 = vmatpush1.bf16.msra.mxu0 0
        %1363 = vmatprep.subr.bf16.mxu0 0
        %1364 = vmatpush1.bf16.msra.mxu0 0
        %1365 = vmatprep.subr.bf16.mxu0 0
        %1366 = vmatpush1.bf16.msra.mxu0 0
        %1367 = vmatprep.subr.bf16.mxu0 0
        %1368 = vmatpush1.bf16.msra.mxu0 0
        %1369 = vmatprep.subr.bf16.mxu0 0
        %1370 = vmatpush1.bf16.msra.mxu0 0
        %1371 = vmatprep.subr.bf16.mxu0 0
        %1372 = vmatpush1.bf16.msra.mxu0 0
        %1373 = vmatprep.subr.bf16.mxu0 0
        %1374 = vmatpush1.bf16.msra.mxu0 %v1355
        %1375 = vmatprep.subr.bf16.mxu0 0
        %1376 = vmatpush1.bf16.msra.mxu0 %v1354
        %1377 = vmatprep.subr.bf16.mxu0 0
        %1378 = vmatpush2.bf16.msra.mxu0 0
        %1379 = vmatprep.subr.bf16.mxu0 0
        %1380 = vmatpush2.bf16.msra.mxu0 0
        %1381 = vmatprep.subr.bf16.mxu0 0
        %1382 = vmatpush2.bf16.msra.mxu0 0
        %1383 = vmatprep.subr.bf16.mxu0 0
        %1384 = vmatpush2.bf16.msra.mxu0 0
        %1385 = vmatprep.subr.bf16.mxu0 0
        %1386 = vmatpush2.bf16.msra.mxu0 0
        %1387 = vmatprep.subr.bf16.mxu0 0
        %1388 = vmatpush2.bf16.msra.mxu0 0
        %1389 = vmatprep.subr.bf16.mxu0 0
        %1390 = vmatpush2.bf16.msra.mxu0 0
        %1391 = vmatprep.subr.bf16.mxu0 0
        %1392 = vmatpush2.bf16.msra.mxu0 0
        %1393 = vmatprep.mubr.bf16.mxu0 0
        %1394 = vmatmul.mubr.bf16.gmra.mxu0 %v1359
        %v1395 = vpop.f32.mrf.mxu0
        %v1396 = vadd.f32 %v1344, %v1395
        %v1397 = vpop.f32.mrf.mxu0
        %v1398 = vpop.f32.mrf.mxu0
        %v1399 = vpop.f32.mrf.mxu0
        %1400 = vdwg.mxu0
        %v1401 = vmul.f32 %v1396, 0.5
        %v1402 = vmul.f32 %v1396, 0.70710677
        %v1403 = vand.u32 2147483647, %v1402
        %v1404 = vmul.f32 %v1403, 0.3275911
        %v1405 = vadd.f32 %v1404, 1.0
        %v1406 = vrcp.pop %v1405
        %v1407 = vmul.f32 %v1406, 1.0614054
        %v1408 = vadd.f32 %v1407, -1.4531521
        %v1409 = vmul.f32 %v1408, %v1406
        %v1410 = vadd.f32 %v1409, 1.4214138
        %v1411 = vmul.f32 %v1410, %v1406
        %v1412 = vadd.f32 %v1411, -0.28449672
        %v1413 = vmul.f32 %v1412, %v1406
        %v1414 = vadd.f32 %v1413, 0.2548296
        %v1415 = vmul.f32 %v1414, %v1406
        %v1416 = vsub.f32 0.0, %v1403
        %v1417 = vmul.f32 %v1416, %v1403
        %v1418 = vmul.f32 %v1417, 1.442695
        %v1419 = vpow.pop %v1418
        %v1420 = vmul.f32 %v1415, %v1419
        %v1421 = vsub.f32 1.0, %v1420
        %vm1422 = vcmp.ge.f32.partialorder %v1402, 0.0
        %v1423 = vsub.f32 0.0, %v1421
        %v1424 = vsel %vm1422, %v1421, %v1423
        %v1425 = vadd.f32 %v1424, 1.0
        %v1426 = vmul.f32 %v1401, %v1425
        %v1427 = vpack.c.bf16 %v1426, %v1426
        %v1428 = vld [vmem:[#allocation17] sm:$0xf]
        %v1429 = vld [vmem:[#allocation17 + $0x4] sm:$0xf]
        %v1430 = vld [vmem:[#allocation17 + $0x8] sm:$0xf]
        %v1431 = vld [vmem:[#allocation17 + $0xc] sm:$0xf]
        %v1432 = vld [vmem:[%s13] sm:$0x1]
        %v1434 = vlaneseq
        %v1435 = vshrl.u32 %v1434, 7
        %v1436 = vsub.s32 0, %v1435
        %v1437 = vrot.slane %v1432, %v1436
        %v1443 = vunpack.c.l.b16 %v1428
        %v1444 = vunpack.c.l.b16 %v1429
        %v1445 = vunpack.c.l.b16 %v1430
        %v1446 = vunpack.c.l.b16 %v1431
        %v1447 = vpack.c.b16 %v1444, %v1443
        %v1448 = vpack.c.b16 %v1446, %v1445
        %v1452 = vsel %vm734, %v1427, 0
        %1454 = vmatprep.subr.bf16.mxu0 0
        %1455 = vmatpush1.bf16.msra.mxu0 0
        %1456 = vmatprep.subr.bf16.mxu0 0
        %1457 = vmatpush1.bf16.msra.mxu0 0
        %1458 = vmatprep.subr.bf16.mxu0 0
        %1459 = vmatpush1.bf16.msra.mxu0 0
        %1460 = vmatprep.subr.bf16.mxu0 0
        %1461 = vmatpush1.bf16.msra.mxu0 0
        %1462 = vmatprep.subr.bf16.mxu0 0
        %1463 = vmatpush1.bf16.msra.mxu0 0
        %1464 = vmatprep.subr.bf16.mxu0 0
        %1465 = vmatpush1.bf16.msra.mxu0 0
        %1466 = vmatprep.subr.bf16.mxu0 0
        %1467 = vmatpush1.bf16.msra.mxu0 %v1448
        %1468 = vmatprep.subr.bf16.mxu0 0
        %1469 = vmatpush1.bf16.msra.mxu0 %v1447
        %1470 = vmatprep.subr.bf16.mxu0 0
        %1471 = vmatpush2.bf16.msra.mxu0 0
        %1472 = vmatprep.subr.bf16.mxu0 0
        %1473 = vmatpush2.bf16.msra.mxu0 0
        %1474 = vmatprep.subr.bf16.mxu0 0
        %1475 = vmatpush2.bf16.msra.mxu0 0
        %1476 = vmatprep.subr.bf16.mxu0 0
        %1477 = vmatpush2.bf16.msra.mxu0 0
        %1478 = vmatprep.subr.bf16.mxu0 0
        %1479 = vmatpush2.bf16.msra.mxu0 0
        %1480 = vmatprep.subr.bf16.mxu0 0
        %1481 = vmatpush2.bf16.msra.mxu0 0
        %1482 = vmatprep.subr.bf16.mxu0 0
        %1483 = vmatpush2.bf16.msra.mxu0 0
        %1484 = vmatprep.subr.bf16.mxu0 0
        %1485 = vmatpush2.bf16.msra.mxu0 0
        %1486 = vmatprep.mubr.bf16.mxu0 0
        %1487 = vmatmul.mubr.bf16.gmra.mxu0 %v1452
        %v1488 = vpop.f32.mrf.mxu0
        %v1489 = vadd.f32 %v1437, %v1488
        %v1490 = vpop.f32.mrf.mxu0
        %v1491 = vpop.f32.mrf.mxu0
        %v1492 = vpop.f32.mrf.mxu0
        %1493 = vdwg.mxu0
        %v1494 = vadd.f32 %v1489, %v1304
        %1495 = vst.msk [vmem:[%s623] sm:$0xff] %vm734, %v1494
        %s1496 = sand.u32 %s363, 1
        %s1497 = scalar_lea.sflag [#allocation5], %s1496
        %s1498 = sand.u32 %s363, 1
        %s1499 = smul.addr %s1498, 8
        %s1500 = scalar_lea.vmem [#allocation18], %s1499
        // Predicated region
        $region117: #{tpu_custom_call.1} parent=75 // pred_check
          %p1501 = pneg %p373
        $region118: #{tpu_custom_call.1} parent=75 // pred_check_branch
          %1503 = sbr.rel (%p1501) target = $region120
        $region119: #{tpu_custom_call.1} parent=75 // pred_region
          %s1505 = ssub.s32 128, 128
          %1506 = vsyncadd %s1497, %s1505
          %s1507 = sadd.s32 %s42, %s41
          %s1508 = smul.addr %s1507, 128
          %s1509 = scalar_lea.hbm %s14, %s1508
          %s1511 = sshll.u32 %s1500, 4
          %s1512 = int_to_ptr.vmem [resolvable:$true] %s1511
          %1514 = dma.vmem_to_hbm [thread:$0]  %s1512, 128, %s1509, %s1497
        $region120: #{tpu_custom_call.1} parent=75 // pred_fallthru
          _
      $region76: #{tpu_custom_call.1} parent=5 // pred_fallthru
        _
      %p1515 = scmp.le.s32.totalorder 2, %s32
      // Predicated region
      $region121: #{tpu_custom_call.1} parent=5 // pred_check
        %p1516 = pneg %p1515
      $region122: #{tpu_custom_call.1} parent=5 // pred_check_branch
        %1518 = sbr.rel (%p1516) target = $region124
      $region123: #{tpu_custom_call.1} parent=5 // pred_region
        %s1519 = ssub.s32 %s32, 2
        // Predicated region
        $region125: #{tpu_custom_call.1} parent=123 // pred_check
          %p1520 = pneg %p379
        $region126: #{tpu_custom_call.1} parent=123 // pred_check_branch
          %1522 = sbr.rel (%p1520) target = $region128
        $region127: #{tpu_custom_call.1} parent=123 // pred_region
          %s1523 = sand.u32 %s364, 1
          %s1524 = scalar_lea.sflag [#allocation5], %s1523
          %s1525 = sand.u32 %s364, 1
          %s1526 = smul.addr %s1525, 8
          %s1527 = scalar_lea.vmem [#allocation18], %s1526
          %1528 = dma.done %s1524, 128
        $region128: #{tpu_custom_call.1} parent=123 // pred_fallthru
          _
      $region124: #{tpu_custom_call.1} parent=5 // pred_fallthru
        _
    $region6: #{tpu_custom_call.1} parent=1 // loop_footer
      %s36 = sadd.s32 1, %s32
    $region7: #{tpu_custom_call.1} parent=1 // loop_footer_branch
      %31 = sbr.rel target = $region3
    $region8: #{tpu_custom_call.1} parent=1 // loop_exit
      _
    %1529 = vsyncpa [#allocation4], 1
    %s1530 = scalar_lea.sflag [#allocation4], 1
    %1531 = vsyncpa %s1530, 1
    %1532 = vsyncpa [#allocation7], 1
    %s1533 = scalar_lea.sflag [#allocation7], 1
    %1534 = vsyncpa %s1533, 1
    %1535 = vsyncpa [#allocation10], 1
    %1536 = vsyncpa [#allocation13], 1
    %1537 = vsyncpa [#allocation16], 1
    %1538 = vsyncpa [#allocation5], 1
    %s1539 = scalar_lea.sflag [#allocation5], 1
    %1540 = vsyncpa %s1539, 1

</llo_original>
